<compile_context>
chip_gen: v7x
topology: tpu7x:2x2x1
jax: 0.10.0
libtpu: 0.0.40
codegen_flags: <defaults>
</compile_context>

<pallas_src>
import numpy as np
import jax
import jax.numpy as jnp
from jax.experimental import pallas as pl
from jax.experimental.pallas import tpu as pltpu


def _sigmoid(z):
    # Exact 1/(1+exp(-z)); exp runs on the EUP.  Kept exact (vs.
    # pl.reciprocal(approx=True)) to stay within the 1e-4 comparison.
    return 1.0 / (1.0 + jnp.exp(-z))


# ----------------------------------------------------------------------------
# Pallas kernel: full CBAM forward for a block of Bt batch elements.
# ----------------------------------------------------------------------------
def _cbam_kernel(x_ref, w1t_ref, w2t_ref, k_ref, bn_ref, o_ref):
    # x_ref/o_ref: (Bt, C, HW)   w1t: (C, Cr)   w2t: (Cr, C)
    # k_ref: (2*HW, HW) 7x7 conv as matmul (rows 0..HW-1 = avg-map taps,
    #        HW..2*HW-1 = max-map taps), BN scale already folded in.
    # bn_ref: (1,) folded BN bias scalar, in SMEM.
    f32 = jnp.float32
    hp = jax.lax.Precision.HIGHEST  # DEFAULT (1 bf16 pass) misses 1e-4 tol.

    x = x_ref[...]                                      # (Bt, C, HW)
    bt = x.shape[0]

    # ---------------- Channel attention (fused avg+max MLP) ----------------
    avg_p = jnp.mean(x, axis=2)                         # (Bt, C)  lane reduce
    max_p = jnp.max(x, axis=2)                          # (Bt, C)
    pooled = jnp.concatenate([avg_p, max_p], axis=0)    # (2*Bt, C)
    h = jnp.maximum(
        jnp.dot(pooled, w1t_ref[...], preferred_element_type=f32, precision=hp),
        0.0)                                            # (2*Bt, Cr) ReLU
    o = jnp.dot(h, w2t_ref[...],
                preferred_element_type=f32, precision=hp)   # (2*Bt, C)
    ca = _sigmoid(o[:bt] + o[bt:])                      # (Bt, C)
    x_ca = x * ca[:, :, None]                           # broadcast along lanes

    # ---------------- Spatial attention (single batched matmul) ------------
    avg_map = jnp.mean(x_ca, axis=1)                    # (Bt, HW) sublane reduce
    max_map = jnp.max(x_ca, axis=1)                     # (Bt, HW)
    maps = jnp.concatenate([avg_map, max_map], axis=1)  # (Bt, 2*HW)
    sa_logit = jnp.dot(maps, k_ref[...],
                       preferred_element_type=f32, precision=hp) + bn_ref[0]
    sa = _sigmoid(sa_logit)                             # (Bt, HW)

    o_ref[...] = x_ca * sa[:, None, :]                  # broadcast along sublanes


def _choose_bt(B, C, HW, target_bytes=2 << 20):
    """Batch elements per grid step: ~2 MiB x-tile, but keep >= 2 grid steps
    when B >= 2 so v7x's two TensorCores both get work."""
    per_b = C * HW * 4
    bt = max(1, min(B, max(1, target_bytes // per_b)))
    if B >= 2 and bt >= B:
        bt = max(1, B // 2)
    while B % bt:                                       # keep grid exact
        bt -= 1
    return bt


def _cbam_pallas(x2, w1t, w2t, k2, bn_bias):
    """x2: (B, C, HW), w1t: (C, Cr), w2t: (Cr, C), k2: (2*HW, HW), bn_bias: (1,)."""
    B, C, HW = x2.shape
    Cr = w1t.shape[1]
    bt = _choose_bt(B, C, HW)

    cost = pl.CostEstimate(
        flops=int(B * (4 * HW * HW        # spatial conv-as-matmul
                       + 8 * C * Cr       # fused channel MLP
                       + 8 * C * HW)),    # pools / scales (elementwise)
        transcendentals=int(B * (C + HW)),                    # sigmoids
        bytes_accessed=int(4 * (2 * B * C * HW + 2 * HW * HW + 2 * Cr * C + 1)),
    )

    return pl.pallas_call(
        _cbam_kernel,
        out_shape=jax.ShapeDtypeStruct((B, C, HW), jnp.float32),
        grid=(B // bt,),
        in_specs=[
            pl.BlockSpec((bt, C, HW), lambda b: (b, 0, 0)),    # x: Bt batches/step
            pl.BlockSpec((C, Cr), lambda b: (0, 0)),           # w1^T (VMEM-resident)
            pl.BlockSpec((Cr, C), lambda b: (0, 0)),           # w2^T (VMEM-resident)
            pl.BlockSpec((2 * HW, HW), lambda b: (0, 0)),      # conv matrix (resident)
            pl.BlockSpec(memory_space=pltpu.MemorySpace.SMEM), # folded BN bias scalar
        ],
        out_specs=pl.BlockSpec((bt, C, HW), lambda b: (b, 0, 0)),
        compiler_params=pltpu.CompilerParams(
            dimension_semantics=("parallel",),   # shard batch blocks across TCs
            vmem_limit_bytes=32 * 1024 * 1024,   # 2x(in+out) 2 MiB blocks + k2 << 32 MiB
        ),
        cost_estimate=cost,
    )(x2, w1t, w2t, k2, bn_bias)


# ----------------------------------------------------------------------------
# Host-side preprocessing: 7x7 "SAME" conv (2->1 ch, no bias) as a dense matrix.
# ----------------------------------------------------------------------------
def _build_spatial_conv_matrix(w_sp, H, W):
    """Returns K (2, HW, HW) such that conv_out[j] = sum_c sum_q maps[c, q] * K[c, q, j]."""
    w = np.asarray(w_sp, dtype=np.float32)        # (1, 2, k, k)
    k = w.shape[-1]
    pad = k // 2
    HW = H * W
    K = np.zeros((w.shape[1], HW, HW), dtype=np.float32)
    for c in range(w.shape[1]):
        for u in range(k):
            for v in range(k):
                wv = w[0, c, u, v]
                for y in range(H):
                    sy = y + u - pad
                    if sy < 0 or sy >= H:
                        continue
                    for xx in range(W):
                        sx = xx + v - pad
                        if 0 <= sx < W:
                            K[c, sy * W + sx, y * W + xx] += wv
    return K


# ----------------------------------------------------------------------------
# CBAM forward (Pallas path)
# ----------------------------------------------------------------------------
def cbam_forward(x, w1, w2, w_sp, gamma, beta, running_mean, running_var, eps=1e-5):
    """x: (B, C, H, W) f32. w1: (C//r, C); w2: (C, C//r); w_sp: (1, 2, 7, 7).
    BatchNorm2d(1) eval-mode parameters are scalars."""
    B, C, H, W = x.shape
    HW = H * W

    # Fold eval-mode BatchNorm into the spatial-conv matrix + one scalar bias.
    bn_scale = np.float32(gamma) / np.sqrt(np.float32(running_var) + np.float32(eps))
    bn_bias = np.float32(beta) - bn_scale * np.float32(running_mean)
    K = _build_spatial_conv_matrix(w_sp, H, W)                     # (2, HW, HW)
    k2 = jnp.asarray((bn_scale * K).reshape(2 * HW, HW), dtype=jnp.float32)

    out = _cbam_pallas(
        x.reshape(B, C, HW).astype(jnp.float32),
        jnp.asarray(w1, jnp.float32).T,                            # (C, Cr)
        jnp.asarray(w2, jnp.float32).T,                            # (Cr, C)
        k2,
        jnp.asarray([bn_bias], dtype=jnp.float32),
    )
    return out.reshape(B, C, H, W)


# ----------------------------------------------------------------------------
# Pure-JAX reference (mirrors the PyTorch module 1:1, eval-mode BN)
# ----------------------------------------------------------------------------
def cbam_reference(x, w1, w2, w_sp, gamma, beta, running_mean, running_var, eps=1e-5):
    hp = jax.lax.Precision.HIGHEST
    avg = jnp.mean(x, axis=(2, 3), keepdims=True)
    mx = jnp.max(x, axis=(2, 3), keepdims=True)

    def mlp(p):
        h = jnp.einsum("oc,bcyx->boyx", w1, p, precision=hp)
        h = jnp.maximum(h, 0.0)
        return jnp.einsum("oc,bcyx->boyx", w2, h, precision=hp)

    ca = jax.nn.sigmoid(mlp(avg) + mlp(mx))
    x_ca = x * ca

    avg_map = jnp.mean(x_ca, axis=1, keepdims=True)
    max_map = jnp.max(x_ca, axis=1, keepdims=True)
    maps = jnp.concatenate([avg_map, max_map], axis=1)
    conv = jax.lax.conv_general_dilated(
        maps, w_sp, window_strides=(1, 1), padding="SAME",
        dimension_numbers=("NCHW", "OIHW", "NCHW"), precision=hp)
    bn_out = gamma * (conv - running_mean) / jnp.sqrt(running_var + eps) + beta
    sa = jax.nn.sigmoid(bn_out)
    return x_ca * sa


if __name__ == "__main__":
    # Small deterministic problem consistent with the module's forward
    # (input_channels must be >= reduction_ratio for the 1x1 bottleneck).
    B, C, H, W = 2, 32, 16, 16
    reduction = 8
    Cr = C // reduction                       # hidden width 4
    ksize = 7

    key = jax.random.PRNGKey(0)
    kx, kw1, kw2, kw3 = jax.random.split(key, 4)
    x = jax.random.normal(kx, (B, C, H, W), dtype=jnp.float32)
    w1 = jax.random.normal(kw1, (Cr, C), dtype=jnp.float32) * (1.0 / C) ** 0.5
    w2 = jax.random.normal(kw2, (C, Cr), dtype=jnp.float32) * (1.0 / Cr) ** 0.5
    w_sp = jax.random.normal(kw3, (1, 2, ksize, ksize), dtype=jnp.float32) * 0.1

    # Deterministic, non-trivial eval-mode BatchNorm2d(1) parameters.
    gamma, beta = 1.2, 0.1
    running_mean, running_var, eps = 0.05, 0.8, 1e-5

    out = cbam_forward(x, w1, w2, w_sp, gamma, beta, running_mean, running_var, eps)
    out = jax.block_until_ready(out)

    ref = jax.block_until_ready(
        cbam_reference(x, w1, w2, w_sp, gamma, beta, running_mean, running_var, eps))

    assert out.shape == (B, C, H, W), out.shape
    max_err = float(jnp.max(jnp.abs(out - ref)))
    assert jnp.allclose(out, ref, atol=1e-4, rtol=1e-4), max_err
    print("KERNEL_OK")
</pallas_src>

<mosaic_0001>
module attributes {stable_mosaic.version = 11 : i64} {
  func.func @_cbam_kernel(%arg0: i32, %arg1: memref<1x32x256xf32, #tpu.memory_space<vmem>>, %arg2: memref<32x4xf32, #tpu.memory_space<vmem>>, %arg3: memref<4x32xf32, #tpu.memory_space<vmem>>, %arg4: memref<512x256xf32, #tpu.memory_space<vmem>>, %arg5: memref<1xf32, #tpu.memory_space<smem>>, %arg6: memref<1x32x256xf32, #tpu.memory_space<vmem>>) attributes {dimension_semantics = [#tpu.dimension_semantics<parallel>], iteration_bounds = array<i64: 2>, scalar_prefetch = 0 : i64, scratch_operands = 0 : i64, tpu.core_type = #tpu.core_type<tc>, window_params = [{transform_indices = @transform_0, window_bounds = array<i64: 1, 32, 256>}, {pipeline_mode = #tpu.pipeline_mode<synchronous>, transform_indices = @transform_1, window_bounds = array<i64: 32, 4>}, {pipeline_mode = #tpu.pipeline_mode<synchronous>, transform_indices = @transform_2, window_bounds = array<i64: 4, 32>}, {pipeline_mode = #tpu.pipeline_mode<synchronous>, transform_indices = @transform_3, window_bounds = array<i64: 512, 256>}, {transform_indices = @transform_4, window_bounds = array<i64: 1>}, {transform_indices = @transform_5, window_bounds = array<i64: 1, 32, 256>}]} {
    %c0 = arith.constant 0 : index
    %c0_0 = arith.constant 0 : index
    %c0_1 = arith.constant 0 : index
    %0 = vector.load %arg1[%c0, %c0_0, %c0_1] : memref<1x32x256xf32, #tpu.memory_space<vmem>>, vector<1x32x256xf32>
    %cst = arith.constant dense<0.000000e+00> : vector<1x32xf32>
    %1 = vector.multi_reduction <add>, %0, %cst [2] : vector<1x32x256xf32> to vector<1x32xf32>
    %cst_2 = arith.constant 2.560000e+02 : f32
    %2 = vector.broadcast %cst_2 : f32 to vector<1x32xf32>
    %3 = arith.divf %1, %2 : vector<1x32xf32>
    %cst_3 = arith.constant dense<0xFF800000> : vector<1x32xf32>
    %4 = vector.multi_reduction <maximumf>, %0, %cst_3 [2] : vector<1x32x256xf32> to vector<1x32xf32>
    %5 = tpu.concatenate %3, %4 in 0 : vector<1x32xf32>, vector<1x32xf32> -> vector<2x32xf32>
    %c0_4 = arith.constant 0 : index
    %c0_5 = arith.constant 0 : index
    %6 = vector.load %arg2[%c0_4, %c0_5] : memref<32x4xf32, #tpu.memory_space<vmem>>, vector<32x4xf32>
    %cst_6 = arith.constant dense<0.000000e+00> : vector<2x4xf32>
    %7 = tpu.matmul %5, %6, %cst_6 {dimension_numbers = #tpu.dot_dimension_numbers<[1], [0], [0], [1], [0, 0, 1, 1], [], []>, precision = #tpu.contract_precision<fp32>} : vector<2x32xf32>, vector<32x4xf32>, vector<2x4xf32> -> vector<2x4xf32>
    %cst_7 = arith.constant 0.000000e+00 : f32
    %8 = vector.broadcast %cst_7 : f32 to vector<2x4xf32>
    %9 = arith.maximumf %7, %8 : vector<2x4xf32>
    %c0_8 = arith.constant 0 : index
    %c0_9 = arith.constant 0 : index
    %10 = vector.load %arg3[%c0_8, %c0_9] : memref<4x32xf32, #tpu.memory_space<vmem>>, vector<4x32xf32>
    %cst_10 = arith.constant dense<0.000000e+00> : vector<2x32xf32>
    %11 = tpu.matmul %9, %10, %cst_10 {dimension_numbers = #tpu.dot_dimension_numbers<[1], [0], [0], [1], [0, 0, 1, 1], [], []>, precision = #tpu.contract_precision<fp32>} : vector<2x4xf32>, vector<4x32xf32>, vector<2x32xf32> -> vector<2x32xf32>
    %12 = vector.extract_strided_slice %11 {offsets = [0, 0], sizes = [1, 32], strides = [1, 1]} : vector<2x32xf32> to vector<1x32xf32>
    %13 = vector.extract_strided_slice %11 {offsets = [1, 0], sizes = [1, 32], strides = [1, 1]} : vector<2x32xf32> to vector<1x32xf32>
    %14 = arith.addf %12, %13 : vector<1x32xf32>
    %cst_11 = arith.constant 0.000000e+00 : f32
    %15 = vector.broadcast %cst_11 : f32 to vector<1x32xf32>
    %16 = arith.subf %15, %14 : vector<1x32xf32>
    %17 = math.exp %16 : vector<1x32xf32>
    %cst_12 = arith.constant 1.000000e+00 : f32
    %18 = vector.broadcast %cst_12 : f32 to vector<1x32xf32>
    %19 = arith.addf %18, %17 : vector<1x32xf32>
    %cst_13 = arith.constant 1.000000e+00 : f32
    %20 = vector.broadcast %cst_13 : f32 to vector<1x32xf32>
    %21 = arith.divf %20, %19 : vector<1x32xf32>
    %22 = vector.shape_cast %21 : vector<1x32xf32> to vector<1x32x1xf32>
    %23 = vector.broadcast %22 : vector<1x32x1xf32> to vector<1x32x256xf32>
    %24 = arith.mulf %0, %23 : vector<1x32x256xf32>
    %cst_14 = arith.constant dense<0.000000e+00> : vector<1x256xf32>
    %25 = vector.multi_reduction <add>, %24, %cst_14 [1] : vector<1x32x256xf32> to vector<1x256xf32>
    %cst_15 = arith.constant 3.200000e+01 : f32
    %26 = vector.broadcast %cst_15 : f32 to vector<1x256xf32>
    %27 = arith.divf %25, %26 : vector<1x256xf32>
    %cst_16 = arith.constant dense<0xFF800000> : vector<1x256xf32>
    %28 = vector.multi_reduction <maximumf>, %24, %cst_16 [1] : vector<1x32x256xf32> to vector<1x256xf32>
    %29 = tpu.concatenate %27, %28 in 1 : vector<1x256xf32>, vector<1x256xf32> -> vector<1x512xf32>
    %c0_17 = arith.constant 0 : index
    %c0_18 = arith.constant 0 : index
    %30 = vector.load %arg4[%c0_17, %c0_18] : memref<512x256xf32, #tpu.memory_space<vmem>>, vector<512x256xf32>
    %cst_19 = arith.constant dense<0.000000e+00> : vector<1x256xf32>
    %31 = tpu.matmul %29, %30, %cst_19 {dimension_numbers = #tpu.dot_dimension_numbers<[1], [0], [0], [1], [0, 0, 1, 1], [], []>, precision = #tpu.contract_precision<fp32>} : vector<1x512xf32>, vector<512x256xf32>, vector<1x256xf32> -> vector<1x256xf32>
    %c0_20 = arith.constant 0 : index
    %32 = memref.load %arg5[%c0_20] : memref<1xf32, #tpu.memory_space<smem>>
    %33 = vector.broadcast %32 : f32 to vector<1x256xf32>
    %34 = arith.addf %31, %33 : vector<1x256xf32>
    %cst_21 = arith.constant 0.000000e+00 : f32
    %35 = vector.broadcast %cst_21 : f32 to vector<1x256xf32>
    %36 = arith.subf %35, %34 : vector<1x256xf32>
    %37 = math.exp %36 : vector<1x256xf32>
    %cst_22 = arith.constant 1.000000e+00 : f32
    %38 = vector.broadcast %cst_22 : f32 to vector<1x256xf32>
    %39 = arith.addf %38, %37 : vector<1x256xf32>
    %cst_23 = arith.constant 1.000000e+00 : f32
    %40 = vector.broadcast %cst_23 : f32 to vector<1x256xf32>
    %41 = arith.divf %40, %39 : vector<1x256xf32>
    %42 = vector.shape_cast %41 : vector<1x256xf32> to vector<1x1x256xf32>
    %43 = vector.broadcast %42 : vector<1x1x256xf32> to vector<1x32x256xf32>
    %44 = arith.mulf %24, %43 : vector<1x32x256xf32>
    %c0_24 = arith.constant 0 : index
    %c0_25 = arith.constant 0 : index
    %c0_26 = arith.constant 0 : index
    %45 = vector.load %arg6[%c0_24, %c0_25, %c0_26] : memref<1x32x256xf32, #tpu.memory_space<vmem>>, vector<1x32x256xf32>
    tpu.vector_store %arg6[%c0_24, %c0_25, %c0_26], %44 {strides = array<i32>} : memref<1x32x256xf32, #tpu.memory_space<vmem>>, vector<1x32x256xf32>,
    return
  }
  func.func @transform_0(%arg0: i32) -> (i32, i32, i32) {
    %c0_i32 = arith.constant 0 : i32
    %c0_i32_0 = arith.constant 0 : i32
    %c0_i32_1 = arith.constant 0 : i32
    return %arg0, %c0_i32, %c0_i32_0 : i32, i32, i32
  }
  func.func @transform_1(%arg0: i32) -> (i32, i32) {
    %c0_i32 = arith.constant 0 : i32
    %c0_i32_0 = arith.constant 0 : i32
    %c0_i32_1 = arith.constant 0 : i32
    return %c0_i32, %c0_i32_0 : i32, i32
  }
  func.func @transform_2(%arg0: i32) -> (i32, i32) {
    %c0_i32 = arith.constant 0 : i32
    %c0_i32_0 = arith.constant 0 : i32
    %c0_i32_1 = arith.constant 0 : i32
    return %c0_i32, %c0_i32_0 : i32, i32
  }
  func.func @transform_3(%arg0: i32) -> (i32, i32) {
    %c0_i32 = arith.constant 0 : i32
    %c0_i32_0 = arith.constant 0 : i32
    %c0_i32_1 = arith.constant 0 : i32
    return %c0_i32, %c0_i32_0 : i32, i32
  }
  func.func @transform_4(%arg0: i32) -> i32 {
    %c0_i32 = arith.constant 0 : i32
    %c0_i32_0 = arith.constant 0 : i32
    return %c0_i32 : i32
  }
  func.func @transform_5(%arg0: i32) -> (i32, i32, i32) {
    %c0_i32 = arith.constant 0 : i32
    %c0_i32_0 = arith.constant 0 : i32
    %c0_i32_1 = arith.constant 0 : i32
    return %arg0, %c0_i32, %c0_i32_0 : i32, i32, i32
  }
}

</mosaic_0001>

<llo_original>
// kernel: tpu_custom_call.1
$region0: #{tpu_custom_call.1}
  #allocation0 [shape = 'u32[]', space=smem, size = 0x4, offset = 0x4, fixed_abs, tag = 'smem constant byte address 0x4 - core index']
  #allocation1 [shape = 'u32[144,128]{1,0:T(1,128)}', space=vmem, size = 0x12000, scoped, tag = 'internal scratch']
  #allocation2 [shape = 'f32[1]{0:T(128)S(6)}', space=smem, size = 0x200, scoped, tag = 'scoped memory for tpu_custom_call.1']
  %s0 = inlined_call_operand.hbm [shape: f32[2,32,256], index: 0, kind: input, shape index: {}]
  %s1 = inlined_call_operand.vmem [shape: f32[32,4], index: 1, kind: input, shape index: {}]
  %s2 = inlined_call_operand.vmem [shape: f32[4,32], index: 2, kind: input, shape index: {}]
  %s3 = inlined_call_operand.hbm [shape: f32[512,256], index: 3, kind: input, shape index: {}]
  %s4 = inlined_call_operand.<no memory space> [shape: f32[1], index: 4, kind: input, shape index: {}]
  %s5 = inlined_call_operand.hbm [shape: f32[2,32,256], index: 5, kind: output, shape index: {}]
  %s6 = sld [smem:[#allocation0]]
  $region61: #{tpu_custom_call.1} parent=0
    _
  %s8 = ssub.s32 1, %s6
  %s9 = scalar_select 0, %s8, %s6
  %10 = sst [smem:[#allocation2]] %s4
  $region1: #{tpu_custom_call.1} parent=0
    #allocation3 [shape = 'u8[65536]{0}', space=vmem, size = 0x10000, scoped, tag = 'input window, operand 0']
    #allocation4 [shape = 's32[2]{0}', space=sflag, size = 0x8, scoped, tag = 'scoped memory for tpu_custom_call.1']
    #allocation5 [shape = 's32[2]{0}', space=sflag, size = 0x8, scoped, tag = 'scoped memory for tpu_custom_call.1']
    #allocation6 [shape = 'u8[524288]{0}', space=vmem, size = 0x80000, scoped, tag = 'input window, operand 3, single buffered']
    #allocation7 [shape = 's32[1]{0}', space=sflag, size = 0x4, scoped, tag = 'scoped memory for tpu_custom_call.1']
    #allocation8 [shape = 'u8[65536]{0}', space=vmem, size = 0x10000, scoped, tag = 'output window, operand 0']
    %11 = vsyncpa [#allocation4], 0
    %s12 = scalar_lea.sflag [#allocation4], 1
    %13 = vsyncpa %s12, 0
    %14 = vsyncpa [#allocation7], 0
    %15 = vsyncpa [#allocation5], 0
    %s16 = scalar_lea.sflag [#allocation5], 1
    %17 = vsyncpa %s16, 0
    loop: start=0, step=1, limit=4
    $region2: #{tpu_custom_call.1} parent=1 // loop_pre_header
      _
    $region3: #{tpu_custom_call.1} parent=1 // loop_header
      %s19 = sphi 0, %s23
      %p20 = scmp.ge.s32.totalorder %s19, 4
      %s29 = sphi 0, %s31
      %s32 = sphi 0, %s29
      %s33 = sphi 0, %s32
      %s49 = sphi 0, %s33
      %s53 = sphi 0, %s53
      %s55 = sphi 0, %s53
      %s56 = sphi 0, %s55
      %s70 = sphi 0, %s56
      %s74 = sphi 0, %s74
      %s76 = sphi 0, %s74
      %s77 = sphi 0, %s76
      %s91 = sphi 0, %s77
      %s95 = sphi 0, %s95
      %s97 = sphi 0, %s95
      %s98 = sphi 0, %s97
      %s112 = sphi 0, %s98
      %s116 = sphi 0, %s116
      %s118 = sphi 0, %s116
      %s119 = sphi 0, %s118
      %s133 = sphi 0, %s119
      %s139 = sphi 0, %s141
      %s142 = sphi 0, %s139
      %s143 = sphi 0, %s142
      %s159 = sphi 0, %s143
    $region4: #{tpu_custom_call.1} parent=1 // loop_header_branch
      %22 = sbr.rel (%p20) target = $region8
    $region5: #{tpu_custom_call.1} parent=1 // loop_body
      %s24 = ssub.s32 %s19, 1
      %s25 = ssub.s32 %s19, 2
      %s26 = sadd.s32 %s19, 1
      %s27 = ssub.s32 %s19, %s26
      %p28 = scmp.eq.s32.totalorder %s27, 0
      %s30 = sadd.s32 %s29, 1
      %s31 = scalar_select %p28, %s29, %s30
      %p34 = pneg %p28
      %p35 = scmp.eq.s32.totalorder %s19, 1
      %p36 = por %p34, %p35
      %p37 = scmp.ne.s32.totalorder %s29, %s32
      %p38 = scmp.eq.s32.totalorder %s19, 0
      %p39 = por %p37, %p38
      %p40 = scmp.ne.s32.totalorder %s29, %s32
      %p41 = scmp.eq.s32.totalorder %s24, 1
      %p42 = por %p40, %p41
      %p43 = scmp.ne.s32.totalorder %s32, %s33
      %p44 = scmp.eq.s32.totalorder %s24, 0
      %p45 = por %p43, %p44
      %p46 = scmp.ne.s32.totalorder %s32, %s33
      %p47 = scmp.eq.s32.totalorder %s25, 1
      %p48 = por %p46, %p47
      %p50 = scmp.ne.s32.totalorder %s33, %s49
      %p51 = scmp.eq.s32.totalorder %s25, 0
      %p52 = por %p50, %p51
      %s54 = sadd.s32 %s53, 1
      %p57 = scmp.eq.s32.totalorder %s19, 1
      %p58 = scmp.ne.s32.totalorder %s53, %s55
      %p59 = scmp.eq.s32.totalorder %s19, 0
      %p60 = por %p58, %p59
      %p61 = scmp.ne.s32.totalorder %s53, %s55
      %p62 = scmp.eq.s32.totalorder %s24, 1
      %p63 = por %p61, %p62
      %p64 = scmp.ne.s32.totalorder %s55, %s56
      %p65 = scmp.eq.s32.totalorder %s24, 0
      %p66 = por %p64, %p65
      %p67 = scmp.ne.s32.totalorder %s55, %s56
      %p68 = scmp.eq.s32.totalorder %s25, 1
      %p69 = por %p67, %p68
      %p71 = scmp.ne.s32.totalorder %s56, %s70
      %p72 = scmp.eq.s32.totalorder %s25, 0
      %p73 = por %p71, %p72
      %s75 = sadd.s32 %s74, 1
      %p78 = scmp.eq.s32.totalorder %s19, 1
      %p79 = scmp.ne.s32.totalorder %s74, %s76
      %p80 = scmp.eq.s32.totalorder %s19, 0
      %p81 = por %p79, %p80
      %p82 = scmp.ne.s32.totalorder %s74, %s76
      %p83 = scmp.eq.s32.totalorder %s24, 1
      %p84 = por %p82, %p83
      %p85 = scmp.ne.s32.totalorder %s76, %s77
      %p86 = scmp.eq.s32.totalorder %s24, 0
      %p87 = por %p85, %p86
      %p88 = scmp.ne.s32.totalorder %s76, %s77
      %p89 = scmp.eq.s32.totalorder %s25, 1
      %p90 = por %p88, %p89
      %p92 = scmp.ne.s32.totalorder %s77, %s91
      %p93 = scmp.eq.s32.totalorder %s25, 0
      %p94 = por %p92, %p93
      %s96 = sadd.s32 %s95, 1
      %p99 = scmp.eq.s32.totalorder %s19, 1
      %p100 = scmp.ne.s32.totalorder %s95, %s97
      %p101 = scmp.eq.s32.totalorder %s19, 0
      %p102 = por %p100, %p101
      %p103 = scmp.ne.s32.totalorder %s95, %s97
      %p104 = scmp.eq.s32.totalorder %s24, 1
      %p105 = por %p103, %p104
      %p106 = scmp.ne.s32.totalorder %s97, %s98
      %p107 = scmp.eq.s32.totalorder %s24, 0
      %p108 = por %p106, %p107
      %p109 = scmp.ne.s32.totalorder %s97, %s98
      %p110 = scmp.eq.s32.totalorder %s25, 1
      %p111 = por %p109, %p110
      %p113 = scmp.ne.s32.totalorder %s98, %s112
      %p114 = scmp.eq.s32.totalorder %s25, 0
      %p115 = por %p113, %p114
      %s117 = sadd.s32 %s116, 1
      %p120 = scmp.eq.s32.totalorder %s19, 1
      %p121 = scmp.ne.s32.totalorder %s116, %s118
      %p122 = scmp.eq.s32.totalorder %s19, 0
      %p123 = por %p121, %p122
      %p124 = scmp.ne.s32.totalorder %s116, %s118
      %p125 = scmp.eq.s32.totalorder %s24, 1
      %p126 = por %p124, %p125
      %p127 = scmp.ne.s32.totalorder %s118, %s119
      %p128 = scmp.eq.s32.totalorder %s24, 0
      %p129 = por %p127, %p128
      %p130 = scmp.ne.s32.totalorder %s118, %s119
      %p131 = scmp.eq.s32.totalorder %s25, 1
      %p132 = por %p130, %p131
      %p134 = scmp.ne.s32.totalorder %s119, %s133
      %p135 = scmp.eq.s32.totalorder %s25, 0
      %p136 = por %p134, %p135
      %s137 = ssub.s32 %s19, %s26
      %p138 = scmp.eq.s32.totalorder %s137, 0
      %s140 = sadd.s32 %s139, 1
      %s141 = scalar_select %p138, %s139, %s140
      %p144 = pneg %p138
      %p145 = scmp.eq.s32.totalorder %s19, 1
      %p146 = por %p144, %p145
      %p147 = scmp.ne.s32.totalorder %s139, %s142
      %p148 = scmp.eq.s32.totalorder %s19, 0
      %p149 = por %p147, %p148
      %p150 = scmp.ne.s32.totalorder %s139, %s142
      %p151 = scmp.eq.s32.totalorder %s24, 1
      %p152 = por %p150, %p151
      %p153 = scmp.ne.s32.totalorder %s142, %s143
      %p154 = scmp.eq.s32.totalorder %s24, 0
      %p155 = por %p153, %p154
      %p156 = scmp.ne.s32.totalorder %s142, %s143
      %p157 = scmp.eq.s32.totalorder %s25, 1
      %p158 = por %p156, %p157
      %p160 = scmp.ne.s32.totalorder %s143, %s159
      %p161 = scmp.eq.s32.totalorder %s25, 0
      %p162 = por %p160, %p161
      %p163 = scmp.le.s32.totalorder 1, %s19
      %p164 = scmp.lt.s32.totalorder %s19, 3
      %p165 = pnand %p163, %p164
      %p166 = pneg %p165
      // Predicated region
      $region9: #{tpu_custom_call.1} parent=5 // pred_check
        _
      $region10: #{tpu_custom_call.1} parent=5 // pred_check_branch
        %168 = sbr.rel (%p165) target = $region12
      $region11: #{tpu_custom_call.1} parent=5 // pred_region
        %s169 = ssub.s32 %s19, 1
        // Predicated region
        $region13: #{tpu_custom_call.1} parent=11 // pred_check
          %p170 = pneg %p66
        $region14: #{tpu_custom_call.1} parent=11 // pred_check_branch
          %172 = sbr.rel (%p170) target = $region16
        $region15: #{tpu_custom_call.1} parent=11 // pred_region
          _
        $region16: #{tpu_custom_call.1} parent=11 // pred_fallthru
          _
        // Predicated region
        $region17: #{tpu_custom_call.1} parent=11 // pred_check
          %p173 = pneg %p87
        $region18: #{tpu_custom_call.1} parent=11 // pred_check_branch
          %175 = sbr.rel (%p173) target = $region20
        $region19: #{tpu_custom_call.1} parent=11 // pred_region
          _
        $region20: #{tpu_custom_call.1} parent=11 // pred_fallthru
          _
        // Predicated region
        $region21: #{tpu_custom_call.1} parent=11 // pred_check
          %p176 = pneg %p108
        $region22: #{tpu_custom_call.1} parent=11 // pred_check_branch
          %178 = sbr.rel (%p176) target = $region24
        $region23: #{tpu_custom_call.1} parent=11 // pred_region
          %s180 = ssub.s32 16384, 16384
          %181 = vsyncadd [#allocation7], %s180
          %s182 = sshll.u32 [#allocation6], 4
          %s183 = int_to_ptr.vmem [resolvable:$true] %s182
          %188 = dma.hbm_to_vmem [thread:$0]  %s3, 16384, %s183, [#allocation7], 256, 256, 16
        $region24: #{tpu_custom_call.1} parent=11 // pred_fallthru
          _
        // Predicated region
        $region25: #{tpu_custom_call.1} parent=11 // pred_check
          %p189 = pneg %p129
        $region26: #{tpu_custom_call.1} parent=11 // pred_check_branch
          %191 = sbr.rel (%p189) target = $region28
        $region27: #{tpu_custom_call.1} parent=11 // pred_region
          _
        $region28: #{tpu_custom_call.1} parent=11 // pred_fallthru
          _
      $region12: #{tpu_custom_call.1} parent=5 // pred_fallthru
        _
      %p192 = scmp.lt.s32.totalorder %s19, 2
      // Predicated region
      $region29: #{tpu_custom_call.1} parent=5 // pred_check
        %p193 = pneg %p192
      $region30: #{tpu_custom_call.1} parent=5 // pred_check_branch
        %195 = sbr.rel (%p193) target = $region32
      $region31: #{tpu_custom_call.1} parent=5 // pred_region
        // Predicated region
        $region33: #{tpu_custom_call.1} parent=31 // pred_check
          %p196 = pneg %p39
        $region34: #{tpu_custom_call.1} parent=31 // pred_check_branch
          %198 = sbr.rel (%p196) target = $region36
        $region35: #{tpu_custom_call.1} parent=31 // pred_region
          %s199 = sand.u32 %s29, 1
          %s200 = scalar_lea.sflag [#allocation4], %s199
          %s201 = sand.u32 %s29, 1
          %s202 = smul.addr %s201, 64
          %s203 = scalar_lea.vmem [#allocation3], %s202
          %s205 = ssub.s32 1024, 1024
          %206 = vsyncadd %s200, %s205
          %s207 = smul.addr %s19, 8
          %s208 = smul.addr %s207, 128
          %s209 = scalar_lea.hbm %s0, %s208
          %s210 = sshll.u32 %s203, 4
          %s211 = int_to_ptr.vmem [resolvable:$true] %s210
          %216 = dma.hbm_to_vmem [thread:$0]  %s209, 1024, %s211, %s200, 256, 256, 16
        $region36: #{tpu_custom_call.1} parent=31 // pred_fallthru
          _
      $region32: #{tpu_custom_call.1} parent=5 // pred_fallthru
        _
      %p217 = scmp.le.s32.totalorder 1, %s19
      %p218 = scmp.lt.s32.totalorder %s19, 3
      %p219 = pnand %p217, %p218
      %p220 = pneg %p219
      // Predicated region
      $region37: #{tpu_custom_call.1} parent=5 // pred_check
        _
      $region38: #{tpu_custom_call.1} parent=5 // pred_check_branch
        %222 = sbr.rel (%p219) target = $region40
      $region39: #{tpu_custom_call.1} parent=5 // pred_region
        %s223 = ssub.s32 %s19, 1
        %s224 = sand.u32 %s32, 1
        %s225 = scalar_lea.sflag [#allocation4], %s224
        %s226 = sand.u32 %s32, 1
        %s227 = smul.addr %s226, 64
        %s228 = scalar_lea.vmem [#allocation3], %s227
        // Predicated region
        $region41: #{tpu_custom_call.1} parent=39 // pred_check
          %p229 = pneg %p45
        $region42: #{tpu_custom_call.1} parent=39 // pred_check_branch
          %231 = sbr.rel (%p229) target = $region44
        $region43: #{tpu_custom_call.1} parent=39 // pred_region
          %232 = dma.done %s225, 1024
        $region44: #{tpu_custom_call.1} parent=39 // pred_fallthru
          _
        // Predicated region
        $region45: #{tpu_custom_call.1} parent=39 // pred_check
          %p233 = pneg %p108
        $region46: #{tpu_custom_call.1} parent=39 // pred_check_branch
          %235 = sbr.rel (%p233) target = $region48
        $region47: #{tpu_custom_call.1} parent=39 // pred_region
          %236 = dma.done [#allocation7], 16384
        $region48: #{tpu_custom_call.1} parent=39 // pred_fallthru
          _
        %s237 = sand.u32 %s32, 1
        %s238 = scalar_lea.sflag [#allocation4], %s237
        %s239 = sand.u32 %s32, 1
        %s240 = smul.addr %s239, 64
        %s241 = scalar_lea.vmem [#allocation3], %s240
        %p242 = pneg %p45
        %p243 = pneg %p42
        %p244 = pneg %p66
        %p245 = pneg %p63
        %p246 = pneg %p87
        %p247 = pneg %p84
        %p248 = pneg %p108
        %p249 = pneg %p105
        %p250 = pneg %p129
        %p251 = pneg %p126
        %p252 = pneg %p155
        %p253 = pneg %p152
        %s254 = sand.u32 %s142, 1
        %s255 = scalar_lea.sflag [#allocation5], %s254
        %s256 = sand.u32 %s142, 1
        %s257 = smul.addr %s256, 64
        %s258 = scalar_lea.vmem [#allocation8], %s257
        %v259 = vld [vmem:[%s228] sm:$0xff]
        %v260 = vld [vmem:[%s228 + $0x8] sm:$0xff]
        %v261 = vld [vmem:[%s228 + $0x10] sm:$0xff]
        %v262 = vld [vmem:[%s228 + $0x18] sm:$0xff]
        %v263 = vld [vmem:[%s228 + $0x20] sm:$0xff]
        %v264 = vld [vmem:[%s228 + $0x28] sm:$0xff]
        %v265 = vld [vmem:[%s228 + $0x30] sm:$0xff]
        %v266 = vld [vmem:[%s228 + $0x38] sm:$0xff]
        %v267 = vadd.f32 %v259, %v260
        %268 = vadd.xlane.f32.xlu0 %v267
        %v269 = vpop.xlane.xlu0 %268
        %v270 = vadd.f32 %v261, %v262
        %271 = vadd.xlane.f32.xlu0 %v270
        %v272 = vpop.xlane.xlu0 %271
        %v273 = vadd.f32 %v263, %v264
        %274 = vadd.xlane.f32.xlu0 %v273
        %v275 = vpop.xlane.xlu0 %274
        %v276 = vadd.f32 %v265, %v266
        %277 = vadd.xlane.f32.xlu0 %v276
        %v278 = vpop.xlane.xlu0 %277
        %v279 = vrcp.pop 256.0
        %v280 = vmul.f32 %v269, %v279
        %v281 = vmul.f32 %v272, %v279
        %v282 = vmul.f32 %v275, %v279
        %v283 = vmul.f32 %v278, %v279
        %v284 = vmax.f32 %v259, %v260
        %285 = vmax.xlane.f32.xlu0 %v284
        %v286 = vpop.xlane.xlu0 %285
        %v287 = vmax.f32 %v261, %v262
        %288 = vmax.xlane.f32.xlu0 %v287
        %v289 = vpop.xlane.xlu0 %288
        %v290 = vmax.f32 %v263, %v264
        %291 = vmax.xlane.f32.xlu0 %v290
        %v292 = vpop.xlane.xlu0 %291
        %v293 = vmax.f32 %v265, %v266
        %294 = vmax.xlane.f32.xlu0 %v293
        %v295 = vpop.xlane.xlu0 %294
        %v300 = vlaneseq
        %v301 = vand.u32 %v300, 127
        %v302 = vlaneseq
        %v303 = vshrl.u32 %v302, 7
        %v304 = vsub.s32 %v301, %v303
        %v305 = vrot.slane %v280, %v304
        %v306 = vadd.s32 %v301, 4294967288
        %v307 = vlaneseq
        %v308 = vshrl.u32 %v307, 7
        %v309 = vsub.s32 %v306, %v308
        %v310 = vrot.slane %v281, %v309
        %vm311 = vcmask 130112
        %v312 = vsel %vm311, %v310, %v305
        %v313 = vadd.s32 %v301, 4294967280
        %v314 = vlaneseq
        %v315 = vshrl.u32 %v314, 7
        %v316 = vsub.s32 %v313, %v315
        %v317 = vrot.slane %v282, %v316
        %vm318 = vcmask 195712
        %v319 = vsel %vm318, %v317, %v312
        %v320 = vadd.s32 %v301, 4294967272
        %v321 = vlaneseq
        %v322 = vshrl.u32 %v321, 7
        %v323 = vsub.s32 %v320, %v322
        %v324 = vrot.slane %v283, %v323
        %vm325 = vcmask 261312
        %v326 = vsel %vm325, %v324, %v319
        %v332 = vlaneseq
        %v333 = vshrl.u32 %v332, 7
        %v334 = vsub.s32 %v301, %v333
        %v335 = vrot.slane %v286, %v334
        %v336 = vlaneseq
        %v337 = vshrl.u32 %v336, 7
        %v338 = vsub.s32 %v306, %v337
        %v339 = vrot.slane %v289, %v338
        %v340 = vsel %vm311, %v339, %v335
        %v341 = vlaneseq
        %v342 = vshrl.u32 %v341, 7
        %v343 = vsub.s32 %v313, %v342
        %v344 = vrot.slane %v292, %v343
        %v345 = vsel %vm318, %v344, %v340
        %v346 = vlaneseq
        %v347 = vshrl.u32 %v346, 7
        %v348 = vsub.s32 %v320, %v347
        %v349 = vrot.slane %v295, %v348
        %v350 = vsel %vm325, %v349, %v345
        %vm352 = vcmask 1040384
        %v353 = vsel %vm352, %v326, %v350
        %v354 = vld [vmem:[%s1] sm:$0xff]
        %v355 = vld [vmem:[%s1 + $0x8] sm:$0xff]
        %v356 = vld [vmem:[%s1 + $0x10] sm:$0xff]
        %v357 = vld [vmem:[%s1 + $0x18] sm:$0xff]
        %vm358 = vcmask 261120
        %v360 = vsel %vm358, %v353, 0
        %362 = vmatprep.subr.mxu0 0.0
        %v363 = vand.u32 %v354, 4294901760
        %364 = vmatpush1.msra.mxu0 %v363
        %365 = vmatprep.subr.mxu0 0.0
        %v366 = vand.u32 %v355, 4294901760
        %367 = vmatpush1.msra.mxu0 %v366
        %368 = vmatprep.subr.mxu0 0.0
        %v369 = vand.u32 %v356, 4294901760
        %370 = vmatpush1.msra.mxu0 %v369
        %371 = vmatprep.subr.mxu0 0.0
        %v372 = vand.u32 %v357, 4294901760
        %373 = vmatpush1.msra.mxu0 %v372
        %374 = vmatprep.subr.mxu0 0.0
        %375 = vmatpush1.msra.mxu0 0.0
        %376 = vmatprep.subr.mxu0 0.0
        %377 = vmatpush1.msra.mxu0 0.0
        %378 = vmatprep.subr.mxu0 0.0
        %379 = vmatpush1.msra.mxu0 0.0
        %380 = vmatprep.subr.mxu0 0.0
        %381 = vmatpush1.msra.mxu0 0.0
        %382 = vmatprep.subr.mxu0 0.0
        %383 = vmatpush1.msra.mxu0 0.0
        %384 = vmatprep.subr.mxu0 0.0
        %385 = vmatpush1.msra.mxu0 0.0
        %386 = vmatprep.subr.mxu0 0.0
        %387 = vmatpush1.msra.mxu0 0.0
        %388 = vmatprep.subr.mxu0 0.0
        %389 = vmatpush1.msra.mxu0 0.0
        %390 = vmatprep.subr.mxu0 0.0
        %391 = vmatpush1.msra.mxu0 0.0
        %392 = vmatprep.subr.mxu0 0.0
        %393 = vmatpush1.msra.mxu0 0.0
        %394 = vmatprep.subr.mxu0 0.0
        %395 = vmatpush1.msra.mxu0 0.0
        %396 = vmatprep.subr.mxu0 0.0
        %397 = vmatpush1.msra.mxu0 0.0
        %398 = vmatprep.subr.mxu0 0.0
        %399 = vmatpush1.msra.mxu0 0.0
        %400 = vmatprep.subr.mxu0 0.0
        %401 = vmatpush1.msra.mxu0 0.0
        %402 = vmatprep.subr.mxu0 0.0
        %403 = vmatpush1.msra.mxu0 0.0
        %404 = vmatprep.subr.mxu0 0.0
        %405 = vmatpush1.msra.mxu0 0.0
        %406 = vmatprep.subr.mxu0 0.0
        %407 = vmatpush1.msra.mxu0 0.0
        %408 = vmatprep.subr.mxu0 0.0
        %409 = vmatpush1.msra.mxu0 0.0
        %410 = vmatprep.subr.mxu0 0.0
        %411 = vmatpush1.msra.mxu0 0.0
        %412 = vmatprep.subr.mxu0 0.0
        %413 = vmatpush1.msra.mxu0 0.0
        %414 = vmatprep.subr.mxu0 0.0
        %415 = vmatpush1.msra.mxu0 0.0
        %416 = vmatprep.subr.mxu0 0.0
        %417 = vmatpush1.msra.mxu0 0.0
        %418 = vmatprep.subr.mxu0 0.0
        %419 = vmatpush1.msra.mxu0 0.0
        %420 = vmatprep.subr.mxu0 0.0
        %421 = vmatpush1.msra.mxu0 0.0
        %422 = vmatprep.subr.mxu0 0.0
        %423 = vmatpush1.msra.mxu0 0.0
        %424 = vmatprep.subr.mxu0 0.0
        %425 = vmatpush1.msra.mxu0 0.0
        %426 = vmatprep.subr.mxu0 0.0
        %427 = vmatpush1.msra.mxu0 0.0
        %428 = vmatprep.subr.mxu0 0.0
        %429 = vmatpush1.msra.mxu0 0.0
        %430 = vmatprep.mubr.f32.mxu0 0.0
        %v431 = vand.u32 %v360, 4294901760
        %v432 = vsub.f32 %v360, %v431
        %v433 = vand.u32 %v432, 4294901760
        %v434 = vsub.f32 %v432, %v433
        %v435 = vand.u32 %v434, 4294901760
        %436 = vmatmul.mubr.f32.gmra.mrb[0].mxu0 %v435
        %v437 = vpop.f32.mrb[0].mxu0
        %v438 = vadd.f32 0.0, %v437
        %v439 = vpop.f32.mrb[0].mxu0
        %440 = vdwg.mxu0
        %441 = vmatprep.subr.mxu0 0.0
        %v442 = vand.u32 %v354, 4294901760
        %v443 = vsub.f32 %v354, %v442
        %v444 = vand.u32 %v443, 4294901760
        %v445 = vsub.f32 %v443, %v444
        %v446 = vand.u32 %v445, 4294901760
        %447 = vmatpush1.msra.mxu0 %v446
        %448 = vmatprep.subr.mxu0 0.0
        %v449 = vand.u32 %v355, 4294901760
        %v450 = vsub.f32 %v355, %v449
        %v451 = vand.u32 %v450, 4294901760
        %v452 = vsub.f32 %v450, %v451
        %v453 = vand.u32 %v452, 4294901760
        %454 = vmatpush1.msra.mxu0 %v453
        %455 = vmatprep.subr.mxu0 0.0
        %v456 = vand.u32 %v356, 4294901760
        %v457 = vsub.f32 %v356, %v456
        %v458 = vand.u32 %v457, 4294901760
        %v459 = vsub.f32 %v457, %v458
        %v460 = vand.u32 %v459, 4294901760
        %461 = vmatpush1.msra.mxu0 %v460
        %462 = vmatprep.subr.mxu0 0.0
        %v463 = vand.u32 %v357, 4294901760
        %v464 = vsub.f32 %v357, %v463
        %v465 = vand.u32 %v464, 4294901760
        %v466 = vsub.f32 %v464, %v465
        %v467 = vand.u32 %v466, 4294901760
        %468 = vmatpush1.msra.mxu0 %v467
        %469 = vmatprep.subr.mxu0 0.0
        %470 = vmatpush1.msra.mxu0 0.0
        %471 = vmatprep.subr.mxu0 0.0
        %472 = vmatpush1.msra.mxu0 0.0
        %473 = vmatprep.subr.mxu0 0.0
        %474 = vmatpush1.msra.mxu0 0.0
        %475 = vmatprep.subr.mxu0 0.0
        %476 = vmatpush1.msra.mxu0 0.0
        %477 = vmatprep.subr.mxu0 0.0
        %478 = vmatpush1.msra.mxu0 0.0
        %479 = vmatprep.subr.mxu0 0.0
        %480 = vmatpush1.msra.mxu0 0.0
        %481 = vmatprep.subr.mxu0 0.0
        %482 = vmatpush1.msra.mxu0 0.0
        %483 = vmatprep.subr.mxu0 0.0
        %484 = vmatpush1.msra.mxu0 0.0
        %485 = vmatprep.subr.mxu0 0.0
        %486 = vmatpush1.msra.mxu0 0.0
        %487 = vmatprep.subr.mxu0 0.0
        %488 = vmatpush1.msra.mxu0 0.0
        %489 = vmatprep.subr.mxu0 0.0
        %490 = vmatpush1.msra.mxu0 0.0
        %491 = vmatprep.subr.mxu0 0.0
        %492 = vmatpush1.msra.mxu0 0.0
        %493 = vmatprep.subr.mxu0 0.0
        %494 = vmatpush1.msra.mxu0 0.0
        %495 = vmatprep.subr.mxu0 0.0
        %496 = vmatpush1.msra.mxu0 0.0
        %497 = vmatprep.subr.mxu0 0.0
        %498 = vmatpush1.msra.mxu0 0.0
        %499 = vmatprep.subr.mxu0 0.0
        %500 = vmatpush1.msra.mxu0 0.0
        %501 = vmatprep.subr.mxu0 0.0
        %502 = vmatpush1.msra.mxu0 0.0
        %503 = vmatprep.subr.mxu0 0.0
        %504 = vmatpush1.msra.mxu0 0.0
        %505 = vmatprep.subr.mxu0 0.0
        %506 = vmatpush1.msra.mxu0 0.0
        %507 = vmatprep.subr.mxu0 0.0
        %508 = vmatpush1.msra.mxu0 0.0
        %509 = vmatprep.subr.mxu0 0.0
        %510 = vmatpush1.msra.mxu0 0.0
        %511 = vmatprep.subr.mxu0 0.0
        %512 = vmatpush1.msra.mxu0 0.0
        %513 = vmatprep.subr.mxu0 0.0
        %514 = vmatpush1.msra.mxu0 0.0
        %515 = vmatprep.subr.mxu0 0.0
        %516 = vmatpush1.msra.mxu0 0.0
        %517 = vmatprep.subr.mxu0 0.0
        %518 = vmatpush1.msra.mxu0 0.0
        %519 = vmatprep.subr.mxu0 0.0
        %520 = vmatpush1.msra.mxu0 0.0
        %521 = vmatprep.subr.mxu0 0.0
        %522 = vmatpush1.msra.mxu0 0.0
        %523 = vmatprep.subr.mxu0 0.0
        %524 = vmatpush1.msra.mxu0 0.0
        %525 = vmatprep.mubr.f32.mxu0 0.0
        %v526 = vand.u32 %v360, 4294901760
        %527 = vmatmul.mubr.f32.gmra.mrb[0].mxu0 %v526
        %v528 = vpop.f32.mrb[0].mxu0
        %v529 = vadd.f32 %v438, %v528
        %v530 = vpop.f32.mrb[0].mxu0
        %531 = vdwg.mxu0
        %532 = vmatprep.subr.mxu0 0.0
        %v533 = vand.u32 %v354, 4294901760
        %v534 = vsub.f32 %v354, %v533
        %535 = vmatpush1.msra.mxu0 %v534
        %536 = vmatprep.subr.mxu0 0.0
        %v537 = vand.u32 %v355, 4294901760
        %v538 = vsub.f32 %v355, %v537
        %539 = vmatpush1.msra.mxu0 %v538
        %540 = vmatprep.subr.mxu0 0.0
        %v541 = vand.u32 %v356, 4294901760
        %v542 = vsub.f32 %v356, %v541
        %543 = vmatpush1.msra.mxu0 %v542
        %544 = vmatprep.subr.mxu0 0.0
        %v545 = vand.u32 %v357, 4294901760
        %v546 = vsub.f32 %v357, %v545
        %547 = vmatpush1.msra.mxu0 %v546
        %548 = vmatprep.subr.mxu0 0.0
        %549 = vmatpush1.msra.mxu0 0.0
        %550 = vmatprep.subr.mxu0 0.0
        %551 = vmatpush1.msra.mxu0 0.0
        %552 = vmatprep.subr.mxu0 0.0
        %553 = vmatpush1.msra.mxu0 0.0
        %554 = vmatprep.subr.mxu0 0.0
        %555 = vmatpush1.msra.mxu0 0.0
        %556 = vmatprep.subr.mxu0 0.0
        %557 = vmatpush1.msra.mxu0 0.0
        %558 = vmatprep.subr.mxu0 0.0
        %559 = vmatpush1.msra.mxu0 0.0
        %560 = vmatprep.subr.mxu0 0.0
        %561 = vmatpush1.msra.mxu0 0.0
        %562 = vmatprep.subr.mxu0 0.0
        %563 = vmatpush1.msra.mxu0 0.0
        %564 = vmatprep.subr.mxu0 0.0
        %565 = vmatpush1.msra.mxu0 0.0
        %566 = vmatprep.subr.mxu0 0.0
        %567 = vmatpush1.msra.mxu0 0.0
        %568 = vmatprep.subr.mxu0 0.0
        %569 = vmatpush1.msra.mxu0 0.0
        %570 = vmatprep.subr.mxu0 0.0
        %571 = vmatpush1.msra.mxu0 0.0
        %572 = vmatprep.subr.mxu0 0.0
        %573 = vmatpush1.msra.mxu0 0.0
        %574 = vmatprep.subr.mxu0 0.0
        %575 = vmatpush1.msra.mxu0 0.0
        %576 = vmatprep.subr.mxu0 0.0
        %577 = vmatpush1.msra.mxu0 0.0
        %578 = vmatprep.subr.mxu0 0.0
        %579 = vmatpush1.msra.mxu0 0.0
        %580 = vmatprep.subr.mxu0 0.0
        %581 = vmatpush1.msra.mxu0 0.0
        %582 = vmatprep.subr.mxu0 0.0
        %583 = vmatpush1.msra.mxu0 0.0
        %584 = vmatprep.subr.mxu0 0.0
        %585 = vmatpush1.msra.mxu0 0.0
        %586 = vmatprep.subr.mxu0 0.0
        %587 = vmatpush1.msra.mxu0 0.0
        %588 = vmatprep.subr.mxu0 0.0
        %589 = vmatpush1.msra.mxu0 0.0
        %590 = vmatprep.subr.mxu0 0.0
        %591 = vmatpush1.msra.mxu0 0.0
        %592 = vmatprep.subr.mxu0 0.0
        %593 = vmatpush1.msra.mxu0 0.0
        %594 = vmatprep.subr.mxu0 0.0
        %595 = vmatpush1.msra.mxu0 0.0
        %596 = vmatprep.subr.mxu0 0.0
        %597 = vmatpush1.msra.mxu0 0.0
        %598 = vmatprep.subr.mxu0 0.0
        %599 = vmatpush1.msra.mxu0 0.0
        %600 = vmatprep.subr.mxu0 0.0
        %601 = vmatpush1.msra.mxu0 0.0
        %602 = vmatprep.subr.mxu0 0.0
        %603 = vmatpush1.msra.mxu0 0.0
        %604 = vmatprep.mubr.f32.mxu0 0.0
        %v605 = vand.u32 %v360, 4294901760
        %v606 = vsub.f32 %v360, %v605
        %607 = vmatmul.mubr.f32.gmra.mrb[0].mxu0 %v606
        %v608 = vpop.f32.mrb[0].mxu0
        %v609 = vadd.f32 %v529, %v608
        %v610 = vpop.f32.mrb[0].mxu0
        %611 = vdwg.mxu0
        %612 = vmatprep.subr.mxu0 0.0
        %v613 = vand.u32 %v354, 4294901760
        %614 = vmatpush1.msra.mxu0 %v613
        %615 = vmatprep.subr.mxu0 0.0
        %v616 = vand.u32 %v355, 4294901760
        %617 = vmatpush1.msra.mxu0 %v616
        %618 = vmatprep.subr.mxu0 0.0
        %v619 = vand.u32 %v356, 4294901760
        %620 = vmatpush1.msra.mxu0 %v619
        %621 = vmatprep.subr.mxu0 0.0
        %v622 = vand.u32 %v357, 4294901760
        %623 = vmatpush1.msra.mxu0 %v622
        %624 = vmatprep.subr.mxu0 0.0
        %625 = vmatpush1.msra.mxu0 0.0
        %626 = vmatprep.subr.mxu0 0.0
        %627 = vmatpush1.msra.mxu0 0.0
        %628 = vmatprep.subr.mxu0 0.0
        %629 = vmatpush1.msra.mxu0 0.0
        %630 = vmatprep.subr.mxu0 0.0
        %631 = vmatpush1.msra.mxu0 0.0
        %632 = vmatprep.subr.mxu0 0.0
        %633 = vmatpush1.msra.mxu0 0.0
        %634 = vmatprep.subr.mxu0 0.0
        %635 = vmatpush1.msra.mxu0 0.0
        %636 = vmatprep.subr.mxu0 0.0
        %637 = vmatpush1.msra.mxu0 0.0
        %638 = vmatprep.subr.mxu0 0.0
        %639 = vmatpush1.msra.mxu0 0.0
        %640 = vmatprep.subr.mxu0 0.0
        %641 = vmatpush1.msra.mxu0 0.0
        %642 = vmatprep.subr.mxu0 0.0
        %643 = vmatpush1.msra.mxu0 0.0
        %644 = vmatprep.subr.mxu0 0.0
        %645 = vmatpush1.msra.mxu0 0.0
        %646 = vmatprep.subr.mxu0 0.0
        %647 = vmatpush1.msra.mxu0 0.0
        %648 = vmatprep.subr.mxu0 0.0
        %649 = vmatpush1.msra.mxu0 0.0
        %650 = vmatprep.subr.mxu0 0.0
        %651 = vmatpush1.msra.mxu0 0.0
        %652 = vmatprep.subr.mxu0 0.0
        %653 = vmatpush1.msra.mxu0 0.0
        %654 = vmatprep.subr.mxu0 0.0
        %655 = vmatpush1.msra.mxu0 0.0
        %656 = vmatprep.subr.mxu0 0.0
        %657 = vmatpush1.msra.mxu0 0.0
        %658 = vmatprep.subr.mxu0 0.0
        %659 = vmatpush1.msra.mxu0 0.0
        %660 = vmatprep.subr.mxu0 0.0
        %661 = vmatpush1.msra.mxu0 0.0
        %662 = vmatprep.subr.mxu0 0.0
        %663 = vmatpush1.msra.mxu0 0.0
        %664 = vmatprep.subr.mxu0 0.0
        %665 = vmatpush1.msra.mxu0 0.0
        %666 = vmatprep.subr.mxu0 0.0
        %667 = vmatpush1.msra.mxu0 0.0
        %668 = vmatprep.subr.mxu0 0.0
        %669 = vmatpush1.msra.mxu0 0.0
        %670 = vmatprep.subr.mxu0 0.0
        %671 = vmatpush1.msra.mxu0 0.0
        %672 = vmatprep.subr.mxu0 0.0
        %673 = vmatpush1.msra.mxu0 0.0
        %674 = vmatprep.subr.mxu0 0.0
        %675 = vmatpush1.msra.mxu0 0.0
        %676 = vmatprep.subr.mxu0 0.0
        %677 = vmatpush1.msra.mxu0 0.0
        %678 = vmatprep.subr.mxu0 0.0
        %679 = vmatpush1.msra.mxu0 0.0
        %680 = vmatprep.mubr.f32.mxu0 0.0
        %v681 = vand.u32 %v360, 4294901760
        %v682 = vsub.f32 %v360, %v681
        %v683 = vand.u32 %v682, 4294901760
        %684 = vmatmul.mubr.f32.gmra.mrb[0].mxu0 %v683
        %v685 = vpop.f32.mrb[0].mxu0
        %v686 = vadd.f32 %v609, %v685
        %v687 = vpop.f32.mrb[0].mxu0
        %688 = vdwg.mxu0
        %689 = vmatprep.subr.mxu0 0.0
        %v690 = vand.u32 %v354, 4294901760
        %v691 = vsub.f32 %v354, %v690
        %v692 = vand.u32 %v691, 4294901760
        %693 = vmatpush1.msra.mxu0 %v692
        %694 = vmatprep.subr.mxu0 0.0
        %v695 = vand.u32 %v355, 4294901760
        %v696 = vsub.f32 %v355, %v695
        %v697 = vand.u32 %v696, 4294901760
        %698 = vmatpush1.msra.mxu0 %v697
        %699 = vmatprep.subr.mxu0 0.0
        %v700 = vand.u32 %v356, 4294901760
        %v701 = vsub.f32 %v356, %v700
        %v702 = vand.u32 %v701, 4294901760
        %703 = vmatpush1.msra.mxu0 %v702
        %704 = vmatprep.subr.mxu0 0.0
        %v705 = vand.u32 %v357, 4294901760
        %v706 = vsub.f32 %v357, %v705
        %v707 = vand.u32 %v706, 4294901760
        %708 = vmatpush1.msra.mxu0 %v707
        %709 = vmatprep.subr.mxu0 0.0
        %710 = vmatpush1.msra.mxu0 0.0
        %711 = vmatprep.subr.mxu0 0.0
        %712 = vmatpush1.msra.mxu0 0.0
        %713 = vmatprep.subr.mxu0 0.0
        %714 = vmatpush1.msra.mxu0 0.0
        %715 = vmatprep.subr.mxu0 0.0
        %716 = vmatpush1.msra.mxu0 0.0
        %717 = vmatprep.subr.mxu0 0.0
        %718 = vmatpush1.msra.mxu0 0.0
        %719 = vmatprep.subr.mxu0 0.0
        %720 = vmatpush1.msra.mxu0 0.0
        %721 = vmatprep.subr.mxu0 0.0
        %722 = vmatpush1.msra.mxu0 0.0
        %723 = vmatprep.subr.mxu0 0.0
        %724 = vmatpush1.msra.mxu0 0.0
        %725 = vmatprep.subr.mxu0 0.0
        %726 = vmatpush1.msra.mxu0 0.0
        %727 = vmatprep.subr.mxu0 0.0
        %728 = vmatpush1.msra.mxu0 0.0
        %729 = vmatprep.subr.mxu0 0.0
        %730 = vmatpush1.msra.mxu0 0.0
        %731 = vmatprep.subr.mxu0 0.0
        %732 = vmatpush1.msra.mxu0 0.0
        %733 = vmatprep.subr.mxu0 0.0
        %734 = vmatpush1.msra.mxu0 0.0
        %735 = vmatprep.subr.mxu0 0.0
        %736 = vmatpush1.msra.mxu0 0.0
        %737 = vmatprep.subr.mxu0 0.0
        %738 = vmatpush1.msra.mxu0 0.0
        %739 = vmatprep.subr.mxu0 0.0
        %740 = vmatpush1.msra.mxu0 0.0
        %741 = vmatprep.subr.mxu0 0.0
        %742 = vmatpush1.msra.mxu0 0.0
        %743 = vmatprep.subr.mxu0 0.0
        %744 = vmatpush1.msra.mxu0 0.0
        %745 = vmatprep.subr.mxu0 0.0
        %746 = vmatpush1.msra.mxu0 0.0
        %747 = vmatprep.subr.mxu0 0.0
        %748 = vmatpush1.msra.mxu0 0.0
        %749 = vmatprep.subr.mxu0 0.0
        %750 = vmatpush1.msra.mxu0 0.0
        %751 = vmatprep.subr.mxu0 0.0
        %752 = vmatpush1.msra.mxu0 0.0
        %753 = vmatprep.subr.mxu0 0.0
        %754 = vmatpush1.msra.mxu0 0.0
        %755 = vmatprep.subr.mxu0 0.0
        %756 = vmatpush1.msra.mxu0 0.0
        %757 = vmatprep.subr.mxu0 0.0
        %758 = vmatpush1.msra.mxu0 0.0
        %759 = vmatprep.subr.mxu0 0.0
        %760 = vmatpush1.msra.mxu0 0.0
        %761 = vmatprep.subr.mxu0 0.0
        %762 = vmatpush1.msra.mxu0 0.0
        %763 = vmatprep.subr.mxu0 0.0
        %764 = vmatpush1.msra.mxu0 0.0
        %765 = vmatprep.mubr.f32.mxu0 0.0
        %v766 = vand.u32 %v360, 4294901760
        %767 = vmatmul.mubr.f32.gmra.mrb[0].mxu0 %v766
        %v768 = vpop.f32.mrb[0].mxu0
        %v769 = vadd.f32 %v686, %v768
        %v770 = vpop.f32.mrb[0].mxu0
        %771 = vdwg.mxu0
        %772 = vmatprep.subr.mxu0 0.0
        %v773 = vand.u32 %v354, 4294901760
        %774 = vmatpush1.msra.mxu0 %v773
        %775 = vmatprep.subr.mxu0 0.0
        %v776 = vand.u32 %v355, 4294901760
        %777 = vmatpush1.msra.mxu0 %v776
        %778 = vmatprep.subr.mxu0 0.0
        %v779 = vand.u32 %v356, 4294901760
        %780 = vmatpush1.msra.mxu0 %v779
        %781 = vmatprep.subr.mxu0 0.0
        %v782 = vand.u32 %v357, 4294901760
        %783 = vmatpush1.msra.mxu0 %v782
        %784 = vmatprep.subr.mxu0 0.0
        %785 = vmatpush1.msra.mxu0 0.0
        %786 = vmatprep.subr.mxu0 0.0
        %787 = vmatpush1.msra.mxu0 0.0
        %788 = vmatprep.subr.mxu0 0.0
        %789 = vmatpush1.msra.mxu0 0.0
        %790 = vmatprep.subr.mxu0 0.0
        %791 = vmatpush1.msra.mxu0 0.0
        %792 = vmatprep.subr.mxu0 0.0
        %793 = vmatpush1.msra.mxu0 0.0
        %794 = vmatprep.subr.mxu0 0.0
        %795 = vmatpush1.msra.mxu0 0.0
        %796 = vmatprep.subr.mxu0 0.0
        %797 = vmatpush1.msra.mxu0 0.0
        %798 = vmatprep.subr.mxu0 0.0
        %799 = vmatpush1.msra.mxu0 0.0
        %800 = vmatprep.subr.mxu0 0.0
        %801 = vmatpush1.msra.mxu0 0.0
        %802 = vmatprep.subr.mxu0 0.0
        %803 = vmatpush1.msra.mxu0 0.0
        %804 = vmatprep.subr.mxu0 0.0
        %805 = vmatpush1.msra.mxu0 0.0
        %806 = vmatprep.subr.mxu0 0.0
        %807 = vmatpush1.msra.mxu0 0.0
        %808 = vmatprep.subr.mxu0 0.0
        %809 = vmatpush1.msra.mxu0 0.0
        %810 = vmatprep.subr.mxu0 0.0
        %811 = vmatpush1.msra.mxu0 0.0
        %812 = vmatprep.subr.mxu0 0.0
        %813 = vmatpush1.msra.mxu0 0.0
        %814 = vmatprep.subr.mxu0 0.0
        %815 = vmatpush1.msra.mxu0 0.0
        %816 = vmatprep.subr.mxu0 0.0
        %817 = vmatpush1.msra.mxu0 0.0
        %818 = vmatprep.subr.mxu0 0.0
        %819 = vmatpush1.msra.mxu0 0.0
        %820 = vmatprep.subr.mxu0 0.0
        %821 = vmatpush1.msra.mxu0 0.0
        %822 = vmatprep.subr.mxu0 0.0
        %823 = vmatpush1.msra.mxu0 0.0
        %824 = vmatprep.subr.mxu0 0.0
        %825 = vmatpush1.msra.mxu0 0.0
        %826 = vmatprep.subr.mxu0 0.0
        %827 = vmatpush1.msra.mxu0 0.0
        %828 = vmatprep.subr.mxu0 0.0
        %829 = vmatpush1.msra.mxu0 0.0
        %830 = vmatprep.subr.mxu0 0.0
        %831 = vmatpush1.msra.mxu0 0.0
        %832 = vmatprep.subr.mxu0 0.0
        %833 = vmatpush1.msra.mxu0 0.0
        %834 = vmatprep.subr.mxu0 0.0
        %835 = vmatpush1.msra.mxu0 0.0
        %836 = vmatprep.subr.mxu0 0.0
        %837 = vmatpush1.msra.mxu0 0.0
        %838 = vmatprep.subr.mxu0 0.0
        %839 = vmatpush1.msra.mxu0 0.0
        %840 = vmatprep.mubr.f32.mxu0 0.0
        %v841 = vand.u32 %v360, 4294901760
        %842 = vmatmul.mubr.f32.gmra.mrb[0].mxu0 %v841
        %v843 = vpop.f32.mrb[0].mxu0
        %v844 = vadd.f32 %v769, %v843
        %v845 = vpop.f32.mrb[0].mxu0
        %846 = vdwg.mxu0
        %v847 = vmax.f32 %v844, 0.0
        %v848 = vld [vmem:[%s2] sm:$0xf]
        %vm849 = vcmask 31744
        %v851 = vsel %vm849, %v847, 0
        %vm853 = vcmask 1043456
        %v855 = vsel %vm853, %v848, 0
        %857 = vmatprep.subr.mxu0 0.0
        %v858 = vand.u32 %v855, 4294901760
        %859 = vmatpush1.msra.mxu0 %v858
        %860 = vmatprep.subr.mxu0 0.0
        %861 = vmatpush1.msra.mxu0 0.0
        %862 = vmatprep.subr.mxu0 0.0
        %863 = vmatpush1.msra.mxu0 0.0
        %864 = vmatprep.subr.mxu0 0.0
        %865 = vmatpush1.msra.mxu0 0.0
        %866 = vmatprep.subr.mxu0 0.0
        %867 = vmatpush1.msra.mxu0 0.0
        %868 = vmatprep.subr.mxu0 0.0
        %869 = vmatpush1.msra.mxu0 0.0
        %870 = vmatprep.subr.mxu0 0.0
        %871 = vmatpush1.msra.mxu0 0.0
        %872 = vmatprep.subr.mxu0 0.0
        %873 = vmatpush1.msra.mxu0 0.0
        %874 = vmatprep.subr.mxu0 0.0
        %875 = vmatpush1.msra.mxu0 0.0
        %876 = vmatprep.subr.mxu0 0.0
        %877 = vmatpush1.msra.mxu0 0.0
        %878 = vmatprep.subr.mxu0 0.0
        %879 = vmatpush1.msra.mxu0 0.0
        %880 = vmatprep.subr.mxu0 0.0
        %881 = vmatpush1.msra.mxu0 0.0
        %882 = vmatprep.subr.mxu0 0.0
        %883 = vmatpush1.msra.mxu0 0.0
        %884 = vmatprep.subr.mxu0 0.0
        %885 = vmatpush1.msra.mxu0 0.0
        %886 = vmatprep.subr.mxu0 0.0
        %887 = vmatpush1.msra.mxu0 0.0
        %888 = vmatprep.subr.mxu0 0.0
        %889 = vmatpush1.msra.mxu0 0.0
        %890 = vmatprep.subr.mxu0 0.0
        %891 = vmatpush1.msra.mxu0 0.0
        %892 = vmatprep.subr.mxu0 0.0
        %893 = vmatpush1.msra.mxu0 0.0
        %894 = vmatprep.subr.mxu0 0.0
        %895 = vmatpush1.msra.mxu0 0.0
        %896 = vmatprep.subr.mxu0 0.0
        %897 = vmatpush1.msra.mxu0 0.0
        %898 = vmatprep.subr.mxu0 0.0
        %899 = vmatpush1.msra.mxu0 0.0
        %900 = vmatprep.subr.mxu0 0.0
        %901 = vmatpush1.msra.mxu0 0.0
        %902 = vmatprep.subr.mxu0 0.0
        %903 = vmatpush1.msra.mxu0 0.0
        %904 = vmatprep.subr.mxu0 0.0
        %905 = vmatpush1.msra.mxu0 0.0
        %906 = vmatprep.subr.mxu0 0.0
        %907 = vmatpush1.msra.mxu0 0.0
        %908 = vmatprep.subr.mxu0 0.0
        %909 = vmatpush1.msra.mxu0 0.0
        %910 = vmatprep.subr.mxu0 0.0
        %911 = vmatpush1.msra.mxu0 0.0
        %912 = vmatprep.subr.mxu0 0.0
        %913 = vmatpush1.msra.mxu0 0.0
        %914 = vmatprep.subr.mxu0 0.0
        %915 = vmatpush1.msra.mxu0 0.0
        %916 = vmatprep.subr.mxu0 0.0
        %917 = vmatpush1.msra.mxu0 0.0
        %918 = vmatprep.subr.mxu0 0.0
        %919 = vmatpush1.msra.mxu0 0.0
        %920 = vmatprep.subr.mxu0 0.0
        %921 = vmatpush1.msra.mxu0 0.0
        %922 = vmatprep.mubr.f32.mxu0 0.0
        %v923 = vand.u32 %v851, 4294901760
        %v924 = vsub.f32 %v851, %v923
        %v925 = vand.u32 %v924, 4294901760
        %v926 = vsub.f32 %v924, %v925
        %v927 = vand.u32 %v926, 4294901760
        %928 = vmatmul.mubr.f32.gmra.mrb[0].mxu0 %v927
        %v929 = vpop.f32.mrb[0].mxu0
        %v930 = vadd.f32 0.0, %v929
        %v931 = vpop.f32.mrb[0].mxu0
        %932 = vdwg.mxu0
        %933 = vmatprep.subr.mxu0 0.0
        %v934 = vand.u32 %v855, 4294901760
        %v935 = vsub.f32 %v855, %v934
        %v936 = vand.u32 %v935, 4294901760
        %v937 = vsub.f32 %v935, %v936
        %v938 = vand.u32 %v937, 4294901760
        %939 = vmatpush1.msra.mxu0 %v938
        %940 = vmatprep.subr.mxu0 0.0
        %941 = vmatpush1.msra.mxu0 0.0
        %942 = vmatprep.subr.mxu0 0.0
        %943 = vmatpush1.msra.mxu0 0.0
        %944 = vmatprep.subr.mxu0 0.0
        %945 = vmatpush1.msra.mxu0 0.0
        %946 = vmatprep.subr.mxu0 0.0
        %947 = vmatpush1.msra.mxu0 0.0
        %948 = vmatprep.subr.mxu0 0.0
        %949 = vmatpush1.msra.mxu0 0.0
        %950 = vmatprep.subr.mxu0 0.0
        %951 = vmatpush1.msra.mxu0 0.0
        %952 = vmatprep.subr.mxu0 0.0
        %953 = vmatpush1.msra.mxu0 0.0
        %954 = vmatprep.subr.mxu0 0.0
        %955 = vmatpush1.msra.mxu0 0.0
        %956 = vmatprep.subr.mxu0 0.0
        %957 = vmatpush1.msra.mxu0 0.0
        %958 = vmatprep.subr.mxu0 0.0
        %959 = vmatpush1.msra.mxu0 0.0
        %960 = vmatprep.subr.mxu0 0.0
        %961 = vmatpush1.msra.mxu0 0.0
        %962 = vmatprep.subr.mxu0 0.0
        %963 = vmatpush1.msra.mxu0 0.0
        %964 = vmatprep.subr.mxu0 0.0
        %965 = vmatpush1.msra.mxu0 0.0
        %966 = vmatprep.subr.mxu0 0.0
        %967 = vmatpush1.msra.mxu0 0.0
        %968 = vmatprep.subr.mxu0 0.0
        %969 = vmatpush1.msra.mxu0 0.0
        %970 = vmatprep.subr.mxu0 0.0
        %971 = vmatpush1.msra.mxu0 0.0
        %972 = vmatprep.subr.mxu0 0.0
        %973 = vmatpush1.msra.mxu0 0.0
        %974 = vmatprep.subr.mxu0 0.0
        %975 = vmatpush1.msra.mxu0 0.0
        %976 = vmatprep.subr.mxu0 0.0
        %977 = vmatpush1.msra.mxu0 0.0
        %978 = vmatprep.subr.mxu0 0.0
        %979 = vmatpush1.msra.mxu0 0.0
        %980 = vmatprep.subr.mxu0 0.0
        %981 = vmatpush1.msra.mxu0 0.0
        %982 = vmatprep.subr.mxu0 0.0
        %983 = vmatpush1.msra.mxu0 0.0
        %984 = vmatprep.subr.mxu0 0.0
        %985 = vmatpush1.msra.mxu0 0.0
        %986 = vmatprep.subr.mxu0 0.0
        %987 = vmatpush1.msra.mxu0 0.0
        %988 = vmatprep.subr.mxu0 0.0
        %989 = vmatpush1.msra.mxu0 0.0
        %990 = vmatprep.subr.mxu0 0.0
        %991 = vmatpush1.msra.mxu0 0.0
        %992 = vmatprep.subr.mxu0 0.0
        %993 = vmatpush1.msra.mxu0 0.0
        %994 = vmatprep.subr.mxu0 0.0
        %995 = vmatpush1.msra.mxu0 0.0
        %996 = vmatprep.subr.mxu0 0.0
        %997 = vmatpush1.msra.mxu0 0.0
        %998 = vmatprep.subr.mxu0 0.0
        %999 = vmatpush1.msra.mxu0 0.0
        %1000 = vmatprep.subr.mxu0 0.0
        %1001 = vmatpush1.msra.mxu0 0.0
        %1002 = vmatprep.mubr.f32.mxu0 0.0
        %v1003 = vand.u32 %v851, 4294901760
        %1004 = vmatmul.mubr.f32.gmra.mrb[0].mxu0 %v1003
        %v1005 = vpop.f32.mrb[0].mxu0
        %v1006 = vadd.f32 %v930, %v1005
        %v1007 = vpop.f32.mrb[0].mxu0
        %1008 = vdwg.mxu0
        %1009 = vmatprep.subr.mxu0 0.0
        %v1010 = vand.u32 %v855, 4294901760
        %v1011 = vsub.f32 %v855, %v1010
        %1012 = vmatpush1.msra.mxu0 %v1011
        %1013 = vmatprep.subr.mxu0 0.0
        %1014 = vmatpush1.msra.mxu0 0.0
        %1015 = vmatprep.subr.mxu0 0.0
        %1016 = vmatpush1.msra.mxu0 0.0
        %1017 = vmatprep.subr.mxu0 0.0
        %1018 = vmatpush1.msra.mxu0 0.0
        %1019 = vmatprep.subr.mxu0 0.0
        %1020 = vmatpush1.msra.mxu0 0.0
        %1021 = vmatprep.subr.mxu0 0.0
        %1022 = vmatpush1.msra.mxu0 0.0
        %1023 = vmatprep.subr.mxu0 0.0
        %1024 = vmatpush1.msra.mxu0 0.0
        %1025 = vmatprep.subr.mxu0 0.0
        %1026 = vmatpush1.msra.mxu0 0.0
        %1027 = vmatprep.subr.mxu0 0.0
        %1028 = vmatpush1.msra.mxu0 0.0
        %1029 = vmatprep.subr.mxu0 0.0
        %1030 = vmatpush1.msra.mxu0 0.0
        %1031 = vmatprep.subr.mxu0 0.0
        %1032 = vmatpush1.msra.mxu0 0.0
        %1033 = vmatprep.subr.mxu0 0.0
        %1034 = vmatpush1.msra.mxu0 0.0
        %1035 = vmatprep.subr.mxu0 0.0
        %1036 = vmatpush1.msra.mxu0 0.0
        %1037 = vmatprep.subr.mxu0 0.0
        %1038 = vmatpush1.msra.mxu0 0.0
        %1039 = vmatprep.subr.mxu0 0.0
        %1040 = vmatpush1.msra.mxu0 0.0
        %1041 = vmatprep.subr.mxu0 0.0
        %1042 = vmatpush1.msra.mxu0 0.0
        %1043 = vmatprep.subr.mxu0 0.0
        %1044 = vmatpush1.msra.mxu0 0.0
        %1045 = vmatprep.subr.mxu0 0.0
        %1046 = vmatpush1.msra.mxu0 0.0
        %1047 = vmatprep.subr.mxu0 0.0
        %1048 = vmatpush1.msra.mxu0 0.0
        %1049 = vmatprep.subr.mxu0 0.0
        %1050 = vmatpush1.msra.mxu0 0.0
        %1051 = vmatprep.subr.mxu0 0.0
        %1052 = vmatpush1.msra.mxu0 0.0
        %1053 = vmatprep.subr.mxu0 0.0
        %1054 = vmatpush1.msra.mxu0 0.0
        %1055 = vmatprep.subr.mxu0 0.0
        %1056 = vmatpush1.msra.mxu0 0.0
        %1057 = vmatprep.subr.mxu0 0.0
        %1058 = vmatpush1.msra.mxu0 0.0
        %1059 = vmatprep.subr.mxu0 0.0
        %1060 = vmatpush1.msra.mxu0 0.0
        %1061 = vmatprep.subr.mxu0 0.0
        %1062 = vmatpush1.msra.mxu0 0.0
        %1063 = vmatprep.subr.mxu0 0.0
        %1064 = vmatpush1.msra.mxu0 0.0
        %1065 = vmatprep.subr.mxu0 0.0
        %1066 = vmatpush1.msra.mxu0 0.0
        %1067 = vmatprep.subr.mxu0 0.0
        %1068 = vmatpush1.msra.mxu0 0.0
        %1069 = vmatprep.subr.mxu0 0.0
        %1070 = vmatpush1.msra.mxu0 0.0
        %1071 = vmatprep.subr.mxu0 0.0
        %1072 = vmatpush1.msra.mxu0 0.0
        %1073 = vmatprep.subr.mxu0 0.0
        %1074 = vmatpush1.msra.mxu0 0.0
        %1075 = vmatprep.mubr.f32.mxu0 0.0
        %v1076 = vand.u32 %v851, 4294901760
        %v1077 = vsub.f32 %v851, %v1076
        %1078 = vmatmul.mubr.f32.gmra.mrb[0].mxu0 %v1077
        %v1079 = vpop.f32.mrb[0].mxu0
        %v1080 = vadd.f32 %v1006, %v1079
        %v1081 = vpop.f32.mrb[0].mxu0
        %1082 = vdwg.mxu0
        %1083 = vmatprep.subr.mxu0 0.0
        %v1084 = vand.u32 %v855, 4294901760
        %1085 = vmatpush1.msra.mxu0 %v1084
        %1086 = vmatprep.subr.mxu0 0.0
        %1087 = vmatpush1.msra.mxu0 0.0
        %1088 = vmatprep.subr.mxu0 0.0
        %1089 = vmatpush1.msra.mxu0 0.0
        %1090 = vmatprep.subr.mxu0 0.0
        %1091 = vmatpush1.msra.mxu0 0.0
        %1092 = vmatprep.subr.mxu0 0.0
        %1093 = vmatpush1.msra.mxu0 0.0
        %1094 = vmatprep.subr.mxu0 0.0
        %1095 = vmatpush1.msra.mxu0 0.0
        %1096 = vmatprep.subr.mxu0 0.0
        %1097 = vmatpush1.msra.mxu0 0.0
        %1098 = vmatprep.subr.mxu0 0.0
        %1099 = vmatpush1.msra.mxu0 0.0
        %1100 = vmatprep.subr.mxu0 0.0
        %1101 = vmatpush1.msra.mxu0 0.0
        %1102 = vmatprep.subr.mxu0 0.0
        %1103 = vmatpush1.msra.mxu0 0.0
        %1104 = vmatprep.subr.mxu0 0.0
        %1105 = vmatpush1.msra.mxu0 0.0
        %1106 = vmatprep.subr.mxu0 0.0
        %1107 = vmatpush1.msra.mxu0 0.0
        %1108 = vmatprep.subr.mxu0 0.0
        %1109 = vmatpush1.msra.mxu0 0.0
        %1110 = vmatprep.subr.mxu0 0.0
        %1111 = vmatpush1.msra.mxu0 0.0
        %1112 = vmatprep.subr.mxu0 0.0
        %1113 = vmatpush1.msra.mxu0 0.0
        %1114 = vmatprep.subr.mxu0 0.0
        %1115 = vmatpush1.msra.mxu0 0.0
        %1116 = vmatprep.subr.mxu0 0.0
        %1117 = vmatpush1.msra.mxu0 0.0
        %1118 = vmatprep.subr.mxu0 0.0
        %1119 = vmatpush1.msra.mxu0 0.0
        %1120 = vmatprep.subr.mxu0 0.0
        %1121 = vmatpush1.msra.mxu0 0.0
        %1122 = vmatprep.subr.mxu0 0.0
        %1123 = vmatpush1.msra.mxu0 0.0
        %1124 = vmatprep.subr.mxu0 0.0
        %1125 = vmatpush1.msra.mxu0 0.0
        %1126 = vmatprep.subr.mxu0 0.0
        %1127 = vmatpush1.msra.mxu0 0.0
        %1128 = vmatprep.subr.mxu0 0.0
        %1129 = vmatpush1.msra.mxu0 0.0
        %1130 = vmatprep.subr.mxu0 0.0
        %1131 = vmatpush1.msra.mxu0 0.0
        %1132 = vmatprep.subr.mxu0 0.0
        %1133 = vmatpush1.msra.mxu0 0.0
        %1134 = vmatprep.subr.mxu0 0.0
        %1135 = vmatpush1.msra.mxu0 0.0
        %1136 = vmatprep.subr.mxu0 0.0
        %1137 = vmatpush1.msra.mxu0 0.0
        %1138 = vmatprep.subr.mxu0 0.0
        %1139 = vmatpush1.msra.mxu0 0.0
        %1140 = vmatprep.subr.mxu0 0.0
        %1141 = vmatpush1.msra.mxu0 0.0
        %1142 = vmatprep.subr.mxu0 0.0
        %1143 = vmatpush1.msra.mxu0 0.0
        %1144 = vmatprep.subr.mxu0 0.0
        %1145 = vmatpush1.msra.mxu0 0.0
        %1146 = vmatprep.subr.mxu0 0.0
        %1147 = vmatpush1.msra.mxu0 0.0
        %1148 = vmatprep.mubr.f32.mxu0 0.0
        %v1149 = vand.u32 %v851, 4294901760
        %v1150 = vsub.f32 %v851, %v1149
        %v1151 = vand.u32 %v1150, 4294901760
        %1152 = vmatmul.mubr.f32.gmra.mrb[0].mxu0 %v1151
        %v1153 = vpop.f32.mrb[0].mxu0
        %v1154 = vadd.f32 %v1080, %v1153
        %v1155 = vpop.f32.mrb[0].mxu0
        %1156 = vdwg.mxu0
        %1157 = vmatprep.subr.mxu0 0.0
        %v1158 = vand.u32 %v855, 4294901760
        %v1159 = vsub.f32 %v855, %v1158
        %v1160 = vand.u32 %v1159, 4294901760
        %1161 = vmatpush1.msra.mxu0 %v1160
        %1162 = vmatprep.subr.mxu0 0.0
        %1163 = vmatpush1.msra.mxu0 0.0
        %1164 = vmatprep.subr.mxu0 0.0
        %1165 = vmatpush1.msra.mxu0 0.0
        %1166 = vmatprep.subr.mxu0 0.0
        %1167 = vmatpush1.msra.mxu0 0.0
        %1168 = vmatprep.subr.mxu0 0.0
        %1169 = vmatpush1.msra.mxu0 0.0
        %1170 = vmatprep.subr.mxu0 0.0
        %1171 = vmatpush1.msra.mxu0 0.0
        %1172 = vmatprep.subr.mxu0 0.0
        %1173 = vmatpush1.msra.mxu0 0.0
        %1174 = vmatprep.subr.mxu0 0.0
        %1175 = vmatpush1.msra.mxu0 0.0
        %1176 = vmatprep.subr.mxu0 0.0
        %1177 = vmatpush1.msra.mxu0 0.0
        %1178 = vmatprep.subr.mxu0 0.0
        %1179 = vmatpush1.msra.mxu0 0.0
        %1180 = vmatprep.subr.mxu0 0.0
        %1181 = vmatpush1.msra.mxu0 0.0
        %1182 = vmatprep.subr.mxu0 0.0
        %1183 = vmatpush1.msra.mxu0 0.0
        %1184 = vmatprep.subr.mxu0 0.0
        %1185 = vmatpush1.msra.mxu0 0.0
        %1186 = vmatprep.subr.mxu0 0.0
        %1187 = vmatpush1.msra.mxu0 0.0
        %1188 = vmatprep.subr.mxu0 0.0
        %1189 = vmatpush1.msra.mxu0 0.0
        %1190 = vmatprep.subr.mxu0 0.0
        %1191 = vmatpush1.msra.mxu0 0.0
        %1192 = vmatprep.subr.mxu0 0.0
        %1193 = vmatpush1.msra.mxu0 0.0
        %1194 = vmatprep.subr.mxu0 0.0
        %1195 = vmatpush1.msra.mxu0 0.0
        %1196 = vmatprep.subr.mxu0 0.0
        %1197 = vmatpush1.msra.mxu0 0.0
        %1198 = vmatprep.subr.mxu0 0.0
        %1199 = vmatpush1.msra.mxu0 0.0
        %1200 = vmatprep.subr.mxu0 0.0
        %1201 = vmatpush1.msra.mxu0 0.0
        %1202 = vmatprep.subr.mxu0 0.0
        %1203 = vmatpush1.msra.mxu0 0.0
        %1204 = vmatprep.subr.mxu0 0.0
        %1205 = vmatpush1.msra.mxu0 0.0
        %1206 = vmatprep.subr.mxu0 0.0
        %1207 = vmatpush1.msra.mxu0 0.0
        %1208 = vmatprep.subr.mxu0 0.0
        %1209 = vmatpush1.msra.mxu0 0.0
        %1210 = vmatprep.subr.mxu0 0.0
        %1211 = vmatpush1.msra.mxu0 0.0
        %1212 = vmatprep.subr.mxu0 0.0
        %1213 = vmatpush1.msra.mxu0 0.0
        %1214 = vmatprep.subr.mxu0 0.0
        %1215 = vmatpush1.msra.mxu0 0.0
        %1216 = vmatprep.subr.mxu0 0.0
        %1217 = vmatpush1.msra.mxu0 0.0
        %1218 = vmatprep.subr.mxu0 0.0
        %1219 = vmatpush1.msra.mxu0 0.0
        %1220 = vmatprep.subr.mxu0 0.0
        %1221 = vmatpush1.msra.mxu0 0.0
        %1222 = vmatprep.subr.mxu0 0.0
        %1223 = vmatpush1.msra.mxu0 0.0
        %1224 = vmatprep.mubr.f32.mxu0 0.0
        %v1225 = vand.u32 %v851, 4294901760
        %1226 = vmatmul.mubr.f32.gmra.mrb[0].mxu0 %v1225
        %v1227 = vpop.f32.mrb[0].mxu0
        %v1228 = vadd.f32 %v1154, %v1227
        %v1229 = vpop.f32.mrb[0].mxu0
        %1230 = vdwg.mxu0
        %1231 = vmatprep.subr.mxu0 0.0
        %v1232 = vand.u32 %v855, 4294901760
        %1233 = vmatpush1.msra.mxu0 %v1232
        %1234 = vmatprep.subr.mxu0 0.0
        %1235 = vmatpush1.msra.mxu0 0.0
        %1236 = vmatprep.subr.mxu0 0.0
        %1237 = vmatpush1.msra.mxu0 0.0
        %1238 = vmatprep.subr.mxu0 0.0
        %1239 = vmatpush1.msra.mxu0 0.0
        %1240 = vmatprep.subr.mxu0 0.0
        %1241 = vmatpush1.msra.mxu0 0.0
        %1242 = vmatprep.subr.mxu0 0.0
        %1243 = vmatpush1.msra.mxu0 0.0
        %1244 = vmatprep.subr.mxu0 0.0
        %1245 = vmatpush1.msra.mxu0 0.0
        %1246 = vmatprep.subr.mxu0 0.0
        %1247 = vmatpush1.msra.mxu0 0.0
        %1248 = vmatprep.subr.mxu0 0.0
        %1249 = vmatpush1.msra.mxu0 0.0
        %1250 = vmatprep.subr.mxu0 0.0
        %1251 = vmatpush1.msra.mxu0 0.0
        %1252 = vmatprep.subr.mxu0 0.0
        %1253 = vmatpush1.msra.mxu0 0.0
        %1254 = vmatprep.subr.mxu0 0.0
        %1255 = vmatpush1.msra.mxu0 0.0
        %1256 = vmatprep.subr.mxu0 0.0
        %1257 = vmatpush1.msra.mxu0 0.0
        %1258 = vmatprep.subr.mxu0 0.0
        %1259 = vmatpush1.msra.mxu0 0.0
        %1260 = vmatprep.subr.mxu0 0.0
        %1261 = vmatpush1.msra.mxu0 0.0
        %1262 = vmatprep.subr.mxu0 0.0
        %1263 = vmatpush1.msra.mxu0 0.0
        %1264 = vmatprep.subr.mxu0 0.0
        %1265 = vmatpush1.msra.mxu0 0.0
        %1266 = vmatprep.subr.mxu0 0.0
        %1267 = vmatpush1.msra.mxu0 0.0
        %1268 = vmatprep.subr.mxu0 0.0
        %1269 = vmatpush1.msra.mxu0 0.0
        %1270 = vmatprep.subr.mxu0 0.0
        %1271 = vmatpush1.msra.mxu0 0.0
        %1272 = vmatprep.subr.mxu0 0.0
        %1273 = vmatpush1.msra.mxu0 0.0
        %1274 = vmatprep.subr.mxu0 0.0
        %1275 = vmatpush1.msra.mxu0 0.0
        %1276 = vmatprep.subr.mxu0 0.0
        %1277 = vmatpush1.msra.mxu0 0.0
        %1278 = vmatprep.subr.mxu0 0.0
        %1279 = vmatpush1.msra.mxu0 0.0
        %1280 = vmatprep.subr.mxu0 0.0
        %1281 = vmatpush1.msra.mxu0 0.0
        %1282 = vmatprep.subr.mxu0 0.0
        %1283 = vmatpush1.msra.mxu0 0.0
        %1284 = vmatprep.subr.mxu0 0.0
        %1285 = vmatpush1.msra.mxu0 0.0
        %1286 = vmatprep.subr.mxu0 0.0
        %1287 = vmatpush1.msra.mxu0 0.0
        %1288 = vmatprep.subr.mxu0 0.0
        %1289 = vmatpush1.msra.mxu0 0.0
        %1290 = vmatprep.subr.mxu0 0.0
        %1291 = vmatpush1.msra.mxu0 0.0
        %1292 = vmatprep.subr.mxu0 0.0
        %1293 = vmatpush1.msra.mxu0 0.0
        %1294 = vmatprep.subr.mxu0 0.0
        %1295 = vmatpush1.msra.mxu0 0.0
        %1296 = vmatprep.mubr.f32.mxu0 0.0
        %v1297 = vand.u32 %v851, 4294901760
        %1298 = vmatmul.mubr.f32.gmra.mrb[0].mxu0 %v1297
        %v1299 = vpop.f32.mrb[0].mxu0
        %v1300 = vadd.f32 %v1228, %v1299
        %v1301 = vpop.f32.mrb[0].mxu0
        %1302 = vdwg.mxu0
        %v1304 = vrot.slane %v1300, 1
        %v1306 = vadd.f32 %v1300, %v1304
        %v1307 = vsub.f32 0.0, %v1306
        %v1308 = vmul.f32 %v1307, 1.442695
        %v1309 = vpow.pop %v1308
        %v1310 = vadd.f32 %v1309, 1.0
        %v1311 = vrcp.pop %v1310
        %v1312 = vmul.f32 1.0, %v1311
        %v1313 = vlaneseq
        %v1314 = vshrl.u32 %v1313, 7
        %v1315 = vsub.s32 0, %v1314
        %v1316 = vrot.slane %v1312, %v1315
        %1318 = vbcast.lane.b32.xlu0 %v1316, 256
        %v1319 = vpop.permute.xlu0 %1318
        %s1321 = sor.u32 256, 8
        %1322 = vbcast.lane.b32.xlu0 %v1316, %s1321
        %v1323 = vpop.permute.xlu0 %1322
        %s1325 = sor.u32 256, 16
        %1326 = vbcast.lane.b32.xlu0 %v1316, %s1325
        %v1327 = vpop.permute.xlu0 %1326
        %s1329 = sor.u32 256, 24
        %1330 = vbcast.lane.b32.xlu0 %v1316, %s1329
        %v1331 = vpop.permute.xlu0 %1330
        %v1332 = vmul.f32 %v259, %v1319
        %v1333 = vmul.f32 %v260, %v1319
        %v1334 = vmul.f32 %v261, %v1323
        %v1335 = vmul.f32 %v262, %v1323
        %v1336 = vmul.f32 %v263, %v1327
        %v1337 = vmul.f32 %v264, %v1327
        %v1338 = vmul.f32 %v265, %v1331
        %v1339 = vmul.f32 %v266, %v1331
        %v1340 = vadd.f32 %v1332, %v1334
        %v1341 = vadd.f32 %v1340, %v1336
        %v1342 = vadd.f32 %v1341, %v1338
        %v1343 = vrot.slane %v1342, 4
        %v1344 = vadd.f32 %v1342, %v1343
        %v1345 = vrot.slane %v1344, 2
        %v1346 = vadd.f32 %v1344, %v1345
        %v1347 = vrot.slane %v1346, 1
        %v1348 = vadd.f32 %v1346, %v1347
        %v1349 = vadd.f32 %v1333, %v1335
        %v1350 = vadd.f32 %v1349, %v1337
        %v1351 = vadd.f32 %v1350, %v1339
        %v1352 = vrot.slane %v1351, 4
        %v1353 = vadd.f32 %v1351, %v1352
        %v1354 = vrot.slane %v1353, 2
        %v1355 = vadd.f32 %v1353, %v1354
        %v1356 = vrot.slane %v1355, 1
        %v1357 = vadd.f32 %v1355, %v1356
        %v1358 = vrcp.pop 32.0
        %v1359 = vmul.f32 %v1348, %v1358
        %v1360 = vmul.f32 %v1357, %v1358
        %v1361 = vmax.f32 %v1332, %v1336
        %v1362 = vmax.f32 %v1334, %v1338
        %v1363 = vmax.f32 %v1361, %v1362
        %v1364 = vrot.slane %v1363, 4
        %v1365 = vmax.f32 %v1363, %v1364
        %v1366 = vrot.slane %v1365, 2
        %v1367 = vmax.f32 %v1365, %v1366
        %v1368 = vrot.slane %v1367, 1
        %v1369 = vmax.f32 %v1367, %v1368
        %v1370 = vmax.f32 %v1333, %v1337
        %v1371 = vmax.f32 %v1335, %v1339
        %v1372 = vmax.f32 %v1370, %v1371
        %v1373 = vrot.slane %v1372, 4
        %v1374 = vmax.f32 %v1372, %v1373
        %v1375 = vrot.slane %v1374, 2
        %v1376 = vmax.f32 %v1374, %v1375
        %v1377 = vrot.slane %v1376, 1
        %v1378 = vmax.f32 %v1376, %v1377
        %v1379 = vld [vmem:[#allocation6] sm:$0xff]
        %v1380 = vld [vmem:[#allocation6 + $0x8] sm:$0xff]
        %v1381 = vld [vmem:[#allocation6 + $0x10] sm:$0xff]
        %v1382 = vld [vmem:[#allocation6 + $0x18] sm:$0xff]
        %v1383 = vld [vmem:[#allocation6 + $0x20] sm:$0xff]
        %v1384 = vld [vmem:[#allocation6 + $0x28] sm:$0xff]
        %v1385 = vld [vmem:[#allocation6 + $0x30] sm:$0xff]
        %v1386 = vld [vmem:[#allocation6 + $0x38] sm:$0xff]
        %v1387 = vld [vmem:[#allocation6 + $0x40] sm:$0xff]
        %v1388 = vld [vmem:[#allocation6 + $0x48] sm:$0xff]
        %v1389 = vld [vmem:[#allocation6 + $0x50] sm:$0xff]
        %v1390 = vld [vmem:[#allocation6 + $0x58] sm:$0xff]
        %v1391 = vld [vmem:[#allocation6 + $0x60] sm:$0xff]
        %v1392 = vld [vmem:[#allocation6 + $0x68] sm:$0xff]
        %v1393 = vld [vmem:[#allocation6 + $0x70] sm:$0xff]
        %v1394 = vld [vmem:[#allocation6 + $0x78] sm:$0xff]
        %v1395 = vld [vmem:[#allocation6 + $0x80] sm:$0xff]
        %v1396 = vld [vmem:[#allocation6 + $0x88] sm:$0xff]
        %v1397 = vld [vmem:[#allocation6 + $0x90] sm:$0xff]
        %v1398 = vld [vmem:[#allocation6 + $0x98] sm:$0xff]
        %v1399 = vld [vmem:[#allocation6 + $0xa0] sm:$0xff]
        %v1400 = vld [vmem:[#allocation6 + $0xa8] sm:$0xff]
        %v1401 = vld [vmem:[#allocation6 + $0xb0] sm:$0xff]
        %v1402 = vld [vmem:[#allocation6 + $0xb8] sm:$0xff]
        %v1403 = vld [vmem:[#allocation6 + $0xc0] sm:$0xff]
        %v1404 = vld [vmem:[#allocation6 + $0xc8] sm:$0xff]
        %v1405 = vld [vmem:[#allocation6 + $0xd0] sm:$0xff]
        %v1406 = vld [vmem:[#allocation6 + $0xd8] sm:$0xff]
        %v1407 = vld [vmem:[#allocation6 + $0xe0] sm:$0xff]
        %v1408 = vld [vmem:[#allocation6 + $0xe8] sm:$0xff]
        %v1409 = vld [vmem:[#allocation6 + $0xf0] sm:$0xff]
        %v1410 = vld [vmem:[#allocation6 + $0xf8] sm:$0xff]
        %v1411 = vld [vmem:[#allocation6 + $0x100] sm:$0xff]
        %v1412 = vld [vmem:[#allocation6 + $0x108] sm:$0xff]
        %v1413 = vld [vmem:[#allocation6 + $0x110] sm:$0xff]
        %v1414 = vld [vmem:[#allocation6 + $0x118] sm:$0xff]
        %v1415 = vld [vmem:[#allocation6 + $0x120] sm:$0xff]
        %v1416 = vld [vmem:[#allocation6 + $0x128] sm:$0xff]
        %v1417 = vld [vmem:[#allocation6 + $0x130] sm:$0xff]
        %v1418 = vld [vmem:[#allocation6 + $0x138] sm:$0xff]
        %v1419 = vld [vmem:[#allocation6 + $0x140] sm:$0xff]
        %v1420 = vld [vmem:[#allocation6 + $0x148] sm:$0xff]
        %v1421 = vld [vmem:[#allocation6 + $0x150] sm:$0xff]
        %v1422 = vld [vmem:[#allocation6 + $0x158] sm:$0xff]
        %v1423 = vld [vmem:[#allocation6 + $0x160] sm:$0xff]
        %v1424 = vld [vmem:[#allocation6 + $0x168] sm:$0xff]
        %v1425 = vld [vmem:[#allocation6 + $0x170] sm:$0xff]
        %v1426 = vld [vmem:[#allocation6 + $0x178] sm:$0xff]
        %v1427 = vld [vmem:[#allocation6 + $0x180] sm:$0xff]
        %v1428 = vld [vmem:[#allocation6 + $0x188] sm:$0xff]
        %v1429 = vld [vmem:[#allocation6 + $0x190] sm:$0xff]
        %v1430 = vld [vmem:[#allocation6 + $0x198] sm:$0xff]
        %v1431 = vld [vmem:[#allocation6 + $0x1a0] sm:$0xff]
        %v1432 = vld [vmem:[#allocation6 + $0x1a8] sm:$0xff]
        %v1433 = vld [vmem:[#allocation6 + $0x1b0] sm:$0xff]
        %v1434 = vld [vmem:[#allocation6 + $0x1b8] sm:$0xff]
        %v1435 = vld [vmem:[#allocation6 + $0x1c0] sm:$0xff]
        %v1436 = vld [vmem:[#allocation6 + $0x1c8] sm:$0xff]
        %v1437 = vld [vmem:[#allocation6 + $0x1d0] sm:$0xff]
        %v1438 = vld [vmem:[#allocation6 + $0x1d8] sm:$0xff]
        %v1439 = vld [vmem:[#allocation6 + $0x1e0] sm:$0xff]
        %v1440 = vld [vmem:[#allocation6 + $0x1e8] sm:$0xff]
        %v1441 = vld [vmem:[#allocation6 + $0x1f0] sm:$0xff]
        %v1442 = vld [vmem:[#allocation6 + $0x1f8] sm:$0xff]
        %v1443 = vld [vmem:[#allocation6 + $0x200] sm:$0xff]
        %v1444 = vld [vmem:[#allocation6 + $0x208] sm:$0xff]
        %v1445 = vld [vmem:[#allocation6 + $0x210] sm:$0xff]
        %v1446 = vld [vmem:[#allocation6 + $0x218] sm:$0xff]
        %v1447 = vld [vmem:[#allocation6 + $0x220] sm:$0xff]
        %v1448 = vld [vmem:[#allocation6 + $0x228] sm:$0xff]
        %v1449 = vld [vmem:[#allocation6 + $0x230] sm:$0xff]
        %v1450 = vld [vmem:[#allocation6 + $0x238] sm:$0xff]
        %v1451 = vld [vmem:[#allocation6 + $0x240] sm:$0xff]
        %v1452 = vld [vmem:[#allocation6 + $0x248] sm:$0xff]
        %v1453 = vld [vmem:[#allocation6 + $0x250] sm:$0xff]
        %v1454 = vld [vmem:[#allocation6 + $0x258] sm:$0xff]
        %v1455 = vld [vmem:[#allocation6 + $0x260] sm:$0xff]
        %v1456 = vld [vmem:[#allocation6 + $0x268] sm:$0xff]
        %v1457 = vld [vmem:[#allocation6 + $0x270] sm:$0xff]
        %v1458 = vld [vmem:[#allocation6 + $0x278] sm:$0xff]
        %v1459 = vld [vmem:[#allocation6 + $0x280] sm:$0xff]
        %v1460 = vld [vmem:[#allocation6 + $0x288] sm:$0xff]
        %v1461 = vld [vmem:[#allocation6 + $0x290] sm:$0xff]
        %v1462 = vld [vmem:[#allocation6 + $0x298] sm:$0xff]
        %v1463 = vld [vmem:[#allocation6 + $0x2a0] sm:$0xff]
        %v1464 = vld [vmem:[#allocation6 + $0x2a8] sm:$0xff]
        %v1465 = vld [vmem:[#allocation6 + $0x2b0] sm:$0xff]
        %v1466 = vld [vmem:[#allocation6 + $0x2b8] sm:$0xff]
        %v1467 = vld [vmem:[#allocation6 + $0x2c0] sm:$0xff]
        %v1468 = vld [vmem:[#allocation6 + $0x2c8] sm:$0xff]
        %v1469 = vld [vmem:[#allocation6 + $0x2d0] sm:$0xff]
        %v1470 = vld [vmem:[#allocation6 + $0x2d8] sm:$0xff]
        %v1471 = vld [vmem:[#allocation6 + $0x2e0] sm:$0xff]
        %v1472 = vld [vmem:[#allocation6 + $0x2e8] sm:$0xff]
        %v1473 = vld [vmem:[#allocation6 + $0x2f0] sm:$0xff]
        %v1474 = vld [vmem:[#allocation6 + $0x2f8] sm:$0xff]
        %v1475 = vld [vmem:[#allocation6 + $0x300] sm:$0xff]
        %v1476 = vld [vmem:[#allocation6 + $0x308] sm:$0xff]
        %v1477 = vld [vmem:[#allocation6 + $0x310] sm:$0xff]
        %v1478 = vld [vmem:[#allocation6 + $0x318] sm:$0xff]
        %v1479 = vld [vmem:[#allocation6 + $0x320] sm:$0xff]
        %v1480 = vld [vmem:[#allocation6 + $0x328] sm:$0xff]
        %v1481 = vld [vmem:[#allocation6 + $0x330] sm:$0xff]
        %v1482 = vld [vmem:[#allocation6 + $0x338] sm:$0xff]
        %v1483 = vld [vmem:[#allocation6 + $0x340] sm:$0xff]
        %v1484 = vld [vmem:[#allocation6 + $0x348] sm:$0xff]
        %v1485 = vld [vmem:[#allocation6 + $0x350] sm:$0xff]
        %v1486 = vld [vmem:[#allocation6 + $0x358] sm:$0xff]
        %v1487 = vld [vmem:[#allocation6 + $0x360] sm:$0xff]
        %v1488 = vld [vmem:[#allocation6 + $0x368] sm:$0xff]
        %v1489 = vld [vmem:[#allocation6 + $0x370] sm:$0xff]
        %v1490 = vld [vmem:[#allocation6 + $0x378] sm:$0xff]
        %v1491 = vld [vmem:[#allocation6 + $0x380] sm:$0xff]
        %v1492 = vld [vmem:[#allocation6 + $0x388] sm:$0xff]
        %v1493 = vld [vmem:[#allocation6 + $0x390] sm:$0xff]
        %v1494 = vld [vmem:[#allocation6 + $0x398] sm:$0xff]
        %v1495 = vld [vmem:[#allocation6 + $0x3a0] sm:$0xff]
        %v1496 = vld [vmem:[#allocation6 + $0x3a8] sm:$0xff]
        %v1497 = vld [vmem:[#allocation6 + $0x3b0] sm:$0xff]
        %v1498 = vld [vmem:[#allocation6 + $0x3b8] sm:$0xff]
        %v1499 = vld [vmem:[#allocation6 + $0x3c0] sm:$0xff]
        %v1500 = vld [vmem:[#allocation6 + $0x3c8] sm:$0xff]
        %v1501 = vld [vmem:[#allocation6 + $0x3d0] sm:$0xff]
        %v1502 = vld [vmem:[#allocation6 + $0x3d8] sm:$0xff]
        %v1503 = vld [vmem:[#allocation6 + $0x3e0] sm:$0xff]
        %v1504 = vld [vmem:[#allocation6 + $0x3e8] sm:$0xff]
        %v1505 = vld [vmem:[#allocation6 + $0x3f0] sm:$0xff]
        %v1506 = vld [vmem:[#allocation6 + $0x3f8] sm:$0xff]
        %s1507 = sld [smem:[#allocation2]]
        %v1508 = vstv %s1507
        %v1509 = vand.u32 %v1380, 4294901760
        %1510 = vmatprep.subr.mxu0 %v1509
        %v1511 = vand.u32 %v1379, 4294901760
        %1512 = vmatpush1.msra.mxu0 %v1511
        %v1513 = vand.u32 %v1382, 4294901760
        %1514 = vmatprep.subr.mxu0 %v1513
        %v1515 = vand.u32 %v1381, 4294901760
        %1516 = vmatpush1.msra.mxu0 %v1515
        %v1517 = vand.u32 %v1384, 4294901760
        %1518 = vmatprep.subr.mxu0 %v1517
        %v1519 = vand.u32 %v1383, 4294901760
        %1520 = vmatpush1.msra.mxu0 %v1519
        %v1521 = vand.u32 %v1386, 4294901760
        %1522 = vmatprep.subr.mxu0 %v1521
        %v1523 = vand.u32 %v1385, 4294901760
        %1524 = vmatpush1.msra.mxu0 %v1523
        %v1525 = vand.u32 %v1388, 4294901760
        %1526 = vmatprep.subr.mxu0 %v1525
        %v1527 = vand.u32 %v1387, 4294901760
        %1528 = vmatpush1.msra.mxu0 %v1527
        %v1529 = vand.u32 %v1390, 4294901760
        %1530 = vmatprep.subr.mxu0 %v1529
        %v1531 = vand.u32 %v1389, 4294901760
        %1532 = vmatpush1.msra.mxu0 %v1531
        %v1533 = vand.u32 %v1392, 4294901760
        %1534 = vmatprep.subr.mxu0 %v1533
        %v1535 = vand.u32 %v1391, 4294901760
        %1536 = vmatpush1.msra.mxu0 %v1535
        %v1537 = vand.u32 %v1394, 4294901760
        %1538 = vmatprep.subr.mxu0 %v1537
        %v1539 = vand.u32 %v1393, 4294901760
        %1540 = vmatpush1.msra.mxu0 %v1539
        %v1541 = vand.u32 %v1396, 4294901760
        %1542 = vmatprep.subr.mxu0 %v1541
        %v1543 = vand.u32 %v1395, 4294901760
        %1544 = vmatpush1.msra.mxu0 %v1543
        %v1545 = vand.u32 %v1398, 4294901760
        %1546 = vmatprep.subr.mxu0 %v1545
        %v1547 = vand.u32 %v1397, 4294901760
        %1548 = vmatpush1.msra.mxu0 %v1547
        %v1549 = vand.u32 %v1400, 4294901760
        %1550 = vmatprep.subr.mxu0 %v1549
        %v1551 = vand.u32 %v1399, 4294901760
        %1552 = vmatpush1.msra.mxu0 %v1551
        %v1553 = vand.u32 %v1402, 4294901760
        %1554 = vmatprep.subr.mxu0 %v1553
        %v1555 = vand.u32 %v1401, 4294901760
        %1556 = vmatpush1.msra.mxu0 %v1555
        %v1557 = vand.u32 %v1404, 4294901760
        %1558 = vmatprep.subr.mxu0 %v1557
        %v1559 = vand.u32 %v1403, 4294901760
        %1560 = vmatpush1.msra.mxu0 %v1559
        %v1561 = vand.u32 %v1406, 4294901760
        %1562 = vmatprep.subr.mxu0 %v1561
        %v1563 = vand.u32 %v1405, 4294901760
        %1564 = vmatpush1.msra.mxu0 %v1563
        %v1565 = vand.u32 %v1408, 4294901760
        %1566 = vmatprep.subr.mxu0 %v1565
        %v1567 = vand.u32 %v1407, 4294901760
        %1568 = vmatpush1.msra.mxu0 %v1567
        %v1569 = vand.u32 %v1410, 4294901760
        %1570 = vmatprep.subr.mxu0 %v1569
        %v1571 = vand.u32 %v1409, 4294901760
        %1572 = vmatpush1.msra.mxu0 %v1571
        %v1573 = vand.u32 %v1412, 4294901760
        %1574 = vmatprep.subr.mxu0 %v1573
        %v1575 = vand.u32 %v1411, 4294901760
        %1576 = vmatpush1.msra.mxu0 %v1575
        %v1577 = vand.u32 %v1414, 4294901760
        %1578 = vmatprep.subr.mxu0 %v1577
        %v1579 = vand.u32 %v1413, 4294901760
        %1580 = vmatpush1.msra.mxu0 %v1579
        %v1581 = vand.u32 %v1416, 4294901760
        %1582 = vmatprep.subr.mxu0 %v1581
        %v1583 = vand.u32 %v1415, 4294901760
        %1584 = vmatpush1.msra.mxu0 %v1583
        %v1585 = vand.u32 %v1418, 4294901760
        %1586 = vmatprep.subr.mxu0 %v1585
        %v1587 = vand.u32 %v1417, 4294901760
        %1588 = vmatpush1.msra.mxu0 %v1587
        %v1589 = vand.u32 %v1420, 4294901760
        %1590 = vmatprep.subr.mxu0 %v1589
        %v1591 = vand.u32 %v1419, 4294901760
        %1592 = vmatpush1.msra.mxu0 %v1591
        %v1593 = vand.u32 %v1422, 4294901760
        %1594 = vmatprep.subr.mxu0 %v1593
        %v1595 = vand.u32 %v1421, 4294901760
        %1596 = vmatpush1.msra.mxu0 %v1595
        %v1597 = vand.u32 %v1424, 4294901760
        %1598 = vmatprep.subr.mxu0 %v1597
        %v1599 = vand.u32 %v1423, 4294901760
        %1600 = vmatpush1.msra.mxu0 %v1599
        %v1601 = vand.u32 %v1426, 4294901760
        %1602 = vmatprep.subr.mxu0 %v1601
        %v1603 = vand.u32 %v1425, 4294901760
        %1604 = vmatpush1.msra.mxu0 %v1603
        %v1605 = vand.u32 %v1428, 4294901760
        %1606 = vmatprep.subr.mxu0 %v1605
        %v1607 = vand.u32 %v1427, 4294901760
        %1608 = vmatpush1.msra.mxu0 %v1607
        %v1609 = vand.u32 %v1430, 4294901760
        %1610 = vmatprep.subr.mxu0 %v1609
        %v1611 = vand.u32 %v1429, 4294901760
        %1612 = vmatpush1.msra.mxu0 %v1611
        %v1613 = vand.u32 %v1432, 4294901760
        %1614 = vmatprep.subr.mxu0 %v1613
        %v1615 = vand.u32 %v1431, 4294901760
        %1616 = vmatpush1.msra.mxu0 %v1615
        %v1617 = vand.u32 %v1434, 4294901760
        %1618 = vmatprep.subr.mxu0 %v1617
        %v1619 = vand.u32 %v1433, 4294901760
        %1620 = vmatpush1.msra.mxu0 %v1619
        %v1621 = vand.u32 %v1436, 4294901760
        %1622 = vmatprep.subr.mxu0 %v1621
        %v1623 = vand.u32 %v1435, 4294901760
        %1624 = vmatpush1.msra.mxu0 %v1623
        %v1625 = vand.u32 %v1438, 4294901760
        %1626 = vmatprep.subr.mxu0 %v1625
        %v1627 = vand.u32 %v1437, 4294901760
        %1628 = vmatpush1.msra.mxu0 %v1627
        %v1629 = vand.u32 %v1440, 4294901760
        %1630 = vmatprep.subr.mxu0 %v1629
        %v1631 = vand.u32 %v1439, 4294901760
        %1632 = vmatpush1.msra.mxu0 %v1631
        %v1633 = vand.u32 %v1442, 4294901760
        %1634 = vmatprep.subr.mxu0 %v1633
        %v1635 = vand.u32 %v1441, 4294901760
        %1636 = vmatpush1.msra.mxu0 %v1635
        %v1637 = vand.u32 %v1360, 4294901760
        %v1638 = vsub.f32 %v1360, %v1637
        %v1639 = vand.u32 %v1638, 4294901760
        %v1640 = vsub.f32 %v1638, %v1639
        %v1641 = vand.u32 %v1640, 4294901760
        %1642 = vmatprep.mubr.f32.mxu0 %v1641
        %v1643 = vand.u32 %v1359, 4294901760
        %v1644 = vsub.f32 %v1359, %v1643
        %v1645 = vand.u32 %v1644, 4294901760
        %v1646 = vsub.f32 %v1644, %v1645
        %v1647 = vand.u32 %v1646, 4294901760
        %1648 = vmatmul.mubr.f32.gmra.mrb[0].mxu0 %v1647
        %v1649 = vpop.f32.mrb[0].mxu0
        %v1650 = vadd.f32 %v1508, %v1649
        %v1651 = vpop.f32.mrb[0].mxu0
        %v1652 = vadd.f32 %v1508, %v1651
        %1653 = vdwg.mxu0
        %v1654 = vand.u32 %v1380, 4294901760
        %v1655 = vsub.f32 %v1380, %v1654
        %v1656 = vand.u32 %v1655, 4294901760
        %v1657 = vsub.f32 %v1655, %v1656
        %v1658 = vand.u32 %v1657, 4294901760
        %1659 = vmatprep.subr.mxu0 %v1658
        %v1660 = vand.u32 %v1379, 4294901760
        %v1661 = vsub.f32 %v1379, %v1660
        %v1662 = vand.u32 %v1661, 4294901760
        %v1663 = vsub.f32 %v1661, %v1662
        %v1664 = vand.u32 %v1663, 4294901760
        %1665 = vmatpush1.msra.mxu0 %v1664
        %v1666 = vand.u32 %v1382, 4294901760
        %v1667 = vsub.f32 %v1382, %v1666
        %v1668 = vand.u32 %v1667, 4294901760
        %v1669 = vsub.f32 %v1667, %v1668
        %v1670 = vand.u32 %v1669, 4294901760
        %1671 = vmatprep.subr.mxu0 %v1670
        %v1672 = vand.u32 %v1381, 4294901760
        %v1673 = vsub.f32 %v1381, %v1672
        %v1674 = vand.u32 %v1673, 4294901760
        %v1675 = vsub.f32 %v1673, %v1674
        %v1676 = vand.u32 %v1675, 4294901760
        %1677 = vmatpush1.msra.mxu0 %v1676
        %v1678 = vand.u32 %v1384, 4294901760
        %v1679 = vsub.f32 %v1384, %v1678
        %v1680 = vand.u32 %v1679, 4294901760
        %v1681 = vsub.f32 %v1679, %v1680
        %v1682 = vand.u32 %v1681, 4294901760
        %1683 = vmatprep.subr.mxu0 %v1682
        %v1684 = vand.u32 %v1383, 4294901760
        %v1685 = vsub.f32 %v1383, %v1684
        %v1686 = vand.u32 %v1685, 4294901760
        %v1687 = vsub.f32 %v1685, %v1686
        %v1688 = vand.u32 %v1687, 4294901760
        %1689 = vmatpush1.msra.mxu0 %v1688
        %v1690 = vand.u32 %v1386, 4294901760
        %v1691 = vsub.f32 %v1386, %v1690
        %v1692 = vand.u32 %v1691, 4294901760
        %v1693 = vsub.f32 %v1691, %v1692
        %v1694 = vand.u32 %v1693, 4294901760
        %1695 = vmatprep.subr.mxu0 %v1694
        %v1696 = vand.u32 %v1385, 4294901760
        %v1697 = vsub.f32 %v1385, %v1696
        %v1698 = vand.u32 %v1697, 4294901760
        %v1699 = vsub.f32 %v1697, %v1698
        %v1700 = vand.u32 %v1699, 4294901760
        %1701 = vmatpush1.msra.mxu0 %v1700
        %v1702 = vand.u32 %v1388, 4294901760
        %v1703 = vsub.f32 %v1388, %v1702
        %v1704 = vand.u32 %v1703, 4294901760
        %v1705 = vsub.f32 %v1703, %v1704
        %v1706 = vand.u32 %v1705, 4294901760
        %1707 = vmatprep.subr.mxu0 %v1706
        %v1708 = vand.u32 %v1387, 4294901760
        %v1709 = vsub.f32 %v1387, %v1708
        %v1710 = vand.u32 %v1709, 4294901760
        %v1711 = vsub.f32 %v1709, %v1710
        %v1712 = vand.u32 %v1711, 4294901760
        %1713 = vmatpush1.msra.mxu0 %v1712
        %v1714 = vand.u32 %v1390, 4294901760
        %v1715 = vsub.f32 %v1390, %v1714
        %v1716 = vand.u32 %v1715, 4294901760
        %v1717 = vsub.f32 %v1715, %v1716
        %v1718 = vand.u32 %v1717, 4294901760
        %1719 = vmatprep.subr.mxu0 %v1718
        %v1720 = vand.u32 %v1389, 4294901760
        %v1721 = vsub.f32 %v1389, %v1720
        %v1722 = vand.u32 %v1721, 4294901760
        %v1723 = vsub.f32 %v1721, %v1722
        %v1724 = vand.u32 %v1723, 4294901760
        %1725 = vmatpush1.msra.mxu0 %v1724
        %v1726 = vand.u32 %v1392, 4294901760
        %v1727 = vsub.f32 %v1392, %v1726
        %v1728 = vand.u32 %v1727, 4294901760
        %v1729 = vsub.f32 %v1727, %v1728
        %v1730 = vand.u32 %v1729, 4294901760
        %1731 = vmatprep.subr.mxu0 %v1730
        %v1732 = vand.u32 %v1391, 4294901760
        %v1733 = vsub.f32 %v1391, %v1732
        %v1734 = vand.u32 %v1733, 4294901760
        %v1735 = vsub.f32 %v1733, %v1734
        %v1736 = vand.u32 %v1735, 4294901760
        %1737 = vmatpush1.msra.mxu0 %v1736
        %v1738 = vand.u32 %v1394, 4294901760
        %v1739 = vsub.f32 %v1394, %v1738
        %v1740 = vand.u32 %v1739, 4294901760
        %v1741 = vsub.f32 %v1739, %v1740
        %v1742 = vand.u32 %v1741, 4294901760
        %1743 = vmatprep.subr.mxu0 %v1742
        %v1744 = vand.u32 %v1393, 4294901760
        %v1745 = vsub.f32 %v1393, %v1744
        %v1746 = vand.u32 %v1745, 4294901760
        %v1747 = vsub.f32 %v1745, %v1746
        %v1748 = vand.u32 %v1747, 4294901760
        %1749 = vmatpush1.msra.mxu0 %v1748
        %v1750 = vand.u32 %v1396, 4294901760
        %v1751 = vsub.f32 %v1396, %v1750
        %v1752 = vand.u32 %v1751, 4294901760
        %v1753 = vsub.f32 %v1751, %v1752
        %v1754 = vand.u32 %v1753, 4294901760
        %1755 = vmatprep.subr.mxu0 %v1754
        %v1756 = vand.u32 %v1395, 4294901760
        %v1757 = vsub.f32 %v1395, %v1756
        %v1758 = vand.u32 %v1757, 4294901760
        %v1759 = vsub.f32 %v1757, %v1758
        %v1760 = vand.u32 %v1759, 4294901760
        %1761 = vmatpush1.msra.mxu0 %v1760
        %v1762 = vand.u32 %v1398, 4294901760
        %v1763 = vsub.f32 %v1398, %v1762
        %v1764 = vand.u32 %v1763, 4294901760
        %v1765 = vsub.f32 %v1763, %v1764
        %v1766 = vand.u32 %v1765, 4294901760
        %1767 = vmatprep.subr.mxu0 %v1766
        %v1768 = vand.u32 %v1397, 4294901760
        %v1769 = vsub.f32 %v1397, %v1768
        %v1770 = vand.u32 %v1769, 4294901760
        %v1771 = vsub.f32 %v1769, %v1770
        %v1772 = vand.u32 %v1771, 4294901760
        %1773 = vmatpush1.msra.mxu0 %v1772
        %v1774 = vand.u32 %v1400, 4294901760
        %v1775 = vsub.f32 %v1400, %v1774
        %v1776 = vand.u32 %v1775, 4294901760
        %v1777 = vsub.f32 %v1775, %v1776
        %v1778 = vand.u32 %v1777, 4294901760
        %1779 = vmatprep.subr.mxu0 %v1778
        %v1780 = vand.u32 %v1399, 4294901760
        %v1781 = vsub.f32 %v1399, %v1780
        %v1782 = vand.u32 %v1781, 4294901760
        %v1783 = vsub.f32 %v1781, %v1782
        %v1784 = vand.u32 %v1783, 4294901760
        %1785 = vmatpush1.msra.mxu0 %v1784
        %v1786 = vand.u32 %v1402, 4294901760
        %v1787 = vsub.f32 %v1402, %v1786
        %v1788 = vand.u32 %v1787, 4294901760
        %v1789 = vsub.f32 %v1787, %v1788
        %v1790 = vand.u32 %v1789, 4294901760
        %1791 = vmatprep.subr.mxu0 %v1790
        %v1792 = vand.u32 %v1401, 4294901760
        %v1793 = vsub.f32 %v1401, %v1792
        %v1794 = vand.u32 %v1793, 4294901760
        %v1795 = vsub.f32 %v1793, %v1794
        %v1796 = vand.u32 %v1795, 4294901760
        %1797 = vmatpush1.msra.mxu0 %v1796
        %v1798 = vand.u32 %v1404, 4294901760
        %v1799 = vsub.f32 %v1404, %v1798
        %v1800 = vand.u32 %v1799, 4294901760
        %v1801 = vsub.f32 %v1799, %v1800
        %v1802 = vand.u32 %v1801, 4294901760
        %1803 = vmatprep.subr.mxu0 %v1802
        %v1804 = vand.u32 %v1403, 4294901760
        %v1805 = vsub.f32 %v1403, %v1804
        %v1806 = vand.u32 %v1805, 4294901760
        %v1807 = vsub.f32 %v1805, %v1806
        %v1808 = vand.u32 %v1807, 4294901760
        %1809 = vmatpush1.msra.mxu0 %v1808
        %v1810 = vand.u32 %v1406, 4294901760
        %v1811 = vsub.f32 %v1406, %v1810
        %v1812 = vand.u32 %v1811, 4294901760
        %v1813 = vsub.f32 %v1811, %v1812
        %v1814 = vand.u32 %v1813, 4294901760
        %1815 = vmatprep.subr.mxu0 %v1814
        %v1816 = vand.u32 %v1405, 4294901760
        %v1817 = vsub.f32 %v1405, %v1816
        %v1818 = vand.u32 %v1817, 4294901760
        %v1819 = vsub.f32 %v1817, %v1818
        %v1820 = vand.u32 %v1819, 4294901760
        %1821 = vmatpush1.msra.mxu0 %v1820
        %v1822 = vand.u32 %v1408, 4294901760
        %v1823 = vsub.f32 %v1408, %v1822
        %v1824 = vand.u32 %v1823, 4294901760
        %v1825 = vsub.f32 %v1823, %v1824
        %v1826 = vand.u32 %v1825, 4294901760
        %1827 = vmatprep.subr.mxu0 %v1826
        %v1828 = vand.u32 %v1407, 4294901760
        %v1829 = vsub.f32 %v1407, %v1828
        %v1830 = vand.u32 %v1829, 4294901760
        %v1831 = vsub.f32 %v1829, %v1830
        %v1832 = vand.u32 %v1831, 4294901760
        %1833 = vmatpush1.msra.mxu0 %v1832
        %v1834 = vand.u32 %v1410, 4294901760
        %v1835 = vsub.f32 %v1410, %v1834
        %v1836 = vand.u32 %v1835, 4294901760
        %v1837 = vsub.f32 %v1835, %v1836
        %v1838 = vand.u32 %v1837, 4294901760
        %1839 = vmatprep.subr.mxu0 %v1838
        %v1840 = vand.u32 %v1409, 4294901760
        %v1841 = vsub.f32 %v1409, %v1840
        %v1842 = vand.u32 %v1841, 4294901760
        %v1843 = vsub.f32 %v1841, %v1842
        %v1844 = vand.u32 %v1843, 4294901760
        %1845 = vmatpush1.msra.mxu0 %v1844
        %v1846 = vand.u32 %v1412, 4294901760
        %v1847 = vsub.f32 %v1412, %v1846
        %v1848 = vand.u32 %v1847, 4294901760
        %v1849 = vsub.f32 %v1847, %v1848
        %v1850 = vand.u32 %v1849, 4294901760
        %1851 = vmatprep.subr.mxu0 %v1850
        %v1852 = vand.u32 %v1411, 4294901760
        %v1853 = vsub.f32 %v1411, %v1852
        %v1854 = vand.u32 %v1853, 4294901760
        %v1855 = vsub.f32 %v1853, %v1854
        %v1856 = vand.u32 %v1855, 4294901760
        %1857 = vmatpush1.msra.mxu0 %v1856
        %v1858 = vand.u32 %v1414, 4294901760
        %v1859 = vsub.f32 %v1414, %v1858
        %v1860 = vand.u32 %v1859, 4294901760
        %v1861 = vsub.f32 %v1859, %v1860
        %v1862 = vand.u32 %v1861, 4294901760
        %1863 = vmatprep.subr.mxu0 %v1862
        %v1864 = vand.u32 %v1413, 4294901760
        %v1865 = vsub.f32 %v1413, %v1864
        %v1866 = vand.u32 %v1865, 4294901760
        %v1867 = vsub.f32 %v1865, %v1866
        %v1868 = vand.u32 %v1867, 4294901760
        %1869 = vmatpush1.msra.mxu0 %v1868
        %v1870 = vand.u32 %v1416, 4294901760
        %v1871 = vsub.f32 %v1416, %v1870
        %v1872 = vand.u32 %v1871, 4294901760
        %v1873 = vsub.f32 %v1871, %v1872
        %v1874 = vand.u32 %v1873, 4294901760
        %1875 = vmatprep.subr.mxu0 %v1874
        %v1876 = vand.u32 %v1415, 4294901760
        %v1877 = vsub.f32 %v1415, %v1876
        %v1878 = vand.u32 %v1877, 4294901760
        %v1879 = vsub.f32 %v1877, %v1878
        %v1880 = vand.u32 %v1879, 4294901760
        %1881 = vmatpush1.msra.mxu0 %v1880
        %v1882 = vand.u32 %v1418, 4294901760
        %v1883 = vsub.f32 %v1418, %v1882
        %v1884 = vand.u32 %v1883, 4294901760
        %v1885 = vsub.f32 %v1883, %v1884
        %v1886 = vand.u32 %v1885, 4294901760
        %1887 = vmatprep.subr.mxu0 %v1886
        %v1888 = vand.u32 %v1417, 4294901760
        %v1889 = vsub.f32 %v1417, %v1888
        %v1890 = vand.u32 %v1889, 4294901760
        %v1891 = vsub.f32 %v1889, %v1890
        %v1892 = vand.u32 %v1891, 4294901760
        %1893 = vmatpush1.msra.mxu0 %v1892
        %v1894 = vand.u32 %v1420, 4294901760
        %v1895 = vsub.f32 %v1420, %v1894
        %v1896 = vand.u32 %v1895, 4294901760
        %v1897 = vsub.f32 %v1895, %v1896
        %v1898 = vand.u32 %v1897, 4294901760
        %1899 = vmatprep.subr.mxu0 %v1898
        %v1900 = vand.u32 %v1419, 4294901760
        %v1901 = vsub.f32 %v1419, %v1900
        %v1902 = vand.u32 %v1901, 4294901760
        %v1903 = vsub.f32 %v1901, %v1902
        %v1904 = vand.u32 %v1903, 4294901760
        %1905 = vmatpush1.msra.mxu0 %v1904
        %v1906 = vand.u32 %v1422, 4294901760
        %v1907 = vsub.f32 %v1422, %v1906
        %v1908 = vand.u32 %v1907, 4294901760
        %v1909 = vsub.f32 %v1907, %v1908
        %v1910 = vand.u32 %v1909, 4294901760
        %1911 = vmatprep.subr.mxu0 %v1910
        %v1912 = vand.u32 %v1421, 4294901760
        %v1913 = vsub.f32 %v1421, %v1912
        %v1914 = vand.u32 %v1913, 4294901760
        %v1915 = vsub.f32 %v1913, %v1914
        %v1916 = vand.u32 %v1915, 4294901760
        %1917 = vmatpush1.msra.mxu0 %v1916
        %v1918 = vand.u32 %v1424, 4294901760
        %v1919 = vsub.f32 %v1424, %v1918
        %v1920 = vand.u32 %v1919, 4294901760
        %v1921 = vsub.f32 %v1919, %v1920
        %v1922 = vand.u32 %v1921, 4294901760
        %1923 = vmatprep.subr.mxu0 %v1922
        %v1924 = vand.u32 %v1423, 4294901760
        %v1925 = vsub.f32 %v1423, %v1924
        %v1926 = vand.u32 %v1925, 4294901760
        %v1927 = vsub.f32 %v1925, %v1926
        %v1928 = vand.u32 %v1927, 4294901760
        %1929 = vmatpush1.msra.mxu0 %v1928
        %v1930 = vand.u32 %v1426, 4294901760
        %v1931 = vsub.f32 %v1426, %v1930
        %v1932 = vand.u32 %v1931, 4294901760
        %v1933 = vsub.f32 %v1931, %v1932
        %v1934 = vand.u32 %v1933, 4294901760
        %1935 = vmatprep.subr.mxu0 %v1934
        %v1936 = vand.u32 %v1425, 4294901760
        %v1937 = vsub.f32 %v1425, %v1936
        %v1938 = vand.u32 %v1937, 4294901760
        %v1939 = vsub.f32 %v1937, %v1938
        %v1940 = vand.u32 %v1939, 4294901760
        %1941 = vmatpush1.msra.mxu0 %v1940
        %v1942 = vand.u32 %v1428, 4294901760
        %v1943 = vsub.f32 %v1428, %v1942
        %v1944 = vand.u32 %v1943, 4294901760
        %v1945 = vsub.f32 %v1943, %v1944
        %v1946 = vand.u32 %v1945, 4294901760
        %1947 = vmatprep.subr.mxu0 %v1946
        %v1948 = vand.u32 %v1427, 4294901760
        %v1949 = vsub.f32 %v1427, %v1948
        %v1950 = vand.u32 %v1949, 4294901760
        %v1951 = vsub.f32 %v1949, %v1950
        %v1952 = vand.u32 %v1951, 4294901760
        %1953 = vmatpush1.msra.mxu0 %v1952
        %v1954 = vand.u32 %v1430, 4294901760
        %v1955 = vsub.f32 %v1430, %v1954
        %v1956 = vand.u32 %v1955, 4294901760
        %v1957 = vsub.f32 %v1955, %v1956
        %v1958 = vand.u32 %v1957, 4294901760
        %1959 = vmatprep.subr.mxu0 %v1958
        %v1960 = vand.u32 %v1429, 4294901760
        %v1961 = vsub.f32 %v1429, %v1960
        %v1962 = vand.u32 %v1961, 4294901760
        %v1963 = vsub.f32 %v1961, %v1962
        %v1964 = vand.u32 %v1963, 4294901760
        %1965 = vmatpush1.msra.mxu0 %v1964
        %v1966 = vand.u32 %v1432, 4294901760
        %v1967 = vsub.f32 %v1432, %v1966
        %v1968 = vand.u32 %v1967, 4294901760
        %v1969 = vsub.f32 %v1967, %v1968
        %v1970 = vand.u32 %v1969, 4294901760
        %1971 = vmatprep.subr.mxu0 %v1970
        %v1972 = vand.u32 %v1431, 4294901760
        %v1973 = vsub.f32 %v1431, %v1972
        %v1974 = vand.u32 %v1973, 4294901760
        %v1975 = vsub.f32 %v1973, %v1974
        %v1976 = vand.u32 %v1975, 4294901760
        %1977 = vmatpush1.msra.mxu0 %v1976
        %v1978 = vand.u32 %v1434, 4294901760
        %v1979 = vsub.f32 %v1434, %v1978
        %v1980 = vand.u32 %v1979, 4294901760
        %v1981 = vsub.f32 %v1979, %v1980
        %v1982 = vand.u32 %v1981, 4294901760
        %1983 = vmatprep.subr.mxu0 %v1982
        %v1984 = vand.u32 %v1433, 4294901760
        %v1985 = vsub.f32 %v1433, %v1984
        %v1986 = vand.u32 %v1985, 4294901760
        %v1987 = vsub.f32 %v1985, %v1986
        %v1988 = vand.u32 %v1987, 4294901760
        %1989 = vmatpush1.msra.mxu0 %v1988
        %v1990 = vand.u32 %v1436, 4294901760
        %v1991 = vsub.f32 %v1436, %v1990
        %v1992 = vand.u32 %v1991, 4294901760
        %v1993 = vsub.f32 %v1991, %v1992
        %v1994 = vand.u32 %v1993, 4294901760
        %1995 = vmatprep.subr.mxu0 %v1994
        %v1996 = vand.u32 %v1435, 4294901760
        %v1997 = vsub.f32 %v1435, %v1996
        %v1998 = vand.u32 %v1997, 4294901760
        %v1999 = vsub.f32 %v1997, %v1998
        %v2000 = vand.u32 %v1999, 4294901760
        %2001 = vmatpush1.msra.mxu0 %v2000
        %v2002 = vand.u32 %v1438, 4294901760
        %v2003 = vsub.f32 %v1438, %v2002
        %v2004 = vand.u32 %v2003, 4294901760
        %v2005 = vsub.f32 %v2003, %v2004
        %v2006 = vand.u32 %v2005, 4294901760
        %2007 = vmatprep.subr.mxu0 %v2006
        %v2008 = vand.u32 %v1437, 4294901760
        %v2009 = vsub.f32 %v1437, %v2008
        %v2010 = vand.u32 %v2009, 4294901760
        %v2011 = vsub.f32 %v2009, %v2010
        %v2012 = vand.u32 %v2011, 4294901760
        %2013 = vmatpush1.msra.mxu0 %v2012
        %v2014 = vand.u32 %v1440, 4294901760
        %v2015 = vsub.f32 %v1440, %v2014
        %v2016 = vand.u32 %v2015, 4294901760
        %v2017 = vsub.f32 %v2015, %v2016
        %v2018 = vand.u32 %v2017, 4294901760
        %2019 = vmatprep.subr.mxu0 %v2018
        %v2020 = vand.u32 %v1439, 4294901760
        %v2021 = vsub.f32 %v1439, %v2020
        %v2022 = vand.u32 %v2021, 4294901760
        %v2023 = vsub.f32 %v2021, %v2022
        %v2024 = vand.u32 %v2023, 4294901760
        %2025 = vmatpush1.msra.mxu0 %v2024
        %v2026 = vand.u32 %v1442, 4294901760
        %v2027 = vsub.f32 %v1442, %v2026
        %v2028 = vand.u32 %v2027, 4294901760
        %v2029 = vsub.f32 %v2027, %v2028
        %v2030 = vand.u32 %v2029, 4294901760
        %2031 = vmatprep.subr.mxu0 %v2030
        %v2032 = vand.u32 %v1441, 4294901760
        %v2033 = vsub.f32 %v1441, %v2032
        %v2034 = vand.u32 %v2033, 4294901760
        %v2035 = vsub.f32 %v2033, %v2034
        %v2036 = vand.u32 %v2035, 4294901760
        %2037 = vmatpush1.msra.mxu0 %v2036
        %v2038 = vand.u32 %v1360, 4294901760
        %2039 = vmatprep.mubr.f32.mxu0 %v2038
        %v2040 = vand.u32 %v1359, 4294901760
        %2041 = vmatmul.mubr.f32.gmra.mrb[0].mxu0 %v2040
        %v2042 = vpop.f32.mrb[0].mxu0
        %v2043 = vadd.f32 %v1650, %v2042
        %v2044 = vpop.f32.mrb[0].mxu0
        %v2045 = vadd.f32 %v1652, %v2044
        %2046 = vdwg.mxu0
        %v2047 = vand.u32 %v1380, 4294901760
        %v2048 = vsub.f32 %v1380, %v2047
        %2049 = vmatprep.subr.mxu0 %v2048
        %v2050 = vand.u32 %v1379, 4294901760
        %v2051 = vsub.f32 %v1379, %v2050
        %2052 = vmatpush1.msra.mxu0 %v2051
        %v2053 = vand.u32 %v1382, 4294901760
        %v2054 = vsub.f32 %v1382, %v2053
        %2055 = vmatprep.subr.mxu0 %v2054
        %v2056 = vand.u32 %v1381, 4294901760
        %v2057 = vsub.f32 %v1381, %v2056
        %2058 = vmatpush1.msra.mxu0 %v2057
        %v2059 = vand.u32 %v1384, 4294901760
        %v2060 = vsub.f32 %v1384, %v2059
        %2061 = vmatprep.subr.mxu0 %v2060
        %v2062 = vand.u32 %v1383, 4294901760
        %v2063 = vsub.f32 %v1383, %v2062
        %2064 = vmatpush1.msra.mxu0 %v2063
        %v2065 = vand.u32 %v1386, 4294901760
        %v2066 = vsub.f32 %v1386, %v2065
        %2067 = vmatprep.subr.mxu0 %v2066
        %v2068 = vand.u32 %v1385, 4294901760
        %v2069 = vsub.f32 %v1385, %v2068
        %2070 = vmatpush1.msra.mxu0 %v2069
        %v2071 = vand.u32 %v1388, 4294901760
        %v2072 = vsub.f32 %v1388, %v2071
        %2073 = vmatprep.subr.mxu0 %v2072
        %v2074 = vand.u32 %v1387, 4294901760
        %v2075 = vsub.f32 %v1387, %v2074
        %2076 = vmatpush1.msra.mxu0 %v2075
        %v2077 = vand.u32 %v1390, 4294901760
        %v2078 = vsub.f32 %v1390, %v2077
        %2079 = vmatprep.subr.mxu0 %v2078
        %v2080 = vand.u32 %v1389, 4294901760
        %v2081 = vsub.f32 %v1389, %v2080
        %2082 = vmatpush1.msra.mxu0 %v2081
        %v2083 = vand.u32 %v1392, 4294901760
        %v2084 = vsub.f32 %v1392, %v2083
        %2085 = vmatprep.subr.mxu0 %v2084
        %v2086 = vand.u32 %v1391, 4294901760
        %v2087 = vsub.f32 %v1391, %v2086
        %2088 = vmatpush1.msra.mxu0 %v2087
        %v2089 = vand.u32 %v1394, 4294901760
        %v2090 = vsub.f32 %v1394, %v2089
        %2091 = vmatprep.subr.mxu0 %v2090
        %v2092 = vand.u32 %v1393, 4294901760
        %v2093 = vsub.f32 %v1393, %v2092
        %2094 = vmatpush1.msra.mxu0 %v2093
        %v2095 = vand.u32 %v1396, 4294901760
        %v2096 = vsub.f32 %v1396, %v2095
        %2097 = vmatprep.subr.mxu0 %v2096
        %v2098 = vand.u32 %v1395, 4294901760
        %v2099 = vsub.f32 %v1395, %v2098
        %2100 = vmatpush1.msra.mxu0 %v2099
        %v2101 = vand.u32 %v1398, 4294901760
        %v2102 = vsub.f32 %v1398, %v2101
        %2103 = vmatprep.subr.mxu0 %v2102
        %v2104 = vand.u32 %v1397, 4294901760
        %v2105 = vsub.f32 %v1397, %v2104
        %2106 = vmatpush1.msra.mxu0 %v2105
        %v2107 = vand.u32 %v1400, 4294901760
        %v2108 = vsub.f32 %v1400, %v2107
        %2109 = vmatprep.subr.mxu0 %v2108
        %v2110 = vand.u32 %v1399, 4294901760
        %v2111 = vsub.f32 %v1399, %v2110
        %2112 = vmatpush1.msra.mxu0 %v2111
        %v2113 = vand.u32 %v1402, 4294901760
        %v2114 = vsub.f32 %v1402, %v2113
        %2115 = vmatprep.subr.mxu0 %v2114
        %v2116 = vand.u32 %v1401, 4294901760
        %v2117 = vsub.f32 %v1401, %v2116
        %2118 = vmatpush1.msra.mxu0 %v2117
        %v2119 = vand.u32 %v1404, 4294901760
        %v2120 = vsub.f32 %v1404, %v2119
        %2121 = vmatprep.subr.mxu0 %v2120
        %v2122 = vand.u32 %v1403, 4294901760
        %v2123 = vsub.f32 %v1403, %v2122
        %2124 = vmatpush1.msra.mxu0 %v2123
        %v2125 = vand.u32 %v1406, 4294901760
        %v2126 = vsub.f32 %v1406, %v2125
        %2127 = vmatprep.subr.mxu0 %v2126
        %v2128 = vand.u32 %v1405, 4294901760
        %v2129 = vsub.f32 %v1405, %v2128
        %2130 = vmatpush1.msra.mxu0 %v2129
        %v2131 = vand.u32 %v1408, 4294901760
        %v2132 = vsub.f32 %v1408, %v2131
        %2133 = vmatprep.subr.mxu0 %v2132
        %v2134 = vand.u32 %v1407, 4294901760
        %v2135 = vsub.f32 %v1407, %v2134
        %2136 = vmatpush1.msra.mxu0 %v2135
        %v2137 = vand.u32 %v1410, 4294901760
        %v2138 = vsub.f32 %v1410, %v2137
        %2139 = vmatprep.subr.mxu0 %v2138
        %v2140 = vand.u32 %v1409, 4294901760
        %v2141 = vsub.f32 %v1409, %v2140
        %2142 = vmatpush1.msra.mxu0 %v2141
        %v2143 = vand.u32 %v1412, 4294901760
        %v2144 = vsub.f32 %v1412, %v2143
        %2145 = vmatprep.subr.mxu0 %v2144
        %v2146 = vand.u32 %v1411, 4294901760
        %v2147 = vsub.f32 %v1411, %v2146
        %2148 = vmatpush1.msra.mxu0 %v2147
        %v2149 = vand.u32 %v1414, 4294901760
        %v2150 = vsub.f32 %v1414, %v2149
        %2151 = vmatprep.subr.mxu0 %v2150
        %v2152 = vand.u32 %v1413, 4294901760
        %v2153 = vsub.f32 %v1413, %v2152
        %2154 = vmatpush1.msra.mxu0 %v2153
        %v2155 = vand.u32 %v1416, 4294901760
        %v2156 = vsub.f32 %v1416, %v2155
        %2157 = vmatprep.subr.mxu0 %v2156
        %v2158 = vand.u32 %v1415, 4294901760
        %v2159 = vsub.f32 %v1415, %v2158
        %2160 = vmatpush1.msra.mxu0 %v2159
        %v2161 = vand.u32 %v1418, 4294901760
        %v2162 = vsub.f32 %v1418, %v2161
        %2163 = vmatprep.subr.mxu0 %v2162
        %v2164 = vand.u32 %v1417, 4294901760
        %v2165 = vsub.f32 %v1417, %v2164
        %2166 = vmatpush1.msra.mxu0 %v2165
        %v2167 = vand.u32 %v1420, 4294901760
        %v2168 = vsub.f32 %v1420, %v2167
        %2169 = vmatprep.subr.mxu0 %v2168
        %v2170 = vand.u32 %v1419, 4294901760
        %v2171 = vsub.f32 %v1419, %v2170
        %2172 = vmatpush1.msra.mxu0 %v2171
        %v2173 = vand.u32 %v1422, 4294901760
        %v2174 = vsub.f32 %v1422, %v2173
        %2175 = vmatprep.subr.mxu0 %v2174
        %v2176 = vand.u32 %v1421, 4294901760
        %v2177 = vsub.f32 %v1421, %v2176
        %2178 = vmatpush1.msra.mxu0 %v2177
        %v2179 = vand.u32 %v1424, 4294901760
        %v2180 = vsub.f32 %v1424, %v2179
        %2181 = vmatprep.subr.mxu0 %v2180
        %v2182 = vand.u32 %v1423, 4294901760
        %v2183 = vsub.f32 %v1423, %v2182
        %2184 = vmatpush1.msra.mxu0 %v2183
        %v2185 = vand.u32 %v1426, 4294901760
        %v2186 = vsub.f32 %v1426, %v2185
        %2187 = vmatprep.subr.mxu0 %v2186
        %v2188 = vand.u32 %v1425, 4294901760
        %v2189 = vsub.f32 %v1425, %v2188
        %2190 = vmatpush1.msra.mxu0 %v2189
        %v2191 = vand.u32 %v1428, 4294901760
        %v2192 = vsub.f32 %v1428, %v2191
        %2193 = vmatprep.subr.mxu0 %v2192
        %v2194 = vand.u32 %v1427, 4294901760
        %v2195 = vsub.f32 %v1427, %v2194
        %2196 = vmatpush1.msra.mxu0 %v2195
        %v2197 = vand.u32 %v1430, 4294901760
        %v2198 = vsub.f32 %v1430, %v2197
        %2199 = vmatprep.subr.mxu0 %v2198
        %v2200 = vand.u32 %v1429, 4294901760
        %v2201 = vsub.f32 %v1429, %v2200
        %2202 = vmatpush1.msra.mxu0 %v2201
        %v2203 = vand.u32 %v1432, 4294901760
        %v2204 = vsub.f32 %v1432, %v2203
        %2205 = vmatprep.subr.mxu0 %v2204
        %v2206 = vand.u32 %v1431, 4294901760
        %v2207 = vsub.f32 %v1431, %v2206
        %2208 = vmatpush1.msra.mxu0 %v2207
        %v2209 = vand.u32 %v1434, 4294901760
        %v2210 = vsub.f32 %v1434, %v2209
        %2211 = vmatprep.subr.mxu0 %v2210
        %v2212 = vand.u32 %v1433, 4294901760
        %v2213 = vsub.f32 %v1433, %v2212
        %2214 = vmatpush1.msra.mxu0 %v2213
        %v2215 = vand.u32 %v1436, 4294901760
        %v2216 = vsub.f32 %v1436, %v2215
        %2217 = vmatprep.subr.mxu0 %v2216
        %v2218 = vand.u32 %v1435, 4294901760
        %v2219 = vsub.f32 %v1435, %v2218
        %2220 = vmatpush1.msra.mxu0 %v2219
        %v2221 = vand.u32 %v1438, 4294901760
        %v2222 = vsub.f32 %v1438, %v2221
        %2223 = vmatprep.subr.mxu0 %v2222
        %v2224 = vand.u32 %v1437, 4294901760
        %v2225 = vsub.f32 %v1437, %v2224
        %2226 = vmatpush1.msra.mxu0 %v2225
        %v2227 = vand.u32 %v1440, 4294901760
        %v2228 = vsub.f32 %v1440, %v2227
        %2229 = vmatprep.subr.mxu0 %v2228
        %v2230 = vand.u32 %v1439, 4294901760
        %v2231 = vsub.f32 %v1439, %v2230
        %2232 = vmatpush1.msra.mxu0 %v2231
        %v2233 = vand.u32 %v1442, 4294901760
        %v2234 = vsub.f32 %v1442, %v2233
        %2235 = vmatprep.subr.mxu0 %v2234
        %v2236 = vand.u32 %v1441, 4294901760
        %v2237 = vsub.f32 %v1441, %v2236
        %2238 = vmatpush1.msra.mxu0 %v2237
        %v2239 = vand.u32 %v1360, 4294901760
        %v2240 = vsub.f32 %v1360, %v2239
        %2241 = vmatprep.mubr.f32.mxu0 %v2240
        %v2242 = vand.u32 %v1359, 4294901760
        %v2243 = vsub.f32 %v1359, %v2242
        %2244 = vmatmul.mubr.f32.gmra.mrb[0].mxu0 %v2243
        %v2245 = vpop.f32.mrb[0].mxu0
        %v2246 = vadd.f32 %v2043, %v2245
        %v2247 = vpop.f32.mrb[0].mxu0
        %v2248 = vadd.f32 %v2045, %v2247
        %2249 = vdwg.mxu0
        %v2250 = vand.u32 %v1380, 4294901760
        %2251 = vmatprep.subr.mxu0 %v2250
        %v2252 = vand.u32 %v1379, 4294901760
        %2253 = vmatpush1.msra.mxu0 %v2252
        %v2254 = vand.u32 %v1382, 4294901760
        %2255 = vmatprep.subr.mxu0 %v2254
        %v2256 = vand.u32 %v1381, 4294901760
        %2257 = vmatpush1.msra.mxu0 %v2256
        %v2258 = vand.u32 %v1384, 4294901760
        %2259 = vmatprep.subr.mxu0 %v2258
        %v2260 = vand.u32 %v1383, 4294901760
        %2261 = vmatpush1.msra.mxu0 %v2260
        %v2262 = vand.u32 %v1386, 4294901760
        %2263 = vmatprep.subr.mxu0 %v2262
        %v2264 = vand.u32 %v1385, 4294901760
        %2265 = vmatpush1.msra.mxu0 %v2264
        %v2266 = vand.u32 %v1388, 4294901760
        %2267 = vmatprep.subr.mxu0 %v2266
        %v2268 = vand.u32 %v1387, 4294901760
        %2269 = vmatpush1.msra.mxu0 %v2268
        %v2270 = vand.u32 %v1390, 4294901760
        %2271 = vmatprep.subr.mxu0 %v2270
        %v2272 = vand.u32 %v1389, 4294901760
        %2273 = vmatpush1.msra.mxu0 %v2272
        %v2274 = vand.u32 %v1392, 4294901760
        %2275 = vmatprep.subr.mxu0 %v2274
        %v2276 = vand.u32 %v1391, 4294901760
        %2277 = vmatpush1.msra.mxu0 %v2276
        %v2278 = vand.u32 %v1394, 4294901760
        %2279 = vmatprep.subr.mxu0 %v2278
        %v2280 = vand.u32 %v1393, 4294901760
        %2281 = vmatpush1.msra.mxu0 %v2280
        %v2282 = vand.u32 %v1396, 4294901760
        %2283 = vmatprep.subr.mxu0 %v2282
        %v2284 = vand.u32 %v1395, 4294901760
        %2285 = vmatpush1.msra.mxu0 %v2284
        %v2286 = vand.u32 %v1398, 4294901760
        %2287 = vmatprep.subr.mxu0 %v2286
        %v2288 = vand.u32 %v1397, 4294901760
        %2289 = vmatpush1.msra.mxu0 %v2288
        %v2290 = vand.u32 %v1400, 4294901760
        %2291 = vmatprep.subr.mxu0 %v2290
        %v2292 = vand.u32 %v1399, 4294901760
        %2293 = vmatpush1.msra.mxu0 %v2292
        %v2294 = vand.u32 %v1402, 4294901760
        %2295 = vmatprep.subr.mxu0 %v2294
        %v2296 = vand.u32 %v1401, 4294901760
        %2297 = vmatpush1.msra.mxu0 %v2296
        %v2298 = vand.u32 %v1404, 4294901760
        %2299 = vmatprep.subr.mxu0 %v2298
        %v2300 = vand.u32 %v1403, 4294901760
        %2301 = vmatpush1.msra.mxu0 %v2300
        %v2302 = vand.u32 %v1406, 4294901760
        %2303 = vmatprep.subr.mxu0 %v2302
        %v2304 = vand.u32 %v1405, 4294901760
        %2305 = vmatpush1.msra.mxu0 %v2304
        %v2306 = vand.u32 %v1408, 4294901760
        %2307 = vmatprep.subr.mxu0 %v2306
        %v2308 = vand.u32 %v1407, 4294901760
        %2309 = vmatpush1.msra.mxu0 %v2308
        %v2310 = vand.u32 %v1410, 4294901760
        %2311 = vmatprep.subr.mxu0 %v2310
        %v2312 = vand.u32 %v1409, 4294901760
        %2313 = vmatpush1.msra.mxu0 %v2312
        %v2314 = vand.u32 %v1412, 4294901760
        %2315 = vmatprep.subr.mxu0 %v2314
        %v2316 = vand.u32 %v1411, 4294901760
        %2317 = vmatpush1.msra.mxu0 %v2316
        %v2318 = vand.u32 %v1414, 4294901760
        %2319 = vmatprep.subr.mxu0 %v2318
        %v2320 = vand.u32 %v1413, 4294901760
        %2321 = vmatpush1.msra.mxu0 %v2320
        %v2322 = vand.u32 %v1416, 4294901760
        %2323 = vmatprep.subr.mxu0 %v2322
        %v2324 = vand.u32 %v1415, 4294901760
        %2325 = vmatpush1.msra.mxu0 %v2324
        %v2326 = vand.u32 %v1418, 4294901760
        %2327 = vmatprep.subr.mxu0 %v2326
        %v2328 = vand.u32 %v1417, 4294901760
        %2329 = vmatpush1.msra.mxu0 %v2328
        %v2330 = vand.u32 %v1420, 4294901760
        %2331 = vmatprep.subr.mxu0 %v2330
        %v2332 = vand.u32 %v1419, 4294901760
        %2333 = vmatpush1.msra.mxu0 %v2332
        %v2334 = vand.u32 %v1422, 4294901760
        %2335 = vmatprep.subr.mxu0 %v2334
        %v2336 = vand.u32 %v1421, 4294901760
        %2337 = vmatpush1.msra.mxu0 %v2336
        %v2338 = vand.u32 %v1424, 4294901760
        %2339 = vmatprep.subr.mxu0 %v2338
        %v2340 = vand.u32 %v1423, 4294901760
        %2341 = vmatpush1.msra.mxu0 %v2340
        %v2342 = vand.u32 %v1426, 4294901760
        %2343 = vmatprep.subr.mxu0 %v2342
        %v2344 = vand.u32 %v1425, 4294901760
        %2345 = vmatpush1.msra.mxu0 %v2344
        %v2346 = vand.u32 %v1428, 4294901760
        %2347 = vmatprep.subr.mxu0 %v2346
        %v2348 = vand.u32 %v1427, 4294901760
        %2349 = vmatpush1.msra.mxu0 %v2348
        %v2350 = vand.u32 %v1430, 4294901760
        %2351 = vmatprep.subr.mxu0 %v2350
        %v2352 = vand.u32 %v1429, 4294901760
        %2353 = vmatpush1.msra.mxu0 %v2352
        %v2354 = vand.u32 %v1432, 4294901760
        %2355 = vmatprep.subr.mxu0 %v2354
        %v2356 = vand.u32 %v1431, 4294901760
        %2357 = vmatpush1.msra.mxu0 %v2356
        %v2358 = vand.u32 %v1434, 4294901760
        %2359 = vmatprep.subr.mxu0 %v2358
        %v2360 = vand.u32 %v1433, 4294901760
        %2361 = vmatpush1.msra.mxu0 %v2360
        %v2362 = vand.u32 %v1436, 4294901760
        %2363 = vmatprep.subr.mxu0 %v2362
        %v2364 = vand.u32 %v1435, 4294901760
        %2365 = vmatpush1.msra.mxu0 %v2364
        %v2366 = vand.u32 %v1438, 4294901760
        %2367 = vmatprep.subr.mxu0 %v2366
        %v2368 = vand.u32 %v1437, 4294901760
        %2369 = vmatpush1.msra.mxu0 %v2368
        %v2370 = vand.u32 %v1440, 4294901760
        %2371 = vmatprep.subr.mxu0 %v2370
        %v2372 = vand.u32 %v1439, 4294901760
        %2373 = vmatpush1.msra.mxu0 %v2372
        %v2374 = vand.u32 %v1442, 4294901760
        %2375 = vmatprep.subr.mxu0 %v2374
        %v2376 = vand.u32 %v1441, 4294901760
        %2377 = vmatpush1.msra.mxu0 %v2376
        %v2378 = vand.u32 %v1360, 4294901760
        %v2379 = vsub.f32 %v1360, %v2378
        %v2380 = vand.u32 %v2379, 4294901760
        %2381 = vmatprep.mubr.f32.mxu0 %v2380
        %v2382 = vand.u32 %v1359, 4294901760
        %v2383 = vsub.f32 %v1359, %v2382
        %v2384 = vand.u32 %v2383, 4294901760
        %2385 = vmatmul.mubr.f32.gmra.mrb[0].mxu0 %v2384
        %v2386 = vpop.f32.mrb[0].mxu0
        %v2387 = vadd.f32 %v2246, %v2386
        %v2388 = vpop.f32.mrb[0].mxu0
        %v2389 = vadd.f32 %v2248, %v2388
        %2390 = vdwg.mxu0
        %v2391 = vand.u32 %v1380, 4294901760
        %v2392 = vsub.f32 %v1380, %v2391
        %v2393 = vand.u32 %v2392, 4294901760
        %2394 = vmatprep.subr.mxu0 %v2393
        %v2395 = vand.u32 %v1379, 4294901760
        %v2396 = vsub.f32 %v1379, %v2395
        %v2397 = vand.u32 %v2396, 4294901760
        %2398 = vmatpush1.msra.mxu0 %v2397
        %v2399 = vand.u32 %v1382, 4294901760
        %v2400 = vsub.f32 %v1382, %v2399
        %v2401 = vand.u32 %v2400, 4294901760
        %2402 = vmatprep.subr.mxu0 %v2401
        %v2403 = vand.u32 %v1381, 4294901760
        %v2404 = vsub.f32 %v1381, %v2403
        %v2405 = vand.u32 %v2404, 4294901760
        %2406 = vmatpush1.msra.mxu0 %v2405
        %v2407 = vand.u32 %v1384, 4294901760
        %v2408 = vsub.f32 %v1384, %v2407
        %v2409 = vand.u32 %v2408, 4294901760
        %2410 = vmatprep.subr.mxu0 %v2409
        %v2411 = vand.u32 %v1383, 4294901760
        %v2412 = vsub.f32 %v1383, %v2411
        %v2413 = vand.u32 %v2412, 4294901760
        %2414 = vmatpush1.msra.mxu0 %v2413
        %v2415 = vand.u32 %v1386, 4294901760
        %v2416 = vsub.f32 %v1386, %v2415
        %v2417 = vand.u32 %v2416, 4294901760
        %2418 = vmatprep.subr.mxu0 %v2417
        %v2419 = vand.u32 %v1385, 4294901760
        %v2420 = vsub.f32 %v1385, %v2419
        %v2421 = vand.u32 %v2420, 4294901760
        %2422 = vmatpush1.msra.mxu0 %v2421
        %v2423 = vand.u32 %v1388, 4294901760
        %v2424 = vsub.f32 %v1388, %v2423
        %v2425 = vand.u32 %v2424, 4294901760
        %2426 = vmatprep.subr.mxu0 %v2425
        %v2427 = vand.u32 %v1387, 4294901760
        %v2428 = vsub.f32 %v1387, %v2427
        %v2429 = vand.u32 %v2428, 4294901760
        %2430 = vmatpush1.msra.mxu0 %v2429
        %v2431 = vand.u32 %v1390, 4294901760
        %v2432 = vsub.f32 %v1390, %v2431
        %v2433 = vand.u32 %v2432, 4294901760
        %2434 = vmatprep.subr.mxu0 %v2433
        %v2435 = vand.u32 %v1389, 4294901760
        %v2436 = vsub.f32 %v1389, %v2435
        %v2437 = vand.u32 %v2436, 4294901760
        %2438 = vmatpush1.msra.mxu0 %v2437
        %v2439 = vand.u32 %v1392, 4294901760
        %v2440 = vsub.f32 %v1392, %v2439
        %v2441 = vand.u32 %v2440, 4294901760
        %2442 = vmatprep.subr.mxu0 %v2441
        %v2443 = vand.u32 %v1391, 4294901760
        %v2444 = vsub.f32 %v1391, %v2443
        %v2445 = vand.u32 %v2444, 4294901760
        %2446 = vmatpush1.msra.mxu0 %v2445
        %v2447 = vand.u32 %v1394, 4294901760
        %v2448 = vsub.f32 %v1394, %v2447
        %v2449 = vand.u32 %v2448, 4294901760
        %2450 = vmatprep.subr.mxu0 %v2449
        %v2451 = vand.u32 %v1393, 4294901760
        %v2452 = vsub.f32 %v1393, %v2451
        %v2453 = vand.u32 %v2452, 4294901760
        %2454 = vmatpush1.msra.mxu0 %v2453
        %v2455 = vand.u32 %v1396, 4294901760
        %v2456 = vsub.f32 %v1396, %v2455
        %v2457 = vand.u32 %v2456, 4294901760
        %2458 = vmatprep.subr.mxu0 %v2457
        %v2459 = vand.u32 %v1395, 4294901760
        %v2460 = vsub.f32 %v1395, %v2459
        %v2461 = vand.u32 %v2460, 4294901760
        %2462 = vmatpush1.msra.mxu0 %v2461
        %v2463 = vand.u32 %v1398, 4294901760
        %v2464 = vsub.f32 %v1398, %v2463
        %v2465 = vand.u32 %v2464, 4294901760
        %2466 = vmatprep.subr.mxu0 %v2465
        %v2467 = vand.u32 %v1397, 4294901760
        %v2468 = vsub.f32 %v1397, %v2467
        %v2469 = vand.u32 %v2468, 4294901760
        %2470 = vmatpush1.msra.mxu0 %v2469
        %v2471 = vand.u32 %v1400, 4294901760
        %v2472 = vsub.f32 %v1400, %v2471
        %v2473 = vand.u32 %v2472, 4294901760
        %2474 = vmatprep.subr.mxu0 %v2473
        %v2475 = vand.u32 %v1399, 4294901760
        %v2476 = vsub.f32 %v1399, %v2475
        %v2477 = vand.u32 %v2476, 4294901760
        %2478 = vmatpush1.msra.mxu0 %v2477
        %v2479 = vand.u32 %v1402, 4294901760
        %v2480 = vsub.f32 %v1402, %v2479
        %v2481 = vand.u32 %v2480, 4294901760
        %2482 = vmatprep.subr.mxu0 %v2481
        %v2483 = vand.u32 %v1401, 4294901760
        %v2484 = vsub.f32 %v1401, %v2483
        %v2485 = vand.u32 %v2484, 4294901760
        %2486 = vmatpush1.msra.mxu0 %v2485
        %v2487 = vand.u32 %v1404, 4294901760
        %v2488 = vsub.f32 %v1404, %v2487
        %v2489 = vand.u32 %v2488, 4294901760
        %2490 = vmatprep.subr.mxu0 %v2489
        %v2491 = vand.u32 %v1403, 4294901760
        %v2492 = vsub.f32 %v1403, %v2491
        %v2493 = vand.u32 %v2492, 4294901760
        %2494 = vmatpush1.msra.mxu0 %v2493
        %v2495 = vand.u32 %v1406, 4294901760
        %v2496 = vsub.f32 %v1406, %v2495
        %v2497 = vand.u32 %v2496, 4294901760
        %2498 = vmatprep.subr.mxu0 %v2497
        %v2499 = vand.u32 %v1405, 4294901760
        %v2500 = vsub.f32 %v1405, %v2499
        %v2501 = vand.u32 %v2500, 4294901760
        %2502 = vmatpush1.msra.mxu0 %v2501
        %v2503 = vand.u32 %v1408, 4294901760
        %v2504 = vsub.f32 %v1408, %v2503
        %v2505 = vand.u32 %v2504, 4294901760
        %2506 = vmatprep.subr.mxu0 %v2505
        %v2507 = vand.u32 %v1407, 4294901760
        %v2508 = vsub.f32 %v1407, %v2507
        %v2509 = vand.u32 %v2508, 4294901760
        %2510 = vmatpush1.msra.mxu0 %v2509
        %v2511 = vand.u32 %v1410, 4294901760
        %v2512 = vsub.f32 %v1410, %v2511
        %v2513 = vand.u32 %v2512, 4294901760
        %2514 = vmatprep.subr.mxu0 %v2513
        %v2515 = vand.u32 %v1409, 4294901760
        %v2516 = vsub.f32 %v1409, %v2515
        %v2517 = vand.u32 %v2516, 4294901760
        %2518 = vmatpush1.msra.mxu0 %v2517
        %v2519 = vand.u32 %v1412, 4294901760
        %v2520 = vsub.f32 %v1412, %v2519
        %v2521 = vand.u32 %v2520, 4294901760
        %2522 = vmatprep.subr.mxu0 %v2521
        %v2523 = vand.u32 %v1411, 4294901760
        %v2524 = vsub.f32 %v1411, %v2523
        %v2525 = vand.u32 %v2524, 4294901760
        %2526 = vmatpush1.msra.mxu0 %v2525
        %v2527 = vand.u32 %v1414, 4294901760
        %v2528 = vsub.f32 %v1414, %v2527
        %v2529 = vand.u32 %v2528, 4294901760
        %2530 = vmatprep.subr.mxu0 %v2529
        %v2531 = vand.u32 %v1413, 4294901760
        %v2532 = vsub.f32 %v1413, %v2531
        %v2533 = vand.u32 %v2532, 4294901760
        %2534 = vmatpush1.msra.mxu0 %v2533
        %v2535 = vand.u32 %v1416, 4294901760
        %v2536 = vsub.f32 %v1416, %v2535
        %v2537 = vand.u32 %v2536, 4294901760
        %2538 = vmatprep.subr.mxu0 %v2537
        %v2539 = vand.u32 %v1415, 4294901760
        %v2540 = vsub.f32 %v1415, %v2539
        %v2541 = vand.u32 %v2540, 4294901760
        %2542 = vmatpush1.msra.mxu0 %v2541
        %v2543 = vand.u32 %v1418, 4294901760
        %v2544 = vsub.f32 %v1418, %v2543
        %v2545 = vand.u32 %v2544, 4294901760
        %2546 = vmatprep.subr.mxu0 %v2545
        %v2547 = vand.u32 %v1417, 4294901760
        %v2548 = vsub.f32 %v1417, %v2547
        %v2549 = vand.u32 %v2548, 4294901760
        %2550 = vmatpush1.msra.mxu0 %v2549
        %v2551 = vand.u32 %v1420, 4294901760
        %v2552 = vsub.f32 %v1420, %v2551
        %v2553 = vand.u32 %v2552, 4294901760
        %2554 = vmatprep.subr.mxu0 %v2553
        %v2555 = vand.u32 %v1419, 4294901760
        %v2556 = vsub.f32 %v1419, %v2555
        %v2557 = vand.u32 %v2556, 4294901760
        %2558 = vmatpush1.msra.mxu0 %v2557
        %v2559 = vand.u32 %v1422, 4294901760
        %v2560 = vsub.f32 %v1422, %v2559
        %v2561 = vand.u32 %v2560, 4294901760
        %2562 = vmatprep.subr.mxu0 %v2561
        %v2563 = vand.u32 %v1421, 4294901760
        %v2564 = vsub.f32 %v1421, %v2563
        %v2565 = vand.u32 %v2564, 4294901760
        %2566 = vmatpush1.msra.mxu0 %v2565
        %v2567 = vand.u32 %v1424, 4294901760
        %v2568 = vsub.f32 %v1424, %v2567
        %v2569 = vand.u32 %v2568, 4294901760
        %2570 = vmatprep.subr.mxu0 %v2569
        %v2571 = vand.u32 %v1423, 4294901760
        %v2572 = vsub.f32 %v1423, %v2571
        %v2573 = vand.u32 %v2572, 4294901760
        %2574 = vmatpush1.msra.mxu0 %v2573
        %v2575 = vand.u32 %v1426, 4294901760
        %v2576 = vsub.f32 %v1426, %v2575
        %v2577 = vand.u32 %v2576, 4294901760
        %2578 = vmatprep.subr.mxu0 %v2577
        %v2579 = vand.u32 %v1425, 4294901760
        %v2580 = vsub.f32 %v1425, %v2579
        %v2581 = vand.u32 %v2580, 4294901760
        %2582 = vmatpush1.msra.mxu0 %v2581
        %v2583 = vand.u32 %v1428, 4294901760
        %v2584 = vsub.f32 %v1428, %v2583
        %v2585 = vand.u32 %v2584, 4294901760
        %2586 = vmatprep.subr.mxu0 %v2585
        %v2587 = vand.u32 %v1427, 4294901760
        %v2588 = vsub.f32 %v1427, %v2587
        %v2589 = vand.u32 %v2588, 4294901760
        %2590 = vmatpush1.msra.mxu0 %v2589
        %v2591 = vand.u32 %v1430, 4294901760
        %v2592 = vsub.f32 %v1430, %v2591
        %v2593 = vand.u32 %v2592, 4294901760
        %2594 = vmatprep.subr.mxu0 %v2593
        %v2595 = vand.u32 %v1429, 4294901760
        %v2596 = vsub.f32 %v1429, %v2595
        %v2597 = vand.u32 %v2596, 4294901760
        %2598 = vmatpush1.msra.mxu0 %v2597
        %v2599 = vand.u32 %v1432, 4294901760
        %v2600 = vsub.f32 %v1432, %v2599
        %v2601 = vand.u32 %v2600, 4294901760
        %2602 = vmatprep.subr.mxu0 %v2601
        %v2603 = vand.u32 %v1431, 4294901760
        %v2604 = vsub.f32 %v1431, %v2603
        %v2605 = vand.u32 %v2604, 4294901760
        %2606 = vmatpush1.msra.mxu0 %v2605
        %v2607 = vand.u32 %v1434, 4294901760
        %v2608 = vsub.f32 %v1434, %v2607
        %v2609 = vand.u32 %v2608, 4294901760
        %2610 = vmatprep.subr.mxu0 %v2609
        %v2611 = vand.u32 %v1433, 4294901760
        %v2612 = vsub.f32 %v1433, %v2611
        %v2613 = vand.u32 %v2612, 4294901760
        %2614 = vmatpush1.msra.mxu0 %v2613
        %v2615 = vand.u32 %v1436, 4294901760
        %v2616 = vsub.f32 %v1436, %v2615
        %v2617 = vand.u32 %v2616, 4294901760
        %2618 = vmatprep.subr.mxu0 %v2617
        %v2619 = vand.u32 %v1435, 4294901760
        %v2620 = vsub.f32 %v1435, %v2619
        %v2621 = vand.u32 %v2620, 4294901760
        %2622 = vmatpush1.msra.mxu0 %v2621
        %v2623 = vand.u32 %v1438, 4294901760
        %v2624 = vsub.f32 %v1438, %v2623
        %v2625 = vand.u32 %v2624, 4294901760
        %2626 = vmatprep.subr.mxu0 %v2625
        %v2627 = vand.u32 %v1437, 4294901760
        %v2628 = vsub.f32 %v1437, %v2627
        %v2629 = vand.u32 %v2628, 4294901760
        %2630 = vmatpush1.msra.mxu0 %v2629
        %v2631 = vand.u32 %v1440, 4294901760
        %v2632 = vsub.f32 %v1440, %v2631
        %v2633 = vand.u32 %v2632, 4294901760
        %2634 = vmatprep.subr.mxu0 %v2633
        %v2635 = vand.u32 %v1439, 4294901760
        %v2636 = vsub.f32 %v1439, %v2635
        %v2637 = vand.u32 %v2636, 4294901760
        %2638 = vmatpush1.msra.mxu0 %v2637
        %v2639 = vand.u32 %v1442, 4294901760
        %v2640 = vsub.f32 %v1442, %v2639
        %v2641 = vand.u32 %v2640, 4294901760
        %2642 = vmatprep.subr.mxu0 %v2641
        %v2643 = vand.u32 %v1441, 4294901760
        %v2644 = vsub.f32 %v1441, %v2643
        %v2645 = vand.u32 %v2644, 4294901760
        %2646 = vmatpush1.msra.mxu0 %v2645
        %v2647 = vand.u32 %v1360, 4294901760
        %2648 = vmatprep.mubr.f32.mxu0 %v2647
        %v2649 = vand.u32 %v1359, 4294901760
        %2650 = vmatmul.mubr.f32.gmra.mrb[0].mxu0 %v2649
        %v2651 = vpop.f32.mrb[0].mxu0
        %v2652 = vadd.f32 %v2387, %v2651
        %v2653 = vpop.f32.mrb[0].mxu0
        %v2654 = vadd.f32 %v2389, %v2653
        %2655 = vdwg.mxu0
        %v2656 = vand.u32 %v1380, 4294901760
        %2657 = vmatprep.subr.mxu0 %v2656
        %v2658 = vand.u32 %v1379, 4294901760
        %2659 = vmatpush1.msra.mxu0 %v2658
        %v2660 = vand.u32 %v1382, 4294901760
        %2661 = vmatprep.subr.mxu0 %v2660
        %v2662 = vand.u32 %v1381, 4294901760
        %2663 = vmatpush1.msra.mxu0 %v2662
        %v2664 = vand.u32 %v1384, 4294901760
        %2665 = vmatprep.subr.mxu0 %v2664
        %v2666 = vand.u32 %v1383, 4294901760
        %2667 = vmatpush1.msra.mxu0 %v2666
        %v2668 = vand.u32 %v1386, 4294901760
        %2669 = vmatprep.subr.mxu0 %v2668
        %v2670 = vand.u32 %v1385, 4294901760
        %2671 = vmatpush1.msra.mxu0 %v2670
        %v2672 = vand.u32 %v1388, 4294901760
        %2673 = vmatprep.subr.mxu0 %v2672
        %v2674 = vand.u32 %v1387, 4294901760
        %2675 = vmatpush1.msra.mxu0 %v2674
        %v2676 = vand.u32 %v1390, 4294901760
        %2677 = vmatprep.subr.mxu0 %v2676
        %v2678 = vand.u32 %v1389, 4294901760
        %2679 = vmatpush1.msra.mxu0 %v2678
        %v2680 = vand.u32 %v1392, 4294901760
        %2681 = vmatprep.subr.mxu0 %v2680
        %v2682 = vand.u32 %v1391, 4294901760
        %2683 = vmatpush1.msra.mxu0 %v2682
        %v2684 = vand.u32 %v1394, 4294901760
        %2685 = vmatprep.subr.mxu0 %v2684
        %v2686 = vand.u32 %v1393, 4294901760
        %2687 = vmatpush1.msra.mxu0 %v2686
        %v2688 = vand.u32 %v1396, 4294901760
        %2689 = vmatprep.subr.mxu0 %v2688
        %v2690 = vand.u32 %v1395, 4294901760
        %2691 = vmatpush1.msra.mxu0 %v2690
        %v2692 = vand.u32 %v1398, 4294901760
        %2693 = vmatprep.subr.mxu0 %v2692
        %v2694 = vand.u32 %v1397, 4294901760
        %2695 = vmatpush1.msra.mxu0 %v2694
        %v2696 = vand.u32 %v1400, 4294901760
        %2697 = vmatprep.subr.mxu0 %v2696
        %v2698 = vand.u32 %v1399, 4294901760
        %2699 = vmatpush1.msra.mxu0 %v2698
        %v2700 = vand.u32 %v1402, 4294901760
        %2701 = vmatprep.subr.mxu0 %v2700
        %v2702 = vand.u32 %v1401, 4294901760
        %2703 = vmatpush1.msra.mxu0 %v2702
        %v2704 = vand.u32 %v1404, 4294901760
        %2705 = vmatprep.subr.mxu0 %v2704
        %v2706 = vand.u32 %v1403, 4294901760
        %2707 = vmatpush1.msra.mxu0 %v2706
        %v2708 = vand.u32 %v1406, 4294901760
        %2709 = vmatprep.subr.mxu0 %v2708
        %v2710 = vand.u32 %v1405, 4294901760
        %2711 = vmatpush1.msra.mxu0 %v2710
        %v2712 = vand.u32 %v1408, 4294901760
        %2713 = vmatprep.subr.mxu0 %v2712
        %v2714 = vand.u32 %v1407, 4294901760
        %2715 = vmatpush1.msra.mxu0 %v2714
        %v2716 = vand.u32 %v1410, 4294901760
        %2717 = vmatprep.subr.mxu0 %v2716
        %v2718 = vand.u32 %v1409, 4294901760
        %2719 = vmatpush1.msra.mxu0 %v2718
        %v2720 = vand.u32 %v1412, 4294901760
        %2721 = vmatprep.subr.mxu0 %v2720
        %v2722 = vand.u32 %v1411, 4294901760
        %2723 = vmatpush1.msra.mxu0 %v2722
        %v2724 = vand.u32 %v1414, 4294901760
        %2725 = vmatprep.subr.mxu0 %v2724
        %v2726 = vand.u32 %v1413, 4294901760
        %2727 = vmatpush1.msra.mxu0 %v2726
        %v2728 = vand.u32 %v1416, 4294901760
        %2729 = vmatprep.subr.mxu0 %v2728
        %v2730 = vand.u32 %v1415, 4294901760
        %2731 = vmatpush1.msra.mxu0 %v2730
        %v2732 = vand.u32 %v1418, 4294901760
        %2733 = vmatprep.subr.mxu0 %v2732
        %v2734 = vand.u32 %v1417, 4294901760
        %2735 = vmatpush1.msra.mxu0 %v2734
        %v2736 = vand.u32 %v1420, 4294901760
        %2737 = vmatprep.subr.mxu0 %v2736
        %v2738 = vand.u32 %v1419, 4294901760
        %2739 = vmatpush1.msra.mxu0 %v2738
        %v2740 = vand.u32 %v1422, 4294901760
        %2741 = vmatprep.subr.mxu0 %v2740
        %v2742 = vand.u32 %v1421, 4294901760
        %2743 = vmatpush1.msra.mxu0 %v2742
        %v2744 = vand.u32 %v1424, 4294901760
        %2745 = vmatprep.subr.mxu0 %v2744
        %v2746 = vand.u32 %v1423, 4294901760
        %2747 = vmatpush1.msra.mxu0 %v2746
        %v2748 = vand.u32 %v1426, 4294901760
        %2749 = vmatprep.subr.mxu0 %v2748
        %v2750 = vand.u32 %v1425, 4294901760
        %2751 = vmatpush1.msra.mxu0 %v2750
        %v2752 = vand.u32 %v1428, 4294901760
        %2753 = vmatprep.subr.mxu0 %v2752
        %v2754 = vand.u32 %v1427, 4294901760
        %2755 = vmatpush1.msra.mxu0 %v2754
        %v2756 = vand.u32 %v1430, 4294901760
        %2757 = vmatprep.subr.mxu0 %v2756
        %v2758 = vand.u32 %v1429, 4294901760
        %2759 = vmatpush1.msra.mxu0 %v2758
        %v2760 = vand.u32 %v1432, 4294901760
        %2761 = vmatprep.subr.mxu0 %v2760
        %v2762 = vand.u32 %v1431, 4294901760
        %2763 = vmatpush1.msra.mxu0 %v2762
        %v2764 = vand.u32 %v1434, 4294901760
        %2765 = vmatprep.subr.mxu0 %v2764
        %v2766 = vand.u32 %v1433, 4294901760
        %2767 = vmatpush1.msra.mxu0 %v2766
        %v2768 = vand.u32 %v1436, 4294901760
        %2769 = vmatprep.subr.mxu0 %v2768
        %v2770 = vand.u32 %v1435, 4294901760
        %2771 = vmatpush1.msra.mxu0 %v2770
        %v2772 = vand.u32 %v1438, 4294901760
        %2773 = vmatprep.subr.mxu0 %v2772
        %v2774 = vand.u32 %v1437, 4294901760
        %2775 = vmatpush1.msra.mxu0 %v2774
        %v2776 = vand.u32 %v1440, 4294901760
        %2777 = vmatprep.subr.mxu0 %v2776
        %v2778 = vand.u32 %v1439, 4294901760
        %2779 = vmatpush1.msra.mxu0 %v2778
        %v2780 = vand.u32 %v1442, 4294901760
        %2781 = vmatprep.subr.mxu0 %v2780
        %v2782 = vand.u32 %v1441, 4294901760
        %2783 = vmatpush1.msra.mxu0 %v2782
        %v2784 = vand.u32 %v1360, 4294901760
        %2785 = vmatprep.mubr.f32.mxu0 %v2784
        %v2786 = vand.u32 %v1359, 4294901760
        %2787 = vmatmul.mubr.f32.gmra.mrb[0].mxu0 %v2786
        %v2788 = vpop.f32.mrb[0].mxu0
        %v2789 = vadd.f32 %v2652, %v2788
        %v2790 = vpop.f32.mrb[0].mxu0
        %v2791 = vadd.f32 %v2654, %v2790
        %2792 = vdwg.mxu0
        %v2793 = vand.u32 %v1444, 4294901760
        %2794 = vmatprep.subr.mxu0 %v2793
        %v2795 = vand.u32 %v1443, 4294901760
        %2796 = vmatpush1.msra.mxu0 %v2795
        %v2797 = vand.u32 %v1446, 4294901760
        %2798 = vmatprep.subr.mxu0 %v2797
        %v2799 = vand.u32 %v1445, 4294901760
        %2800 = vmatpush1.msra.mxu0 %v2799
        %v2801 = vand.u32 %v1448, 4294901760
        %2802 = vmatprep.subr.mxu0 %v2801
        %v2803 = vand.u32 %v1447, 4294901760
        %2804 = vmatpush1.msra.mxu0 %v2803
        %v2805 = vand.u32 %v1450, 4294901760
        %2806 = vmatprep.subr.mxu0 %v2805
        %v2807 = vand.u32 %v1449, 4294901760
        %2808 = vmatpush1.msra.mxu0 %v2807
        %v2809 = vand.u32 %v1452, 4294901760
        %2810 = vmatprep.subr.mxu0 %v2809
        %v2811 = vand.u32 %v1451, 4294901760
        %2812 = vmatpush1.msra.mxu0 %v2811
        %v2813 = vand.u32 %v1454, 4294901760
        %2814 = vmatprep.subr.mxu0 %v2813
        %v2815 = vand.u32 %v1453, 4294901760
        %2816 = vmatpush1.msra.mxu0 %v2815
        %v2817 = vand.u32 %v1456, 4294901760
        %2818 = vmatprep.subr.mxu0 %v2817
        %v2819 = vand.u32 %v1455, 4294901760
        %2820 = vmatpush1.msra.mxu0 %v2819
        %v2821 = vand.u32 %v1458, 4294901760
        %2822 = vmatprep.subr.mxu0 %v2821
        %v2823 = vand.u32 %v1457, 4294901760
        %2824 = vmatpush1.msra.mxu0 %v2823
        %v2825 = vand.u32 %v1460, 4294901760
        %2826 = vmatprep.subr.mxu0 %v2825
        %v2827 = vand.u32 %v1459, 4294901760
        %2828 = vmatpush1.msra.mxu0 %v2827
        %v2829 = vand.u32 %v1462, 4294901760
        %2830 = vmatprep.subr.mxu0 %v2829
        %v2831 = vand.u32 %v1461, 4294901760
        %2832 = vmatpush1.msra.mxu0 %v2831
        %v2833 = vand.u32 %v1464, 4294901760
        %2834 = vmatprep.subr.mxu0 %v2833
        %v2835 = vand.u32 %v1463, 4294901760
        %2836 = vmatpush1.msra.mxu0 %v2835
        %v2837 = vand.u32 %v1466, 4294901760
        %2838 = vmatprep.subr.mxu0 %v2837
        %v2839 = vand.u32 %v1465, 4294901760
        %2840 = vmatpush1.msra.mxu0 %v2839
        %v2841 = vand.u32 %v1468, 4294901760
        %2842 = vmatprep.subr.mxu0 %v2841
        %v2843 = vand.u32 %v1467, 4294901760
        %2844 = vmatpush1.msra.mxu0 %v2843
        %v2845 = vand.u32 %v1470, 4294901760
        %2846 = vmatprep.subr.mxu0 %v2845
        %v2847 = vand.u32 %v1469, 4294901760
        %2848 = vmatpush1.msra.mxu0 %v2847
        %v2849 = vand.u32 %v1472, 4294901760
        %2850 = vmatprep.subr.mxu0 %v2849
        %v2851 = vand.u32 %v1471, 4294901760
        %2852 = vmatpush1.msra.mxu0 %v2851
        %v2853 = vand.u32 %v1474, 4294901760
        %2854 = vmatprep.subr.mxu0 %v2853
        %v2855 = vand.u32 %v1473, 4294901760
        %2856 = vmatpush1.msra.mxu0 %v2855
        %v2857 = vand.u32 %v1476, 4294901760
        %2858 = vmatprep.subr.mxu0 %v2857
        %v2859 = vand.u32 %v1475, 4294901760
        %2860 = vmatpush1.msra.mxu0 %v2859
        %v2861 = vand.u32 %v1478, 4294901760
        %2862 = vmatprep.subr.mxu0 %v2861
        %v2863 = vand.u32 %v1477, 4294901760
        %2864 = vmatpush1.msra.mxu0 %v2863
        %v2865 = vand.u32 %v1480, 4294901760
        %2866 = vmatprep.subr.mxu0 %v2865
        %v2867 = vand.u32 %v1479, 4294901760
        %2868 = vmatpush1.msra.mxu0 %v2867
        %v2869 = vand.u32 %v1482, 4294901760
        %2870 = vmatprep.subr.mxu0 %v2869
        %v2871 = vand.u32 %v1481, 4294901760
        %2872 = vmatpush1.msra.mxu0 %v2871
        %v2873 = vand.u32 %v1484, 4294901760
        %2874 = vmatprep.subr.mxu0 %v2873
        %v2875 = vand.u32 %v1483, 4294901760
        %2876 = vmatpush1.msra.mxu0 %v2875
        %v2877 = vand.u32 %v1486, 4294901760
        %2878 = vmatprep.subr.mxu0 %v2877
        %v2879 = vand.u32 %v1485, 4294901760
        %2880 = vmatpush1.msra.mxu0 %v2879
        %v2881 = vand.u32 %v1488, 4294901760
        %2882 = vmatprep.subr.mxu0 %v2881
        %v2883 = vand.u32 %v1487, 4294901760
        %2884 = vmatpush1.msra.mxu0 %v2883
        %v2885 = vand.u32 %v1490, 4294901760
        %2886 = vmatprep.subr.mxu0 %v2885
        %v2887 = vand.u32 %v1489, 4294901760
        %2888 = vmatpush1.msra.mxu0 %v2887
        %v2889 = vand.u32 %v1492, 4294901760
        %2890 = vmatprep.subr.mxu0 %v2889
        %v2891 = vand.u32 %v1491, 4294901760
        %2892 = vmatpush1.msra.mxu0 %v2891
        %v2893 = vand.u32 %v1494, 4294901760
        %2894 = vmatprep.subr.mxu0 %v2893
        %v2895 = vand.u32 %v1493, 4294901760
        %2896 = vmatpush1.msra.mxu0 %v2895
        %v2897 = vand.u32 %v1496, 4294901760
        %2898 = vmatprep.subr.mxu0 %v2897
        %v2899 = vand.u32 %v1495, 4294901760
        %2900 = vmatpush1.msra.mxu0 %v2899
        %v2901 = vand.u32 %v1498, 4294901760
        %2902 = vmatprep.subr.mxu0 %v2901
        %v2903 = vand.u32 %v1497, 4294901760
        %2904 = vmatpush1.msra.mxu0 %v2903
        %v2905 = vand.u32 %v1500, 4294901760
        %2906 = vmatprep.subr.mxu0 %v2905
        %v2907 = vand.u32 %v1499, 4294901760
        %2908 = vmatpush1.msra.mxu0 %v2907
        %v2909 = vand.u32 %v1502, 4294901760
        %2910 = vmatprep.subr.mxu0 %v2909
        %v2911 = vand.u32 %v1501, 4294901760
        %2912 = vmatpush1.msra.mxu0 %v2911
        %v2913 = vand.u32 %v1504, 4294901760
        %2914 = vmatprep.subr.mxu0 %v2913
        %v2915 = vand.u32 %v1503, 4294901760
        %2916 = vmatpush1.msra.mxu0 %v2915
        %v2917 = vand.u32 %v1506, 4294901760
        %2918 = vmatprep.subr.mxu0 %v2917
        %v2919 = vand.u32 %v1505, 4294901760
        %2920 = vmatpush1.msra.mxu0 %v2919
        %v2921 = vand.u32 %v1378, 4294901760
        %v2922 = vsub.f32 %v1378, %v2921
        %v2923 = vand.u32 %v2922, 4294901760
        %v2924 = vsub.f32 %v2922, %v2923
        %v2925 = vand.u32 %v2924, 4294901760
        %2926 = vmatprep.mubr.f32.mxu0 %v2925
        %v2927 = vand.u32 %v1369, 4294901760
        %v2928 = vsub.f32 %v1369, %v2927
        %v2929 = vand.u32 %v2928, 4294901760
        %v2930 = vsub.f32 %v2928, %v2929
        %v2931 = vand.u32 %v2930, 4294901760
        %2932 = vmatmul.mubr.f32.gmra.mrb[0].mxu0 %v2931
        %v2933 = vpop.f32.mrb[0].mxu0
        %v2934 = vadd.f32 %v2789, %v2933
        %v2935 = vpop.f32.mrb[0].mxu0
        %v2936 = vadd.f32 %v2791, %v2935
        %2937 = vdwg.mxu0
        %v2938 = vand.u32 %v1444, 4294901760
        %v2939 = vsub.f32 %v1444, %v2938
        %v2940 = vand.u32 %v2939, 4294901760
        %v2941 = vsub.f32 %v2939, %v2940
        %v2942 = vand.u32 %v2941, 4294901760
        %2943 = vmatprep.subr.mxu0 %v2942
        %v2944 = vand.u32 %v1443, 4294901760
        %v2945 = vsub.f32 %v1443, %v2944
        %v2946 = vand.u32 %v2945, 4294901760
        %v2947 = vsub.f32 %v2945, %v2946
        %v2948 = vand.u32 %v2947, 4294901760
        %2949 = vmatpush1.msra.mxu0 %v2948
        %v2950 = vand.u32 %v1446, 4294901760
        %v2951 = vsub.f32 %v1446, %v2950
        %v2952 = vand.u32 %v2951, 4294901760
        %v2953 = vsub.f32 %v2951, %v2952
        %v2954 = vand.u32 %v2953, 4294901760
        %2955 = vmatprep.subr.mxu0 %v2954
        %v2956 = vand.u32 %v1445, 4294901760
        %v2957 = vsub.f32 %v1445, %v2956
        %v2958 = vand.u32 %v2957, 4294901760
        %v2959 = vsub.f32 %v2957, %v2958
        %v2960 = vand.u32 %v2959, 4294901760
        %2961 = vmatpush1.msra.mxu0 %v2960
        %v2962 = vand.u32 %v1448, 4294901760
        %v2963 = vsub.f32 %v1448, %v2962
        %v2964 = vand.u32 %v2963, 4294901760
        %v2965 = vsub.f32 %v2963, %v2964
        %v2966 = vand.u32 %v2965, 4294901760
        %2967 = vmatprep.subr.mxu0 %v2966
        %v2968 = vand.u32 %v1447, 4294901760
        %v2969 = vsub.f32 %v1447, %v2968
        %v2970 = vand.u32 %v2969, 4294901760
        %v2971 = vsub.f32 %v2969, %v2970
        %v2972 = vand.u32 %v2971, 4294901760
        %2973 = vmatpush1.msra.mxu0 %v2972
        %v2974 = vand.u32 %v1450, 4294901760
        %v2975 = vsub.f32 %v1450, %v2974
        %v2976 = vand.u32 %v2975, 4294901760
        %v2977 = vsub.f32 %v2975, %v2976
        %v2978 = vand.u32 %v2977, 4294901760
        %2979 = vmatprep.subr.mxu0 %v2978
        %v2980 = vand.u32 %v1449, 4294901760
        %v2981 = vsub.f32 %v1449, %v2980
        %v2982 = vand.u32 %v2981, 4294901760
        %v2983 = vsub.f32 %v2981, %v2982
        %v2984 = vand.u32 %v2983, 4294901760
        %2985 = vmatpush1.msra.mxu0 %v2984
        %v2986 = vand.u32 %v1452, 4294901760
        %v2987 = vsub.f32 %v1452, %v2986
        %v2988 = vand.u32 %v2987, 4294901760
        %v2989 = vsub.f32 %v2987, %v2988
        %v2990 = vand.u32 %v2989, 4294901760
        %2991 = vmatprep.subr.mxu0 %v2990
        %v2992 = vand.u32 %v1451, 4294901760
        %v2993 = vsub.f32 %v1451, %v2992
        %v2994 = vand.u32 %v2993, 4294901760
        %v2995 = vsub.f32 %v2993, %v2994
        %v2996 = vand.u32 %v2995, 4294901760
        %2997 = vmatpush1.msra.mxu0 %v2996
        %v2998 = vand.u32 %v1454, 4294901760
        %v2999 = vsub.f32 %v1454, %v2998
        %v3000 = vand.u32 %v2999, 4294901760
        %v3001 = vsub.f32 %v2999, %v3000
        %v3002 = vand.u32 %v3001, 4294901760
        %3003 = vmatprep.subr.mxu0 %v3002
        %v3004 = vand.u32 %v1453, 4294901760
        %v3005 = vsub.f32 %v1453, %v3004
        %v3006 = vand.u32 %v3005, 4294901760
        %v3007 = vsub.f32 %v3005, %v3006
        %v3008 = vand.u32 %v3007, 4294901760
        %3009 = vmatpush1.msra.mxu0 %v3008
        %v3010 = vand.u32 %v1456, 4294901760
        %v3011 = vsub.f32 %v1456, %v3010
        %v3012 = vand.u32 %v3011, 4294901760
        %v3013 = vsub.f32 %v3011, %v3012
        %v3014 = vand.u32 %v3013, 4294901760
        %3015 = vmatprep.subr.mxu0 %v3014
        %v3016 = vand.u32 %v1455, 4294901760
        %v3017 = vsub.f32 %v1455, %v3016
        %v3018 = vand.u32 %v3017, 4294901760
        %v3019 = vsub.f32 %v3017, %v3018
        %v3020 = vand.u32 %v3019, 4294901760
        %3021 = vmatpush1.msra.mxu0 %v3020
        %v3022 = vand.u32 %v1458, 4294901760
        %v3023 = vsub.f32 %v1458, %v3022
        %v3024 = vand.u32 %v3023, 4294901760
        %v3025 = vsub.f32 %v3023, %v3024
        %v3026 = vand.u32 %v3025, 4294901760
        %3027 = vmatprep.subr.mxu0 %v3026
        %v3028 = vand.u32 %v1457, 4294901760
        %v3029 = vsub.f32 %v1457, %v3028
        %v3030 = vand.u32 %v3029, 4294901760
        %v3031 = vsub.f32 %v3029, %v3030
        %v3032 = vand.u32 %v3031, 4294901760
        %3033 = vmatpush1.msra.mxu0 %v3032
        %v3034 = vand.u32 %v1460, 4294901760
        %v3035 = vsub.f32 %v1460, %v3034
        %v3036 = vand.u32 %v3035, 4294901760
        %v3037 = vsub.f32 %v3035, %v3036
        %v3038 = vand.u32 %v3037, 4294901760
        %3039 = vmatprep.subr.mxu0 %v3038
        %v3040 = vand.u32 %v1459, 4294901760
        %v3041 = vsub.f32 %v1459, %v3040
        %v3042 = vand.u32 %v3041, 4294901760
        %v3043 = vsub.f32 %v3041, %v3042
        %v3044 = vand.u32 %v3043, 4294901760
        %3045 = vmatpush1.msra.mxu0 %v3044
        %v3046 = vand.u32 %v1462, 4294901760
        %v3047 = vsub.f32 %v1462, %v3046
        %v3048 = vand.u32 %v3047, 4294901760
        %v3049 = vsub.f32 %v3047, %v3048
        %v3050 = vand.u32 %v3049, 4294901760
        %3051 = vmatprep.subr.mxu0 %v3050
        %v3052 = vand.u32 %v1461, 4294901760
        %v3053 = vsub.f32 %v1461, %v3052
        %v3054 = vand.u32 %v3053, 4294901760
        %v3055 = vsub.f32 %v3053, %v3054
        %v3056 = vand.u32 %v3055, 4294901760
        %3057 = vmatpush1.msra.mxu0 %v3056
        %v3058 = vand.u32 %v1464, 4294901760
        %v3059 = vsub.f32 %v1464, %v3058
        %v3060 = vand.u32 %v3059, 4294901760
        %v3061 = vsub.f32 %v3059, %v3060
        %v3062 = vand.u32 %v3061, 4294901760
        %3063 = vmatprep.subr.mxu0 %v3062
        %v3064 = vand.u32 %v1463, 4294901760
        %v3065 = vsub.f32 %v1463, %v3064
        %v3066 = vand.u32 %v3065, 4294901760
        %v3067 = vsub.f32 %v3065, %v3066
        %v3068 = vand.u32 %v3067, 4294901760
        %3069 = vmatpush1.msra.mxu0 %v3068
        %v3070 = vand.u32 %v1466, 4294901760
        %v3071 = vsub.f32 %v1466, %v3070
        %v3072 = vand.u32 %v3071, 4294901760
        %v3073 = vsub.f32 %v3071, %v3072
        %v3074 = vand.u32 %v3073, 4294901760
        %3075 = vmatprep.subr.mxu0 %v3074
        %v3076 = vand.u32 %v1465, 4294901760
        %v3077 = vsub.f32 %v1465, %v3076
        %v3078 = vand.u32 %v3077, 4294901760
        %v3079 = vsub.f32 %v3077, %v3078
        %v3080 = vand.u32 %v3079, 4294901760
        %3081 = vmatpush1.msra.mxu0 %v3080
        %v3082 = vand.u32 %v1468, 4294901760
        %v3083 = vsub.f32 %v1468, %v3082
        %v3084 = vand.u32 %v3083, 4294901760
        %v3085 = vsub.f32 %v3083, %v3084
        %v3086 = vand.u32 %v3085, 4294901760
        %3087 = vmatprep.subr.mxu0 %v3086
        %v3088 = vand.u32 %v1467, 4294901760
        %v3089 = vsub.f32 %v1467, %v3088
        %v3090 = vand.u32 %v3089, 4294901760
        %v3091 = vsub.f32 %v3089, %v3090
        %v3092 = vand.u32 %v3091, 4294901760
        %3093 = vmatpush1.msra.mxu0 %v3092
        %v3094 = vand.u32 %v1470, 4294901760
        %v3095 = vsub.f32 %v1470, %v3094
        %v3096 = vand.u32 %v3095, 4294901760
        %v3097 = vsub.f32 %v3095, %v3096
        %v3098 = vand.u32 %v3097, 4294901760
        %3099 = vmatprep.subr.mxu0 %v3098
        %v3100 = vand.u32 %v1469, 4294901760
        %v3101 = vsub.f32 %v1469, %v3100
        %v3102 = vand.u32 %v3101, 4294901760
        %v3103 = vsub.f32 %v3101, %v3102
        %v3104 = vand.u32 %v3103, 4294901760
        %3105 = vmatpush1.msra.mxu0 %v3104
        %v3106 = vand.u32 %v1472, 4294901760
        %v3107 = vsub.f32 %v1472, %v3106
        %v3108 = vand.u32 %v3107, 4294901760
        %v3109 = vsub.f32 %v3107, %v3108
        %v3110 = vand.u32 %v3109, 4294901760
        %3111 = vmatprep.subr.mxu0 %v3110
        %v3112 = vand.u32 %v1471, 4294901760
        %v3113 = vsub.f32 %v1471, %v3112
        %v3114 = vand.u32 %v3113, 4294901760
        %v3115 = vsub.f32 %v3113, %v3114
        %v3116 = vand.u32 %v3115, 4294901760
        %3117 = vmatpush1.msra.mxu0 %v3116
        %v3118 = vand.u32 %v1474, 4294901760
        %v3119 = vsub.f32 %v1474, %v3118
        %v3120 = vand.u32 %v3119, 4294901760
        %v3121 = vsub.f32 %v3119, %v3120
        %v3122 = vand.u32 %v3121, 4294901760
        %3123 = vmatprep.subr.mxu0 %v3122
        %v3124 = vand.u32 %v1473, 4294901760
        %v3125 = vsub.f32 %v1473, %v3124
        %v3126 = vand.u32 %v3125, 4294901760
        %v3127 = vsub.f32 %v3125, %v3126
        %v3128 = vand.u32 %v3127, 4294901760
        %3129 = vmatpush1.msra.mxu0 %v3128
        %v3130 = vand.u32 %v1476, 4294901760
        %v3131 = vsub.f32 %v1476, %v3130
        %v3132 = vand.u32 %v3131, 4294901760
        %v3133 = vsub.f32 %v3131, %v3132
        %v3134 = vand.u32 %v3133, 4294901760
        %3135 = vmatprep.subr.mxu0 %v3134
        %v3136 = vand.u32 %v1475, 4294901760
        %v3137 = vsub.f32 %v1475, %v3136
        %v3138 = vand.u32 %v3137, 4294901760
        %v3139 = vsub.f32 %v3137, %v3138
        %v3140 = vand.u32 %v3139, 4294901760
        %3141 = vmatpush1.msra.mxu0 %v3140
        %v3142 = vand.u32 %v1478, 4294901760
        %v3143 = vsub.f32 %v1478, %v3142
        %v3144 = vand.u32 %v3143, 4294901760
        %v3145 = vsub.f32 %v3143, %v3144
        %v3146 = vand.u32 %v3145, 4294901760
        %3147 = vmatprep.subr.mxu0 %v3146
        %v3148 = vand.u32 %v1477, 4294901760
        %v3149 = vsub.f32 %v1477, %v3148
        %v3150 = vand.u32 %v3149, 4294901760
        %v3151 = vsub.f32 %v3149, %v3150
        %v3152 = vand.u32 %v3151, 4294901760
        %3153 = vmatpush1.msra.mxu0 %v3152
        %v3154 = vand.u32 %v1480, 4294901760
        %v3155 = vsub.f32 %v1480, %v3154
        %v3156 = vand.u32 %v3155, 4294901760
        %v3157 = vsub.f32 %v3155, %v3156
        %v3158 = vand.u32 %v3157, 4294901760
        %3159 = vmatprep.subr.mxu0 %v3158
        %v3160 = vand.u32 %v1479, 4294901760
        %v3161 = vsub.f32 %v1479, %v3160
        %v3162 = vand.u32 %v3161, 4294901760
        %v3163 = vsub.f32 %v3161, %v3162
        %v3164 = vand.u32 %v3163, 4294901760
        %3165 = vmatpush1.msra.mxu0 %v3164
        %v3166 = vand.u32 %v1482, 4294901760
        %v3167 = vsub.f32 %v1482, %v3166
        %v3168 = vand.u32 %v3167, 4294901760
        %v3169 = vsub.f32 %v3167, %v3168
        %v3170 = vand.u32 %v3169, 4294901760
        %3171 = vmatprep.subr.mxu0 %v3170
        %v3172 = vand.u32 %v1481, 4294901760
        %v3173 = vsub.f32 %v1481, %v3172
        %v3174 = vand.u32 %v3173, 4294901760
        %v3175 = vsub.f32 %v3173, %v3174
        %v3176 = vand.u32 %v3175, 4294901760
        %3177 = vmatpush1.msra.mxu0 %v3176
        %v3178 = vand.u32 %v1484, 4294901760
        %v3179 = vsub.f32 %v1484, %v3178
        %v3180 = vand.u32 %v3179, 4294901760
        %v3181 = vsub.f32 %v3179, %v3180
        %v3182 = vand.u32 %v3181, 4294901760
        %3183 = vmatprep.subr.mxu0 %v3182
        %v3184 = vand.u32 %v1483, 4294901760
        %v3185 = vsub.f32 %v1483, %v3184
        %v3186 = vand.u32 %v3185, 4294901760
        %v3187 = vsub.f32 %v3185, %v3186
        %v3188 = vand.u32 %v3187, 4294901760
        %3189 = vmatpush1.msra.mxu0 %v3188
        %v3190 = vand.u32 %v1486, 4294901760
        %v3191 = vsub.f32 %v1486, %v3190
        %v3192 = vand.u32 %v3191, 4294901760
        %v3193 = vsub.f32 %v3191, %v3192
        %v3194 = vand.u32 %v3193, 4294901760
        %3195 = vmatprep.subr.mxu0 %v3194
        %v3196 = vand.u32 %v1485, 4294901760
        %v3197 = vsub.f32 %v1485, %v3196
        %v3198 = vand.u32 %v3197, 4294901760
        %v3199 = vsub.f32 %v3197, %v3198
        %v3200 = vand.u32 %v3199, 4294901760
        %3201 = vmatpush1.msra.mxu0 %v3200
        %v3202 = vand.u32 %v1488, 4294901760
        %v3203 = vsub.f32 %v1488, %v3202
        %v3204 = vand.u32 %v3203, 4294901760
        %v3205 = vsub.f32 %v3203, %v3204
        %v3206 = vand.u32 %v3205, 4294901760
        %3207 = vmatprep.subr.mxu0 %v3206
        %v3208 = vand.u32 %v1487, 4294901760
        %v3209 = vsub.f32 %v1487, %v3208
        %v3210 = vand.u32 %v3209, 4294901760
        %v3211 = vsub.f32 %v3209, %v3210
        %v3212 = vand.u32 %v3211, 4294901760
        %3213 = vmatpush1.msra.mxu0 %v3212
        %v3214 = vand.u32 %v1490, 4294901760
        %v3215 = vsub.f32 %v1490, %v3214
        %v3216 = vand.u32 %v3215, 4294901760
        %v3217 = vsub.f32 %v3215, %v3216
        %v3218 = vand.u32 %v3217, 4294901760
        %3219 = vmatprep.subr.mxu0 %v3218
        %v3220 = vand.u32 %v1489, 4294901760
        %v3221 = vsub.f32 %v1489, %v3220
        %v3222 = vand.u32 %v3221, 4294901760
        %v3223 = vsub.f32 %v3221, %v3222
        %v3224 = vand.u32 %v3223, 4294901760
        %3225 = vmatpush1.msra.mxu0 %v3224
        %v3226 = vand.u32 %v1492, 4294901760
        %v3227 = vsub.f32 %v1492, %v3226
        %v3228 = vand.u32 %v3227, 4294901760
        %v3229 = vsub.f32 %v3227, %v3228
        %v3230 = vand.u32 %v3229, 4294901760
        %3231 = vmatprep.subr.mxu0 %v3230
        %v3232 = vand.u32 %v1491, 4294901760
        %v3233 = vsub.f32 %v1491, %v3232
        %v3234 = vand.u32 %v3233, 4294901760
        %v3235 = vsub.f32 %v3233, %v3234
        %v3236 = vand.u32 %v3235, 4294901760
        %3237 = vmatpush1.msra.mxu0 %v3236
        %v3238 = vand.u32 %v1494, 4294901760
        %v3239 = vsub.f32 %v1494, %v3238
        %v3240 = vand.u32 %v3239, 4294901760
        %v3241 = vsub.f32 %v3239, %v3240
        %v3242 = vand.u32 %v3241, 4294901760
        %3243 = vmatprep.subr.mxu0 %v3242
        %v3244 = vand.u32 %v1493, 4294901760
        %v3245 = vsub.f32 %v1493, %v3244
        %v3246 = vand.u32 %v3245, 4294901760
        %v3247 = vsub.f32 %v3245, %v3246
        %v3248 = vand.u32 %v3247, 4294901760
        %3249 = vmatpush1.msra.mxu0 %v3248
        %v3250 = vand.u32 %v1496, 4294901760
        %v3251 = vsub.f32 %v1496, %v3250
        %v3252 = vand.u32 %v3251, 4294901760
        %v3253 = vsub.f32 %v3251, %v3252
        %v3254 = vand.u32 %v3253, 4294901760
        %3255 = vmatprep.subr.mxu0 %v3254
        %v3256 = vand.u32 %v1495, 4294901760
        %v3257 = vsub.f32 %v1495, %v3256
        %v3258 = vand.u32 %v3257, 4294901760
        %v3259 = vsub.f32 %v3257, %v3258
        %v3260 = vand.u32 %v3259, 4294901760
        %3261 = vmatpush1.msra.mxu0 %v3260
        %v3262 = vand.u32 %v1498, 4294901760
        %v3263 = vsub.f32 %v1498, %v3262
        %v3264 = vand.u32 %v3263, 4294901760
        %v3265 = vsub.f32 %v3263, %v3264
        %v3266 = vand.u32 %v3265, 4294901760
        %3267 = vmatprep.subr.mxu0 %v3266
        %v3268 = vand.u32 %v1497, 4294901760
        %v3269 = vsub.f32 %v1497, %v3268
        %v3270 = vand.u32 %v3269, 4294901760
        %v3271 = vsub.f32 %v3269, %v3270
        %v3272 = vand.u32 %v3271, 4294901760
        %3273 = vmatpush1.msra.mxu0 %v3272
        %v3274 = vand.u32 %v1500, 4294901760
        %v3275 = vsub.f32 %v1500, %v3274
        %v3276 = vand.u32 %v3275, 4294901760
        %v3277 = vsub.f32 %v3275, %v3276
        %v3278 = vand.u32 %v3277, 4294901760
        %3279 = vmatprep.subr.mxu0 %v3278
        %v3280 = vand.u32 %v1499, 4294901760
        %v3281 = vsub.f32 %v1499, %v3280
        %v3282 = vand.u32 %v3281, 4294901760
        %v3283 = vsub.f32 %v3281, %v3282
        %v3284 = vand.u32 %v3283, 4294901760
        %3285 = vmatpush1.msra.mxu0 %v3284
        %v3286 = vand.u32 %v1502, 4294901760
        %v3287 = vsub.f32 %v1502, %v3286
        %v3288 = vand.u32 %v3287, 4294901760
        %v3289 = vsub.f32 %v3287, %v3288
        %v3290 = vand.u32 %v3289, 4294901760
        %3291 = vmatprep.subr.mxu0 %v3290
        %v3292 = vand.u32 %v1501, 4294901760
        %v3293 = vsub.f32 %v1501, %v3292
        %v3294 = vand.u32 %v3293, 4294901760
        %v3295 = vsub.f32 %v3293, %v3294
        %v3296 = vand.u32 %v3295, 4294901760
        %3297 = vmatpush1.msra.mxu0 %v3296
        %v3298 = vand.u32 %v1504, 4294901760
        %v3299 = vsub.f32 %v1504, %v3298
        %v3300 = vand.u32 %v3299, 4294901760
        %v3301 = vsub.f32 %v3299, %v3300
        %v3302 = vand.u32 %v3301, 4294901760
        %3303 = vmatprep.subr.mxu0 %v3302
        %v3304 = vand.u32 %v1503, 4294901760
        %v3305 = vsub.f32 %v1503, %v3304
        %v3306 = vand.u32 %v3305, 4294901760
        %v3307 = vsub.f32 %v3305, %v3306
        %v3308 = vand.u32 %v3307, 4294901760
        %3309 = vmatpush1.msra.mxu0 %v3308
        %v3310 = vand.u32 %v1506, 4294901760
        %v3311 = vsub.f32 %v1506, %v3310
        %v3312 = vand.u32 %v3311, 4294901760
        %v3313 = vsub.f32 %v3311, %v3312
        %v3314 = vand.u32 %v3313, 4294901760
        %3315 = vmatprep.subr.mxu0 %v3314
        %v3316 = vand.u32 %v1505, 4294901760
        %v3317 = vsub.f32 %v1505, %v3316
        %v3318 = vand.u32 %v3317, 4294901760
        %v3319 = vsub.f32 %v3317, %v3318
        %v3320 = vand.u32 %v3319, 4294901760
        %3321 = vmatpush1.msra.mxu0 %v3320
        %v3322 = vand.u32 %v1378, 4294901760
        %3323 = vmatprep.mubr.f32.mxu0 %v3322
        %v3324 = vand.u32 %v1369, 4294901760
        %3325 = vmatmul.mubr.f32.gmra.mrb[0].mxu0 %v3324
        %v3326 = vpop.f32.mrb[0].mxu0
        %v3327 = vadd.f32 %v2934, %v3326
        %v3328 = vpop.f32.mrb[0].mxu0
        %v3329 = vadd.f32 %v2936, %v3328
        %3330 = vdwg.mxu0
        %v3331 = vand.u32 %v1444, 4294901760
        %v3332 = vsub.f32 %v1444, %v3331
        %3333 = vmatprep.subr.mxu0 %v3332
        %v3334 = vand.u32 %v1443, 4294901760
        %v3335 = vsub.f32 %v1443, %v3334
        %3336 = vmatpush1.msra.mxu0 %v3335
        %v3337 = vand.u32 %v1446, 4294901760
        %v3338 = vsub.f32 %v1446, %v3337
        %3339 = vmatprep.subr.mxu0 %v3338
        %v3340 = vand.u32 %v1445, 4294901760
        %v3341 = vsub.f32 %v1445, %v3340
        %3342 = vmatpush1.msra.mxu0 %v3341
        %v3343 = vand.u32 %v1448, 4294901760
        %v3344 = vsub.f32 %v1448, %v3343
        %3345 = vmatprep.subr.mxu0 %v3344
        %v3346 = vand.u32 %v1447, 4294901760
        %v3347 = vsub.f32 %v1447, %v3346
        %3348 = vmatpush1.msra.mxu0 %v3347
        %v3349 = vand.u32 %v1450, 4294901760
        %v3350 = vsub.f32 %v1450, %v3349
        %3351 = vmatprep.subr.mxu0 %v3350
        %v3352 = vand.u32 %v1449, 4294901760
        %v3353 = vsub.f32 %v1449, %v3352
        %3354 = vmatpush1.msra.mxu0 %v3353
        %v3355 = vand.u32 %v1452, 4294901760
        %v3356 = vsub.f32 %v1452, %v3355
        %3357 = vmatprep.subr.mxu0 %v3356
        %v3358 = vand.u32 %v1451, 4294901760
        %v3359 = vsub.f32 %v1451, %v3358
        %3360 = vmatpush1.msra.mxu0 %v3359
        %v3361 = vand.u32 %v1454, 4294901760
        %v3362 = vsub.f32 %v1454, %v3361
        %3363 = vmatprep.subr.mxu0 %v3362
        %v3364 = vand.u32 %v1453, 4294901760
        %v3365 = vsub.f32 %v1453, %v3364
        %3366 = vmatpush1.msra.mxu0 %v3365
        %v3367 = vand.u32 %v1456, 4294901760
        %v3368 = vsub.f32 %v1456, %v3367
        %3369 = vmatprep.subr.mxu0 %v3368
        %v3370 = vand.u32 %v1455, 4294901760
        %v3371 = vsub.f32 %v1455, %v3370
        %3372 = vmatpush1.msra.mxu0 %v3371
        %v3373 = vand.u32 %v1458, 4294901760
        %v3374 = vsub.f32 %v1458, %v3373
        %3375 = vmatprep.subr.mxu0 %v3374
        %v3376 = vand.u32 %v1457, 4294901760
        %v3377 = vsub.f32 %v1457, %v3376
        %3378 = vmatpush1.msra.mxu0 %v3377
        %v3379 = vand.u32 %v1460, 4294901760
        %v3380 = vsub.f32 %v1460, %v3379
        %3381 = vmatprep.subr.mxu0 %v3380
        %v3382 = vand.u32 %v1459, 4294901760
        %v3383 = vsub.f32 %v1459, %v3382
        %3384 = vmatpush1.msra.mxu0 %v3383
        %v3385 = vand.u32 %v1462, 4294901760
        %v3386 = vsub.f32 %v1462, %v3385
        %3387 = vmatprep.subr.mxu0 %v3386
        %v3388 = vand.u32 %v1461, 4294901760
        %v3389 = vsub.f32 %v1461, %v3388
        %3390 = vmatpush1.msra.mxu0 %v3389
        %v3391 = vand.u32 %v1464, 4294901760
        %v3392 = vsub.f32 %v1464, %v3391
        %3393 = vmatprep.subr.mxu0 %v3392
        %v3394 = vand.u32 %v1463, 4294901760
        %v3395 = vsub.f32 %v1463, %v3394
        %3396 = vmatpush1.msra.mxu0 %v3395
        %v3397 = vand.u32 %v1466, 4294901760
        %v3398 = vsub.f32 %v1466, %v3397
        %3399 = vmatprep.subr.mxu0 %v3398
        %v3400 = vand.u32 %v1465, 4294901760
        %v3401 = vsub.f32 %v1465, %v3400
        %3402 = vmatpush1.msra.mxu0 %v3401
        %v3403 = vand.u32 %v1468, 4294901760
        %v3404 = vsub.f32 %v1468, %v3403
        %3405 = vmatprep.subr.mxu0 %v3404
        %v3406 = vand.u32 %v1467, 4294901760
        %v3407 = vsub.f32 %v1467, %v3406
        %3408 = vmatpush1.msra.mxu0 %v3407
        %v3409 = vand.u32 %v1470, 4294901760
        %v3410 = vsub.f32 %v1470, %v3409
        %3411 = vmatprep.subr.mxu0 %v3410
        %v3412 = vand.u32 %v1469, 4294901760
        %v3413 = vsub.f32 %v1469, %v3412
        %3414 = vmatpush1.msra.mxu0 %v3413
        %v3415 = vand.u32 %v1472, 4294901760
        %v3416 = vsub.f32 %v1472, %v3415
        %3417 = vmatprep.subr.mxu0 %v3416
        %v3418 = vand.u32 %v1471, 4294901760
        %v3419 = vsub.f32 %v1471, %v3418
        %3420 = vmatpush1.msra.mxu0 %v3419
        %v3421 = vand.u32 %v1474, 4294901760
        %v3422 = vsub.f32 %v1474, %v3421
        %3423 = vmatprep.subr.mxu0 %v3422
        %v3424 = vand.u32 %v1473, 4294901760
        %v3425 = vsub.f32 %v1473, %v3424
        %3426 = vmatpush1.msra.mxu0 %v3425
        %v3427 = vand.u32 %v1476, 4294901760
        %v3428 = vsub.f32 %v1476, %v3427
        %3429 = vmatprep.subr.mxu0 %v3428
        %v3430 = vand.u32 %v1475, 4294901760
        %v3431 = vsub.f32 %v1475, %v3430
        %3432 = vmatpush1.msra.mxu0 %v3431
        %v3433 = vand.u32 %v1478, 4294901760
        %v3434 = vsub.f32 %v1478, %v3433
        %3435 = vmatprep.subr.mxu0 %v3434
        %v3436 = vand.u32 %v1477, 4294901760
        %v3437 = vsub.f32 %v1477, %v3436
        %3438 = vmatpush1.msra.mxu0 %v3437
        %v3439 = vand.u32 %v1480, 4294901760
        %v3440 = vsub.f32 %v1480, %v3439
        %3441 = vmatprep.subr.mxu0 %v3440
        %v3442 = vand.u32 %v1479, 4294901760
        %v3443 = vsub.f32 %v1479, %v3442
        %3444 = vmatpush1.msra.mxu0 %v3443
        %v3445 = vand.u32 %v1482, 4294901760
        %v3446 = vsub.f32 %v1482, %v3445
        %3447 = vmatprep.subr.mxu0 %v3446
        %v3448 = vand.u32 %v1481, 4294901760
        %v3449 = vsub.f32 %v1481, %v3448
        %3450 = vmatpush1.msra.mxu0 %v3449
        %v3451 = vand.u32 %v1484, 4294901760
        %v3452 = vsub.f32 %v1484, %v3451
        %3453 = vmatprep.subr.mxu0 %v3452
        %v3454 = vand.u32 %v1483, 4294901760
        %v3455 = vsub.f32 %v1483, %v3454
        %3456 = vmatpush1.msra.mxu0 %v3455
        %v3457 = vand.u32 %v1486, 4294901760
        %v3458 = vsub.f32 %v1486, %v3457
        %3459 = vmatprep.subr.mxu0 %v3458
        %v3460 = vand.u32 %v1485, 4294901760
        %v3461 = vsub.f32 %v1485, %v3460
        %3462 = vmatpush1.msra.mxu0 %v3461
        %v3463 = vand.u32 %v1488, 4294901760
        %v3464 = vsub.f32 %v1488, %v3463
        %3465 = vmatprep.subr.mxu0 %v3464
        %v3466 = vand.u32 %v1487, 4294901760
        %v3467 = vsub.f32 %v1487, %v3466
        %3468 = vmatpush1.msra.mxu0 %v3467
        %v3469 = vand.u32 %v1490, 4294901760
        %v3470 = vsub.f32 %v1490, %v3469
        %3471 = vmatprep.subr.mxu0 %v3470
        %v3472 = vand.u32 %v1489, 4294901760
        %v3473 = vsub.f32 %v1489, %v3472
        %3474 = vmatpush1.msra.mxu0 %v3473
        %v3475 = vand.u32 %v1492, 4294901760
        %v3476 = vsub.f32 %v1492, %v3475
        %3477 = vmatprep.subr.mxu0 %v3476
        %v3478 = vand.u32 %v1491, 4294901760
        %v3479 = vsub.f32 %v1491, %v3478
        %3480 = vmatpush1.msra.mxu0 %v3479
        %v3481 = vand.u32 %v1494, 4294901760
        %v3482 = vsub.f32 %v1494, %v3481
        %3483 = vmatprep.subr.mxu0 %v3482
        %v3484 = vand.u32 %v1493, 4294901760
        %v3485 = vsub.f32 %v1493, %v3484
        %3486 = vmatpush1.msra.mxu0 %v3485
        %v3487 = vand.u32 %v1496, 4294901760
        %v3488 = vsub.f32 %v1496, %v3487
        %3489 = vmatprep.subr.mxu0 %v3488
        %v3490 = vand.u32 %v1495, 4294901760
        %v3491 = vsub.f32 %v1495, %v3490
        %3492 = vmatpush1.msra.mxu0 %v3491
        %v3493 = vand.u32 %v1498, 4294901760
        %v3494 = vsub.f32 %v1498, %v3493
        %3495 = vmatprep.subr.mxu0 %v3494
        %v3496 = vand.u32 %v1497, 4294901760
        %v3497 = vsub.f32 %v1497, %v3496
        %3498 = vmatpush1.msra.mxu0 %v3497
        %v3499 = vand.u32 %v1500, 4294901760
        %v3500 = vsub.f32 %v1500, %v3499
        %3501 = vmatprep.subr.mxu0 %v3500
        %v3502 = vand.u32 %v1499, 4294901760
        %v3503 = vsub.f32 %v1499, %v3502
        %3504 = vmatpush1.msra.mxu0 %v3503
        %v3505 = vand.u32 %v1502, 4294901760
        %v3506 = vsub.f32 %v1502, %v3505
        %3507 = vmatprep.subr.mxu0 %v3506
        %v3508 = vand.u32 %v1501, 4294901760
        %v3509 = vsub.f32 %v1501, %v3508
        %3510 = vmatpush1.msra.mxu0 %v3509
        %v3511 = vand.u32 %v1504, 4294901760
        %v3512 = vsub.f32 %v1504, %v3511
        %3513 = vmatprep.subr.mxu0 %v3512
        %v3514 = vand.u32 %v1503, 4294901760
        %v3515 = vsub.f32 %v1503, %v3514
        %3516 = vmatpush1.msra.mxu0 %v3515
        %v3517 = vand.u32 %v1506, 4294901760
        %v3518 = vsub.f32 %v1506, %v3517
        %3519 = vmatprep.subr.mxu0 %v3518
        %v3520 = vand.u32 %v1505, 4294901760
        %v3521 = vsub.f32 %v1505, %v3520
        %3522 = vmatpush1.msra.mxu0 %v3521
        %v3523 = vand.u32 %v1378, 4294901760
        %v3524 = vsub.f32 %v1378, %v3523
        %3525 = vmatprep.mubr.f32.mxu0 %v3524
        %v3526 = vand.u32 %v1369, 4294901760
        %v3527 = vsub.f32 %v1369, %v3526
        %3528 = vmatmul.mubr.f32.gmra.mrb[0].mxu0 %v3527
        %v3529 = vpop.f32.mrb[0].mxu0
        %v3530 = vadd.f32 %v3327, %v3529
        %v3531 = vpop.f32.mrb[0].mxu0
        %v3532 = vadd.f32 %v3329, %v3531
        %3533 = vdwg.mxu0
        %v3534 = vand.u32 %v1444, 4294901760
        %3535 = vmatprep.subr.mxu0 %v3534
        %v3536 = vand.u32 %v1443, 4294901760
        %3537 = vmatpush1.msra.mxu0 %v3536
        %v3538 = vand.u32 %v1446, 4294901760
        %3539 = vmatprep.subr.mxu0 %v3538
        %v3540 = vand.u32 %v1445, 4294901760
        %3541 = vmatpush1.msra.mxu0 %v3540
        %v3542 = vand.u32 %v1448, 4294901760
        %3543 = vmatprep.subr.mxu0 %v3542
        %v3544 = vand.u32 %v1447, 4294901760
        %3545 = vmatpush1.msra.mxu0 %v3544
        %v3546 = vand.u32 %v1450, 4294901760
        %3547 = vmatprep.subr.mxu0 %v3546
        %v3548 = vand.u32 %v1449, 4294901760
        %3549 = vmatpush1.msra.mxu0 %v3548
        %v3550 = vand.u32 %v1452, 4294901760
        %3551 = vmatprep.subr.mxu0 %v3550
        %v3552 = vand.u32 %v1451, 4294901760
        %3553 = vmatpush1.msra.mxu0 %v3552
        %v3554 = vand.u32 %v1454, 4294901760
        %3555 = vmatprep.subr.mxu0 %v3554
        %v3556 = vand.u32 %v1453, 4294901760
        %3557 = vmatpush1.msra.mxu0 %v3556
        %v3558 = vand.u32 %v1456, 4294901760
        %3559 = vmatprep.subr.mxu0 %v3558
        %v3560 = vand.u32 %v1455, 4294901760
        %3561 = vmatpush1.msra.mxu0 %v3560
        %v3562 = vand.u32 %v1458, 4294901760
        %3563 = vmatprep.subr.mxu0 %v3562
        %v3564 = vand.u32 %v1457, 4294901760
        %3565 = vmatpush1.msra.mxu0 %v3564
        %v3566 = vand.u32 %v1460, 4294901760
        %3567 = vmatprep.subr.mxu0 %v3566
        %v3568 = vand.u32 %v1459, 4294901760
        %3569 = vmatpush1.msra.mxu0 %v3568
        %v3570 = vand.u32 %v1462, 4294901760
        %3571 = vmatprep.subr.mxu0 %v3570
        %v3572 = vand.u32 %v1461, 4294901760
        %3573 = vmatpush1.msra.mxu0 %v3572
        %v3574 = vand.u32 %v1464, 4294901760
        %3575 = vmatprep.subr.mxu0 %v3574
        %v3576 = vand.u32 %v1463, 4294901760
        %3577 = vmatpush1.msra.mxu0 %v3576
        %v3578 = vand.u32 %v1466, 4294901760
        %3579 = vmatprep.subr.mxu0 %v3578
        %v3580 = vand.u32 %v1465, 4294901760
        %3581 = vmatpush1.msra.mxu0 %v3580
        %v3582 = vand.u32 %v1468, 4294901760
        %3583 = vmatprep.subr.mxu0 %v3582
        %v3584 = vand.u32 %v1467, 4294901760
        %3585 = vmatpush1.msra.mxu0 %v3584
        %v3586 = vand.u32 %v1470, 4294901760
        %3587 = vmatprep.subr.mxu0 %v3586
        %v3588 = vand.u32 %v1469, 4294901760
        %3589 = vmatpush1.msra.mxu0 %v3588
        %v3590 = vand.u32 %v1472, 4294901760
        %3591 = vmatprep.subr.mxu0 %v3590
        %v3592 = vand.u32 %v1471, 4294901760
        %3593 = vmatpush1.msra.mxu0 %v3592
        %v3594 = vand.u32 %v1474, 4294901760
        %3595 = vmatprep.subr.mxu0 %v3594
        %v3596 = vand.u32 %v1473, 4294901760
        %3597 = vmatpush1.msra.mxu0 %v3596
        %v3598 = vand.u32 %v1476, 4294901760
        %3599 = vmatprep.subr.mxu0 %v3598
        %v3600 = vand.u32 %v1475, 4294901760
        %3601 = vmatpush1.msra.mxu0 %v3600
        %v3602 = vand.u32 %v1478, 4294901760
        %3603 = vmatprep.subr.mxu0 %v3602
        %v3604 = vand.u32 %v1477, 4294901760
        %3605 = vmatpush1.msra.mxu0 %v3604
        %v3606 = vand.u32 %v1480, 4294901760
        %3607 = vmatprep.subr.mxu0 %v3606
        %v3608 = vand.u32 %v1479, 4294901760
        %3609 = vmatpush1.msra.mxu0 %v3608
        %v3610 = vand.u32 %v1482, 4294901760
        %3611 = vmatprep.subr.mxu0 %v3610
        %v3612 = vand.u32 %v1481, 4294901760
        %3613 = vmatpush1.msra.mxu0 %v3612
        %v3614 = vand.u32 %v1484, 4294901760
        %3615 = vmatprep.subr.mxu0 %v3614
        %v3616 = vand.u32 %v1483, 4294901760
        %3617 = vmatpush1.msra.mxu0 %v3616
        %v3618 = vand.u32 %v1486, 4294901760
        %3619 = vmatprep.subr.mxu0 %v3618
        %v3620 = vand.u32 %v1485, 4294901760
        %3621 = vmatpush1.msra.mxu0 %v3620
        %v3622 = vand.u32 %v1488, 4294901760
        %3623 = vmatprep.subr.mxu0 %v3622
        %v3624 = vand.u32 %v1487, 4294901760
        %3625 = vmatpush1.msra.mxu0 %v3624
        %v3626 = vand.u32 %v1490, 4294901760
        %3627 = vmatprep.subr.mxu0 %v3626
        %v3628 = vand.u32 %v1489, 4294901760
        %3629 = vmatpush1.msra.mxu0 %v3628
        %v3630 = vand.u32 %v1492, 4294901760
        %3631 = vmatprep.subr.mxu0 %v3630
        %v3632 = vand.u32 %v1491, 4294901760
        %3633 = vmatpush1.msra.mxu0 %v3632
        %v3634 = vand.u32 %v1494, 4294901760
        %3635 = vmatprep.subr.mxu0 %v3634
        %v3636 = vand.u32 %v1493, 4294901760
        %3637 = vmatpush1.msra.mxu0 %v3636
        %v3638 = vand.u32 %v1496, 4294901760
        %3639 = vmatprep.subr.mxu0 %v3638
        %v3640 = vand.u32 %v1495, 4294901760
        %3641 = vmatpush1.msra.mxu0 %v3640
        %v3642 = vand.u32 %v1498, 4294901760
        %3643 = vmatprep.subr.mxu0 %v3642
        %v3644 = vand.u32 %v1497, 4294901760
        %3645 = vmatpush1.msra.mxu0 %v3644
        %v3646 = vand.u32 %v1500, 4294901760
        %3647 = vmatprep.subr.mxu0 %v3646
        %v3648 = vand.u32 %v1499, 4294901760
        %3649 = vmatpush1.msra.mxu0 %v3648
        %v3650 = vand.u32 %v1502, 4294901760
        %3651 = vmatprep.subr.mxu0 %v3650
        %v3652 = vand.u32 %v1501, 4294901760
        %3653 = vmatpush1.msra.mxu0 %v3652
        %v3654 = vand.u32 %v1504, 4294901760
        %3655 = vmatprep.subr.mxu0 %v3654
        %v3656 = vand.u32 %v1503, 4294901760
        %3657 = vmatpush1.msra.mxu0 %v3656
        %v3658 = vand.u32 %v1506, 4294901760
        %3659 = vmatprep.subr.mxu0 %v3658
        %v3660 = vand.u32 %v1505, 4294901760
        %3661 = vmatpush1.msra.mxu0 %v3660
        %v3662 = vand.u32 %v1378, 4294901760
        %v3663 = vsub.f32 %v1378, %v3662
        %v3664 = vand.u32 %v3663, 4294901760
        %3665 = vmatprep.mubr.f32.mxu0 %v3664
        %v3666 = vand.u32 %v1369, 4294901760
        %v3667 = vsub.f32 %v1369, %v3666
        %v3668 = vand.u32 %v3667, 4294901760
        %3669 = vmatmul.mubr.f32.gmra.mrb[0].mxu0 %v3668
        %v3670 = vpop.f32.mrb[0].mxu0
        %v3671 = vadd.f32 %v3530, %v3670
        %v3672 = vpop.f32.mrb[0].mxu0
        %v3673 = vadd.f32 %v3532, %v3672
        %3674 = vdwg.mxu0
        %v3675 = vand.u32 %v1444, 4294901760
        %v3676 = vsub.f32 %v1444, %v3675
        %v3677 = vand.u32 %v3676, 4294901760
        %3678 = vmatprep.subr.mxu0 %v3677
        %v3679 = vand.u32 %v1443, 4294901760
        %v3680 = vsub.f32 %v1443, %v3679
        %v3681 = vand.u32 %v3680, 4294901760
        %3682 = vmatpush1.msra.mxu0 %v3681
        %v3683 = vand.u32 %v1446, 4294901760
        %v3684 = vsub.f32 %v1446, %v3683
        %v3685 = vand.u32 %v3684, 4294901760
        %3686 = vmatprep.subr.mxu0 %v3685
        %v3687 = vand.u32 %v1445, 4294901760
        %v3688 = vsub.f32 %v1445, %v3687
        %v3689 = vand.u32 %v3688, 4294901760
        %3690 = vmatpush1.msra.mxu0 %v3689
        %v3691 = vand.u32 %v1448, 4294901760
        %v3692 = vsub.f32 %v1448, %v3691
        %v3693 = vand.u32 %v3692, 4294901760
        %3694 = vmatprep.subr.mxu0 %v3693
        %v3695 = vand.u32 %v1447, 4294901760
        %v3696 = vsub.f32 %v1447, %v3695
        %v3697 = vand.u32 %v3696, 4294901760
        %3698 = vmatpush1.msra.mxu0 %v3697
        %v3699 = vand.u32 %v1450, 4294901760
        %v3700 = vsub.f32 %v1450, %v3699
        %v3701 = vand.u32 %v3700, 4294901760
        %3702 = vmatprep.subr.mxu0 %v3701
        %v3703 = vand.u32 %v1449, 4294901760
        %v3704 = vsub.f32 %v1449, %v3703
        %v3705 = vand.u32 %v3704, 4294901760
        %3706 = vmatpush1.msra.mxu0 %v3705
        %v3707 = vand.u32 %v1452, 4294901760
        %v3708 = vsub.f32 %v1452, %v3707
        %v3709 = vand.u32 %v3708, 4294901760
        %3710 = vmatprep.subr.mxu0 %v3709
        %v3711 = vand.u32 %v1451, 4294901760
        %v3712 = vsub.f32 %v1451, %v3711
        %v3713 = vand.u32 %v3712, 4294901760
        %3714 = vmatpush1.msra.mxu0 %v3713
        %v3715 = vand.u32 %v1454, 4294901760
        %v3716 = vsub.f32 %v1454, %v3715
        %v3717 = vand.u32 %v3716, 4294901760
        %3718 = vmatprep.subr.mxu0 %v3717
        %v3719 = vand.u32 %v1453, 4294901760
        %v3720 = vsub.f32 %v1453, %v3719
        %v3721 = vand.u32 %v3720, 4294901760
        %3722 = vmatpush1.msra.mxu0 %v3721
        %v3723 = vand.u32 %v1456, 4294901760
        %v3724 = vsub.f32 %v1456, %v3723
        %v3725 = vand.u32 %v3724, 4294901760
        %3726 = vmatprep.subr.mxu0 %v3725
        %v3727 = vand.u32 %v1455, 4294901760
        %v3728 = vsub.f32 %v1455, %v3727
        %v3729 = vand.u32 %v3728, 4294901760
        %3730 = vmatpush1.msra.mxu0 %v3729
        %v3731 = vand.u32 %v1458, 4294901760
        %v3732 = vsub.f32 %v1458, %v3731
        %v3733 = vand.u32 %v3732, 4294901760
        %3734 = vmatprep.subr.mxu0 %v3733
        %v3735 = vand.u32 %v1457, 4294901760
        %v3736 = vsub.f32 %v1457, %v3735
        %v3737 = vand.u32 %v3736, 4294901760
        %3738 = vmatpush1.msra.mxu0 %v3737
        %v3739 = vand.u32 %v1460, 4294901760
        %v3740 = vsub.f32 %v1460, %v3739
        %v3741 = vand.u32 %v3740, 4294901760
        %3742 = vmatprep.subr.mxu0 %v3741
        %v3743 = vand.u32 %v1459, 4294901760
        %v3744 = vsub.f32 %v1459, %v3743
        %v3745 = vand.u32 %v3744, 4294901760
        %3746 = vmatpush1.msra.mxu0 %v3745
        %v3747 = vand.u32 %v1462, 4294901760
        %v3748 = vsub.f32 %v1462, %v3747
        %v3749 = vand.u32 %v3748, 4294901760
        %3750 = vmatprep.subr.mxu0 %v3749
        %v3751 = vand.u32 %v1461, 4294901760
        %v3752 = vsub.f32 %v1461, %v3751
        %v3753 = vand.u32 %v3752, 4294901760
        %3754 = vmatpush1.msra.mxu0 %v3753
        %v3755 = vand.u32 %v1464, 4294901760
        %v3756 = vsub.f32 %v1464, %v3755
        %v3757 = vand.u32 %v3756, 4294901760
        %3758 = vmatprep.subr.mxu0 %v3757
        %v3759 = vand.u32 %v1463, 4294901760
        %v3760 = vsub.f32 %v1463, %v3759
        %v3761 = vand.u32 %v3760, 4294901760
        %3762 = vmatpush1.msra.mxu0 %v3761
        %v3763 = vand.u32 %v1466, 4294901760
        %v3764 = vsub.f32 %v1466, %v3763
        %v3765 = vand.u32 %v3764, 4294901760
        %3766 = vmatprep.subr.mxu0 %v3765
        %v3767 = vand.u32 %v1465, 4294901760
        %v3768 = vsub.f32 %v1465, %v3767
        %v3769 = vand.u32 %v3768, 4294901760
        %3770 = vmatpush1.msra.mxu0 %v3769
        %v3771 = vand.u32 %v1468, 4294901760
        %v3772 = vsub.f32 %v1468, %v3771
        %v3773 = vand.u32 %v3772, 4294901760
        %3774 = vmatprep.subr.mxu0 %v3773
        %v3775 = vand.u32 %v1467, 4294901760
        %v3776 = vsub.f32 %v1467, %v3775
        %v3777 = vand.u32 %v3776, 4294901760
        %3778 = vmatpush1.msra.mxu0 %v3777
        %v3779 = vand.u32 %v1470, 4294901760
        %v3780 = vsub.f32 %v1470, %v3779
        %v3781 = vand.u32 %v3780, 4294901760
        %3782 = vmatprep.subr.mxu0 %v3781
        %v3783 = vand.u32 %v1469, 4294901760
        %v3784 = vsub.f32 %v1469, %v3783
        %v3785 = vand.u32 %v3784, 4294901760
        %3786 = vmatpush1.msra.mxu0 %v3785
        %v3787 = vand.u32 %v1472, 4294901760
        %v3788 = vsub.f32 %v1472, %v3787
        %v3789 = vand.u32 %v3788, 4294901760
        %3790 = vmatprep.subr.mxu0 %v3789
        %v3791 = vand.u32 %v1471, 4294901760
        %v3792 = vsub.f32 %v1471, %v3791
        %v3793 = vand.u32 %v3792, 4294901760
        %3794 = vmatpush1.msra.mxu0 %v3793
        %v3795 = vand.u32 %v1474, 4294901760
        %v3796 = vsub.f32 %v1474, %v3795
        %v3797 = vand.u32 %v3796, 4294901760
        %3798 = vmatprep.subr.mxu0 %v3797
        %v3799 = vand.u32 %v1473, 4294901760
        %v3800 = vsub.f32 %v1473, %v3799
        %v3801 = vand.u32 %v3800, 4294901760
        %3802 = vmatpush1.msra.mxu0 %v3801
        %v3803 = vand.u32 %v1476, 4294901760
        %v3804 = vsub.f32 %v1476, %v3803
        %v3805 = vand.u32 %v3804, 4294901760
        %3806 = vmatprep.subr.mxu0 %v3805
        %v3807 = vand.u32 %v1475, 4294901760
        %v3808 = vsub.f32 %v1475, %v3807
        %v3809 = vand.u32 %v3808, 4294901760
        %3810 = vmatpush1.msra.mxu0 %v3809
        %v3811 = vand.u32 %v1478, 4294901760
        %v3812 = vsub.f32 %v1478, %v3811
        %v3813 = vand.u32 %v3812, 4294901760
        %3814 = vmatprep.subr.mxu0 %v3813
        %v3815 = vand.u32 %v1477, 4294901760
        %v3816 = vsub.f32 %v1477, %v3815
        %v3817 = vand.u32 %v3816, 4294901760
        %3818 = vmatpush1.msra.mxu0 %v3817
        %v3819 = vand.u32 %v1480, 4294901760
        %v3820 = vsub.f32 %v1480, %v3819
        %v3821 = vand.u32 %v3820, 4294901760
        %3822 = vmatprep.subr.mxu0 %v3821
        %v3823 = vand.u32 %v1479, 4294901760
        %v3824 = vsub.f32 %v1479, %v3823
        %v3825 = vand.u32 %v3824, 4294901760
        %3826 = vmatpush1.msra.mxu0 %v3825
        %v3827 = vand.u32 %v1482, 4294901760
        %v3828 = vsub.f32 %v1482, %v3827
        %v3829 = vand.u32 %v3828, 4294901760
        %3830 = vmatprep.subr.mxu0 %v3829
        %v3831 = vand.u32 %v1481, 4294901760
        %v3832 = vsub.f32 %v1481, %v3831
        %v3833 = vand.u32 %v3832, 4294901760
        %3834 = vmatpush1.msra.mxu0 %v3833
        %v3835 = vand.u32 %v1484, 4294901760
        %v3836 = vsub.f32 %v1484, %v3835
        %v3837 = vand.u32 %v3836, 4294901760
        %3838 = vmatprep.subr.mxu0 %v3837
        %v3839 = vand.u32 %v1483, 4294901760
        %v3840 = vsub.f32 %v1483, %v3839
        %v3841 = vand.u32 %v3840, 4294901760
        %3842 = vmatpush1.msra.mxu0 %v3841
        %v3843 = vand.u32 %v1486, 4294901760
        %v3844 = vsub.f32 %v1486, %v3843
        %v3845 = vand.u32 %v3844, 4294901760
        %3846 = vmatprep.subr.mxu0 %v3845
        %v3847 = vand.u32 %v1485, 4294901760
        %v3848 = vsub.f32 %v1485, %v3847
        %v3849 = vand.u32 %v3848, 4294901760
        %3850 = vmatpush1.msra.mxu0 %v3849
        %v3851 = vand.u32 %v1488, 4294901760
        %v3852 = vsub.f32 %v1488, %v3851
        %v3853 = vand.u32 %v3852, 4294901760
        %3854 = vmatprep.subr.mxu0 %v3853
        %v3855 = vand.u32 %v1487, 4294901760
        %v3856 = vsub.f32 %v1487, %v3855
        %v3857 = vand.u32 %v3856, 4294901760
        %3858 = vmatpush1.msra.mxu0 %v3857
        %v3859 = vand.u32 %v1490, 4294901760
        %v3860 = vsub.f32 %v1490, %v3859
        %v3861 = vand.u32 %v3860, 4294901760
        %3862 = vmatprep.subr.mxu0 %v3861
        %v3863 = vand.u32 %v1489, 4294901760
        %v3864 = vsub.f32 %v1489, %v3863
        %v3865 = vand.u32 %v3864, 4294901760
        %3866 = vmatpush1.msra.mxu0 %v3865
        %v3867 = vand.u32 %v1492, 4294901760
        %v3868 = vsub.f32 %v1492, %v3867
        %v3869 = vand.u32 %v3868, 4294901760
        %3870 = vmatprep.subr.mxu0 %v3869
        %v3871 = vand.u32 %v1491, 4294901760
        %v3872 = vsub.f32 %v1491, %v3871
        %v3873 = vand.u32 %v3872, 4294901760
        %3874 = vmatpush1.msra.mxu0 %v3873
        %v3875 = vand.u32 %v1494, 4294901760
        %v3876 = vsub.f32 %v1494, %v3875
        %v3877 = vand.u32 %v3876, 4294901760
        %3878 = vmatprep.subr.mxu0 %v3877
        %v3879 = vand.u32 %v1493, 4294901760
        %v3880 = vsub.f32 %v1493, %v3879
        %v3881 = vand.u32 %v3880, 4294901760
        %3882 = vmatpush1.msra.mxu0 %v3881
        %v3883 = vand.u32 %v1496, 4294901760
        %v3884 = vsub.f32 %v1496, %v3883
        %v3885 = vand.u32 %v3884, 4294901760
        %3886 = vmatprep.subr.mxu0 %v3885
        %v3887 = vand.u32 %v1495, 4294901760
        %v3888 = vsub.f32 %v1495, %v3887
        %v3889 = vand.u32 %v3888, 4294901760
        %3890 = vmatpush1.msra.mxu0 %v3889
        %v3891 = vand.u32 %v1498, 4294901760
        %v3892 = vsub.f32 %v1498, %v3891
        %v3893 = vand.u32 %v3892, 4294901760
        %3894 = vmatprep.subr.mxu0 %v3893
        %v3895 = vand.u32 %v1497, 4294901760
        %v3896 = vsub.f32 %v1497, %v3895
        %v3897 = vand.u32 %v3896, 4294901760
        %3898 = vmatpush1.msra.mxu0 %v3897
        %v3899 = vand.u32 %v1500, 4294901760
        %v3900 = vsub.f32 %v1500, %v3899
        %v3901 = vand.u32 %v3900, 4294901760
        %3902 = vmatprep.subr.mxu0 %v3901
        %v3903 = vand.u32 %v1499, 4294901760
        %v3904 = vsub.f32 %v1499, %v3903
        %v3905 = vand.u32 %v3904, 4294901760
        %3906 = vmatpush1.msra.mxu0 %v3905
        %v3907 = vand.u32 %v1502, 4294901760
        %v3908 = vsub.f32 %v1502, %v3907
        %v3909 = vand.u32 %v3908, 4294901760
        %3910 = vmatprep.subr.mxu0 %v3909
        %v3911 = vand.u32 %v1501, 4294901760
        %v3912 = vsub.f32 %v1501, %v3911
        %v3913 = vand.u32 %v3912, 4294901760
        %3914 = vmatpush1.msra.mxu0 %v3913
        %v3915 = vand.u32 %v1504, 4294901760
        %v3916 = vsub.f32 %v1504, %v3915
        %v3917 = vand.u32 %v3916, 4294901760
        %3918 = vmatprep.subr.mxu0 %v3917
        %v3919 = vand.u32 %v1503, 4294901760
        %v3920 = vsub.f32 %v1503, %v3919
        %v3921 = vand.u32 %v3920, 4294901760
        %3922 = vmatpush1.msra.mxu0 %v3921
        %v3923 = vand.u32 %v1506, 4294901760
        %v3924 = vsub.f32 %v1506, %v3923
        %v3925 = vand.u32 %v3924, 4294901760
        %3926 = vmatprep.subr.mxu0 %v3925
        %v3927 = vand.u32 %v1505, 4294901760
        %v3928 = vsub.f32 %v1505, %v3927
        %v3929 = vand.u32 %v3928, 4294901760
        %3930 = vmatpush1.msra.mxu0 %v3929
        %v3931 = vand.u32 %v1378, 4294901760
        %3932 = vmatprep.mubr.f32.mxu0 %v3931
        %v3933 = vand.u32 %v1369, 4294901760
        %3934 = vmatmul.mubr.f32.gmra.mrb[0].mxu0 %v3933
        %v3935 = vpop.f32.mrb[0].mxu0
        %v3936 = vadd.f32 %v3671, %v3935
        %v3937 = vpop.f32.mrb[0].mxu0
        %v3938 = vadd.f32 %v3673, %v3937
        %3939 = vdwg.mxu0
        %v3940 = vand.u32 %v1444, 4294901760
        %3941 = vmatprep.subr.mxu0 %v3940
        %v3942 = vand.u32 %v1443, 4294901760
        %3943 = vmatpush1.msra.mxu0 %v3942
        %v3944 = vand.u32 %v1446, 4294901760
        %3945 = vmatprep.subr.mxu0 %v3944
        %v3946 = vand.u32 %v1445, 4294901760
        %3947 = vmatpush1.msra.mxu0 %v3946
        %v3948 = vand.u32 %v1448, 4294901760
        %3949 = vmatprep.subr.mxu0 %v3948
        %v3950 = vand.u32 %v1447, 4294901760
        %3951 = vmatpush1.msra.mxu0 %v3950
        %v3952 = vand.u32 %v1450, 4294901760
        %3953 = vmatprep.subr.mxu0 %v3952
        %v3954 = vand.u32 %v1449, 4294901760
        %3955 = vmatpush1.msra.mxu0 %v3954
        %v3956 = vand.u32 %v1452, 4294901760
        %3957 = vmatprep.subr.mxu0 %v3956
        %v3958 = vand.u32 %v1451, 4294901760
        %3959 = vmatpush1.msra.mxu0 %v3958
        %v3960 = vand.u32 %v1454, 4294901760
        %3961 = vmatprep.subr.mxu0 %v3960
        %v3962 = vand.u32 %v1453, 4294901760
        %3963 = vmatpush1.msra.mxu0 %v3962
        %v3964 = vand.u32 %v1456, 4294901760
        %3965 = vmatprep.subr.mxu0 %v3964
        %v3966 = vand.u32 %v1455, 4294901760
        %3967 = vmatpush1.msra.mxu0 %v3966
        %v3968 = vand.u32 %v1458, 4294901760
        %3969 = vmatprep.subr.mxu0 %v3968
        %v3970 = vand.u32 %v1457, 4294901760
        %3971 = vmatpush1.msra.mxu0 %v3970
        %v3972 = vand.u32 %v1460, 4294901760
        %3973 = vmatprep.subr.mxu0 %v3972
        %v3974 = vand.u32 %v1459, 4294901760
        %3975 = vmatpush1.msra.mxu0 %v3974
        %v3976 = vand.u32 %v1462, 4294901760
        %3977 = vmatprep.subr.mxu0 %v3976
        %v3978 = vand.u32 %v1461, 4294901760
        %3979 = vmatpush1.msra.mxu0 %v3978
        %v3980 = vand.u32 %v1464, 4294901760
        %3981 = vmatprep.subr.mxu0 %v3980
        %v3982 = vand.u32 %v1463, 4294901760
        %3983 = vmatpush1.msra.mxu0 %v3982
        %v3984 = vand.u32 %v1466, 4294901760
        %3985 = vmatprep.subr.mxu0 %v3984
        %v3986 = vand.u32 %v1465, 4294901760
        %3987 = vmatpush1.msra.mxu0 %v3986
        %v3988 = vand.u32 %v1468, 4294901760
        %3989 = vmatprep.subr.mxu0 %v3988
        %v3990 = vand.u32 %v1467, 4294901760
        %3991 = vmatpush1.msra.mxu0 %v3990
        %v3992 = vand.u32 %v1470, 4294901760
        %3993 = vmatprep.subr.mxu0 %v3992
        %v3994 = vand.u32 %v1469, 4294901760
        %3995 = vmatpush1.msra.mxu0 %v3994
        %v3996 = vand.u32 %v1472, 4294901760
        %3997 = vmatprep.subr.mxu0 %v3996
        %v3998 = vand.u32 %v1471, 4294901760
        %3999 = vmatpush1.msra.mxu0 %v3998
        %v4000 = vand.u32 %v1474, 4294901760
        %4001 = vmatprep.subr.mxu0 %v4000
        %v4002 = vand.u32 %v1473, 4294901760
        %4003 = vmatpush1.msra.mxu0 %v4002
        %v4004 = vand.u32 %v1476, 4294901760
        %4005 = vmatprep.subr.mxu0 %v4004
        %v4006 = vand.u32 %v1475, 4294901760
        %4007 = vmatpush1.msra.mxu0 %v4006
        %v4008 = vand.u32 %v1478, 4294901760
        %4009 = vmatprep.subr.mxu0 %v4008
        %v4010 = vand.u32 %v1477, 4294901760
        %4011 = vmatpush1.msra.mxu0 %v4010
        %v4012 = vand.u32 %v1480, 4294901760
        %4013 = vmatprep.subr.mxu0 %v4012
        %v4014 = vand.u32 %v1479, 4294901760
        %4015 = vmatpush1.msra.mxu0 %v4014
        %v4016 = vand.u32 %v1482, 4294901760
        %4017 = vmatprep.subr.mxu0 %v4016
        %v4018 = vand.u32 %v1481, 4294901760
        %4019 = vmatpush1.msra.mxu0 %v4018
        %v4020 = vand.u32 %v1484, 4294901760
        %4021 = vmatprep.subr.mxu0 %v4020
        %v4022 = vand.u32 %v1483, 4294901760
        %4023 = vmatpush1.msra.mxu0 %v4022
        %v4024 = vand.u32 %v1486, 4294901760
        %4025 = vmatprep.subr.mxu0 %v4024
        %v4026 = vand.u32 %v1485, 4294901760
        %4027 = vmatpush1.msra.mxu0 %v4026
        %v4028 = vand.u32 %v1488, 4294901760
        %4029 = vmatprep.subr.mxu0 %v4028
        %v4030 = vand.u32 %v1487, 4294901760
        %4031 = vmatpush1.msra.mxu0 %v4030
        %v4032 = vand.u32 %v1490, 4294901760
        %4033 = vmatprep.subr.mxu0 %v4032
        %v4034 = vand.u32 %v1489, 4294901760
        %4035 = vmatpush1.msra.mxu0 %v4034
        %v4036 = vand.u32 %v1492, 4294901760
        %4037 = vmatprep.subr.mxu0 %v4036
        %v4038 = vand.u32 %v1491, 4294901760
        %4039 = vmatpush1.msra.mxu0 %v4038
        %v4040 = vand.u32 %v1494, 4294901760
        %4041 = vmatprep.subr.mxu0 %v4040
        %v4042 = vand.u32 %v1493, 4294901760
        %4043 = vmatpush1.msra.mxu0 %v4042
        %v4044 = vand.u32 %v1496, 4294901760
        %4045 = vmatprep.subr.mxu0 %v4044
        %v4046 = vand.u32 %v1495, 4294901760
        %4047 = vmatpush1.msra.mxu0 %v4046
        %v4048 = vand.u32 %v1498, 4294901760
        %4049 = vmatprep.subr.mxu0 %v4048
        %v4050 = vand.u32 %v1497, 4294901760
        %4051 = vmatpush1.msra.mxu0 %v4050
        %v4052 = vand.u32 %v1500, 4294901760
        %4053 = vmatprep.subr.mxu0 %v4052
        %v4054 = vand.u32 %v1499, 4294901760
        %4055 = vmatpush1.msra.mxu0 %v4054
        %v4056 = vand.u32 %v1502, 4294901760
        %4057 = vmatprep.subr.mxu0 %v4056
        %v4058 = vand.u32 %v1501, 4294901760
        %4059 = vmatpush1.msra.mxu0 %v4058
        %v4060 = vand.u32 %v1504, 4294901760
        %4061 = vmatprep.subr.mxu0 %v4060
        %v4062 = vand.u32 %v1503, 4294901760
        %4063 = vmatpush1.msra.mxu0 %v4062
        %v4064 = vand.u32 %v1506, 4294901760
        %4065 = vmatprep.subr.mxu0 %v4064
        %v4066 = vand.u32 %v1505, 4294901760
        %4067 = vmatpush1.msra.mxu0 %v4066
        %v4068 = vand.u32 %v1378, 4294901760
        %4069 = vmatprep.mubr.f32.mxu0 %v4068
        %v4070 = vand.u32 %v1369, 4294901760
        %4071 = vmatmul.mubr.f32.gmra.mrb[0].mxu0 %v4070
        %v4072 = vpop.f32.mrb[0].mxu0
        %v4073 = vadd.f32 %v3936, %v4072
        %v4074 = vpop.f32.mrb[0].mxu0
        %v4075 = vadd.f32 %v3938, %v4074
        %4076 = vdwg.mxu0
        %v4077 = vsub.f32 0.0, %v4073
        %v4078 = vsub.f32 0.0, %v4075
        %v4079 = vmul.f32 %v4077, 1.442695
        %v4080 = vpow.pop %v4079
        %v4081 = vmul.f32 %v4078, 1.442695
        %v4082 = vpow.pop %v4081
        %v4083 = vadd.f32 %v4080, 1.0
        %v4084 = vadd.f32 %v4082, 1.0
        %v4085 = vrcp.pop %v4083
        %v4086 = vmul.f32 1.0, %v4085
        %v4087 = vrcp.pop %v4084
        %v4088 = vmul.f32 1.0, %v4087
        %v4089 = vlaneseq
        %v4090 = vshrl.u32 %v4089, 7
        %v4091 = vsub.s32 0, %v4090
        %v4092 = vrot.slane %v4086, %v4091
        %v4093 = vlaneseq
        %v4094 = vshrl.u32 %v4093, 7
        %v4095 = vsub.s32 0, %v4094
        %v4096 = vrot.slane %v4088, %v4095
        %v4097 = vmul.f32 %v1332, %v4092
        %v4098 = vmul.f32 %v1333, %v4096
        %v4099 = vmul.f32 %v1334, %v4092
        %v4100 = vmul.f32 %v1335, %v4096
        %v4101 = vmul.f32 %v1336, %v4092
        %v4102 = vmul.f32 %v1337, %v4096
        %v4103 = vmul.f32 %v1338, %v4092
        %v4104 = vmul.f32 %v1339, %v4096
        %4105 = vst [vmem:[%s258] sm:$0xff] %v4097
        %4106 = vst [vmem:[%s258 + $0x8] sm:$0xff] %v4098
        %4107 = vst [vmem:[%s258 + $0x10] sm:$0xff] %v4099
        %4108 = vst [vmem:[%s258 + $0x18] sm:$0xff] %v4100
        %4109 = vst [vmem:[%s258 + $0x20] sm:$0xff] %v4101
        %4110 = vst [vmem:[%s258 + $0x28] sm:$0xff] %v4102
        %4111 = vst [vmem:[%s258 + $0x30] sm:$0xff] %v4103
        %4112 = vst [vmem:[%s258 + $0x38] sm:$0xff] %v4104
        %s4113 = sand.u32 %s142, 1
        %s4114 = scalar_lea.sflag [#allocation5], %s4113
        %s4115 = sand.u32 %s142, 1
        %s4116 = smul.addr %s4115, 64
        %s4117 = scalar_lea.vmem [#allocation8], %s4116
        // Predicated region
        $region49: #{tpu_custom_call.1} parent=39 // pred_check
          %p4118 = pneg %p152
        $region50: #{tpu_custom_call.1} parent=39 // pred_check_branch
          %4120 = sbr.rel (%p4118) target = $region52
        $region51: #{tpu_custom_call.1} parent=39 // pred_region
          %s4122 = ssub.s32 1024, 1024
          %4123 = vsyncadd %s4114, %s4122
          %s4124 = smul.addr %s24, 8
          %s4125 = smul.addr %s4124, 128
          %s4126 = scalar_lea.hbm %s5, %s4125
          %s4127 = sshll.u32 %s4117, 4
          %s4128 = int_to_ptr.vmem [resolvable:$true] %s4127
          %4133 = dma.vmem_to_hbm [thread:$0]  %s4128, 1024, %s4126, %s4114, 256, 256, 16
        $region52: #{tpu_custom_call.1} parent=39 // pred_fallthru
          _
      $region40: #{tpu_custom_call.1} parent=5 // pred_fallthru
        _
      %p4134 = scmp.le.s32.totalorder 2, %s19
      // Predicated region
      $region53: #{tpu_custom_call.1} parent=5 // pred_check
        %p4135 = pneg %p4134
      $region54: #{tpu_custom_call.1} parent=5 // pred_check_branch
        %4137 = sbr.rel (%p4135) target = $region56
      $region55: #{tpu_custom_call.1} parent=5 // pred_region
        %s4138 = ssub.s32 %s19, 2
        // Predicated region
        $region57: #{tpu_custom_call.1} parent=55 // pred_check
          %p4139 = pneg %p158
        $region58: #{tpu_custom_call.1} parent=55 // pred_check_branch
          %4141 = sbr.rel (%p4139) target = $region60
        $region59: #{tpu_custom_call.1} parent=55 // pred_region
          %s4142 = sand.u32 %s143, 1
          %s4143 = scalar_lea.sflag [#allocation5], %s4142
          %s4144 = sand.u32 %s143, 1
          %s4145 = smul.addr %s4144, 64
          %s4146 = scalar_lea.vmem [#allocation8], %s4145
          %4147 = dma.done %s4143, 1024
        $region60: #{tpu_custom_call.1} parent=55 // pred_fallthru
          _
      $region56: #{tpu_custom_call.1} parent=5 // pred_fallthru
        _
    $region6: #{tpu_custom_call.1} parent=1 // loop_footer
      %s23 = sadd.s32 1, %s19
    $region7: #{tpu_custom_call.1} parent=1 // loop_footer_branch
      %18 = sbr.rel target = $region3
    $region8: #{tpu_custom_call.1} parent=1 // loop_exit
      _
    %4148 = vsyncpa [#allocation4], 1
    %s4149 = scalar_lea.sflag [#allocation4], 1
    %4150 = vsyncpa %s4149, 1
    %4151 = vsyncpa [#allocation7], 1
    %4152 = vsyncpa [#allocation5], 1
    %s4153 = scalar_lea.sflag [#allocation5], 1
    %4154 = vsyncpa %s4153, 1

</llo_original>
